<compile_context>
chip_gen: v5e
topology: v5e:2x2
jax: 0.10.0
libtpu: 0.0.40
codegen_flags: <defaults>
</compile_context>

<pallas_src>
import math
import functools

import jax
import jax.numpy as jnp
from jax.experimental import pallas as pl
from jax.experimental.pallas import tpu as pltpu


# ----------------------------------------------------------------------------
# Per-generation VMEM budget.
# ----------------------------------------------------------------------------

def _vmem_limit_bytes():
    cap = 128 * 1024 * 1024
    try:
        info = pltpu.get_tpu_info()
        cap = int(getattr(info, "vmem_capacity_bytes", cap))
    except Exception:
        cap = 64 * 1024 * 1024  # conservative fallback
    # leave headroom: ~96 MiB on 128 MiB chips (v5e/v6e), ~48 MiB on v7x
    return int(min(cap * 3 // 4, 96 * 1024 * 1024))


_VMEM_LIMIT = _vmem_limit_bytes()
_LN_EPS = 1e-5      # PyTorch nn.LayerNorm default
_MASK_NEG = -1e9    # matches masked_fill(mask == 0, -1e9)


def _pick_tile(dim, target, align):
    """Largest tile <= target that divides dim and is a multiple of align;
    falls back to the full dim (always a legal block size)."""
    if dim <= target:
        return dim
    t = (target // align) * align
    while t >= align:
        if dim % t == 0:
            return t
        t -= align
    return dim


# ----------------------------------------------------------------------------
# Tiled linear: out = x @ w + b (optional ReLU). bf16 MXU, f32 accumulator.
# ----------------------------------------------------------------------------

def _linear_kernel(x_ref, w_ref, b_ref, o_ref, acc_ref, *, relu):
    @pl.when(pl.program_id(2) == 0)
    def _():
        acc_ref[...] = jnp.zeros_like(acc_ref)

    acc_ref[...] += jnp.dot(x_ref[...].astype(jnp.bfloat16), w_ref[...],
                            preferred_element_type=jnp.float32)

    @pl.when(pl.program_id(2) == pl.num_programs(2) - 1)
    def _():
        r = acc_ref[...] + b_ref[...]
        if relu:
            r = jnp.maximum(r, 0.0)
        o_ref[...] = r


def linear(x2d, w, b, relu=False, tm=512, tn=512, tk=512):
    """x2d: [M, K] f32, w: [K, N] bf16, b: [N] f32 -> [M, N] f32."""
    M, K = x2d.shape
    N = w.shape[1]
    tm = _pick_tile(M, tm, 8)
    tn = _pick_tile(N, tn, 128)
    tk = _pick_tile(K, tk, 128)
    grid = (M // tm, N // tn, K // tk)
    kern = functools.partial(_linear_kernel, relu=relu)
    return pl.pallas_call(
        kern,
        out_shape=jax.ShapeDtypeStruct((M, N), jnp.float32),
        grid_spec=pltpu.PrefetchScalarGridSpec(
            num_scalar_prefetch=0,
            grid=grid,
            in_specs=[
                pl.BlockSpec((tm, tk), lambda i, j, k: (i, k)),
                pl.BlockSpec((tk, tn), lambda i, j, k: (k, j)),
                pl.BlockSpec((1, tn), lambda i, j, k: (0, j)),
            ],
            out_specs=pl.BlockSpec((tm, tn), lambda i, j, k: (i, j)),
            scratch_shapes=[pltpu.VMEM((tm, tn), jnp.float32)]),
        compiler_params=pltpu.CompilerParams(
            dimension_semantics=("parallel", "parallel", "arbitrary"),
            vmem_limit_bytes=_VMEM_LIMIT),
        cost_estimate=pl.CostEstimate(
            flops=2 * M * N * K,
            transcendentals=0,
            bytes_accessed=4 * M * K + 2 * K * N + 4 * N + 4 * M * N),
    )(x2d, w, b.reshape(1, N))


# ----------------------------------------------------------------------------
# Tiled linear fused with residual-add + LayerNorm in the last-K epilogue.
# Used for the attention output projection (N == d_model, so the full LN row
# is resident in one tile).
# ----------------------------------------------------------------------------

def _linear_add_ln_kernel(x_ref, w_ref, b_ref, r_ref, g_ref, bt_ref,
                          o_ref, acc_ref):
    k = pl.program_id(1)

    @pl.when(k == 0)
    def _():
        acc_ref[...] = jnp.zeros_like(acc_ref)

    acc_ref[...] += jnp.dot(x_ref[...].astype(jnp.bfloat16), w_ref[...],
                            preferred_element_type=jnp.float32)

    @pl.when(k == pl.num_programs(1) - 1)
    def _():
        y = acc_ref[...] + b_ref[...] + r_ref[...]
        mu = jnp.mean(y, axis=-1, keepdims=True)
        yc = y - mu
        var = jnp.mean(yc * yc, axis=-1, keepdims=True)
        o_ref[...] = yc * jax.lax.rsqrt(var + _LN_EPS) * g_ref[...] + bt_ref[...]


def linear_add_ln(x2d, w, b, res2d, gamma, beta, tm=512, tk=512):
    """LayerNorm(res + x @ w + b). x2d:[M,K] f32, w:[K,N] bf16 (N=d_model)."""
    M, K = x2d.shape
    N = w.shape[1]
    tm = _pick_tile(M, tm, 8)
    tk = _pick_tile(K, tk, 128)
    grid = (M // tm, K // tk)
    return pl.pallas_call(
        _linear_add_ln_kernel,
        out_shape=jax.ShapeDtypeStruct((M, N), jnp.float32),
        grid_spec=pltpu.PrefetchScalarGridSpec(
            num_scalar_prefetch=0,
            grid=grid,
            in_specs=[
                pl.BlockSpec((tm, tk), lambda i, k: (i, k)),
                pl.BlockSpec((tk, N), lambda i, k: (k, 0)),
                pl.BlockSpec((1, N), lambda i, k: (0, 0)),
                pl.BlockSpec((tm, N), lambda i, k: (i, 0)),
                pl.BlockSpec((1, N), lambda i, k: (0, 0)),
                pl.BlockSpec((1, N), lambda i, k: (0, 0)),
            ],
            out_specs=pl.BlockSpec((tm, N), lambda i, k: (i, 0)),
            scratch_shapes=[pltpu.VMEM((tm, N), jnp.float32)]),
        compiler_params=pltpu.CompilerParams(
            dimension_semantics=("parallel", "arbitrary"),
            vmem_limit_bytes=_VMEM_LIMIT),
        cost_estimate=pl.CostEstimate(
            flops=2 * M * N * K + 8 * M * N,
            transcendentals=0,
            bytes_accessed=4 * M * K + 2 * K * N + 8 * M * N + 12 * N),
    )(x2d, w, b.reshape(1, N), res2d, gamma.reshape(1, N), beta.reshape(1, N))


# ----------------------------------------------------------------------------
# FFN fused with residual-add + LayerNorm, d_ff chunked on a second grid axis
# (the [tm, d_ff] intermediate and full weights never live in VMEM at once).
# ----------------------------------------------------------------------------

def _ffn_add_ln_kernel(x_ref, w1_ref, b1_ref, w2_ref, b2_ref, g_ref, bt_ref,
                       o_ref, acc_ref):
    f = pl.program_id(1)

    @pl.when(f == 0)
    def _():
        acc_ref[...] = jnp.zeros_like(acc_ref)

    h = jnp.dot(x_ref[...].astype(jnp.bfloat16), w1_ref[...],
                preferred_element_type=jnp.float32) + b1_ref[...]
    h = jnp.maximum(h, 0.0)
    acc_ref[...] += jnp.dot(h.astype(jnp.bfloat16), w2_ref[...],
                            preferred_element_type=jnp.float32)

    @pl.when(f == pl.num_programs(1) - 1)
    def _():
        y = acc_ref[...] + b2_ref[...] + x_ref[...]      # residual = FFN input
        mu = jnp.mean(y, axis=-1, keepdims=True)
        yc = y - mu
        var = jnp.mean(yc * yc, axis=-1, keepdims=True)
        o_ref[...] = yc * jax.lax.rsqrt(var + _LN_EPS) * g_ref[...] + bt_ref[...]


def ffn_add_ln(x, p, gamma, beta, tm=256, tf=512):
    B, S, D = x.shape
    F = p["w1"].shape[1]
    M = B * S
    tm = _pick_tile(M, tm, 8)
    tf = _pick_tile(F, tf, 128)
    grid = (M // tm, F // tf)
    y = pl.pallas_call(
        _ffn_add_ln_kernel,
        out_shape=jax.ShapeDtypeStruct((M, D), jnp.float32),
        grid_spec=pltpu.PrefetchScalarGridSpec(
            num_scalar_prefetch=0,
            grid=grid,
            in_specs=[
                pl.BlockSpec((tm, D), lambda i, f: (i, 0)),
                pl.BlockSpec((D, tf), lambda i, f: (0, f)),
                pl.BlockSpec((1, tf), lambda i, f: (0, f)),
                pl.BlockSpec((tf, D), lambda i, f: (f, 0)),
                pl.BlockSpec((1, D), lambda i, f: (0, 0)),
                pl.BlockSpec((1, D), lambda i, f: (0, 0)),
                pl.BlockSpec((1, D), lambda i, f: (0, 0)),
            ],
            out_specs=pl.BlockSpec((tm, D), lambda i, f: (i, 0)),
            scratch_shapes=[pltpu.VMEM((tm, D), jnp.float32)]),
        compiler_params=pltpu.CompilerParams(
            dimension_semantics=("parallel", "arbitrary"),
            vmem_limit_bytes=_VMEM_LIMIT),
        cost_estimate=pl.CostEstimate(
            flops=4 * M * D * F + 8 * M * D,
            transcendentals=0,
            bytes_accessed=8 * M * D + 4 * D * F + 4 * (F + 3 * D)),
    )(x.reshape(M, D), p["w1"], p["b1"].reshape(1, F),
      p["w2"], p["b2"].reshape(1, D),
      gamma.reshape(1, D), beta.reshape(1, D))
    return y.reshape(B, S, D)


# ----------------------------------------------------------------------------
# Flash-style multi-head attention: grid = (B, Sq//tq, Sk//tk), online-softmax
# scratch in VMEM, heads handled in-kernel on the resident [tq/tk, D] tiles.
# Mask comes in compact ([B,1,Sk] pad or [1,Sq,Sk] causal) and is broadcast
# inside the kernel.
# ----------------------------------------------------------------------------

def _mha_flash_kernel(q_ref, k_ref, v_ref, m_ref, o_ref,
                      mstat_ref, lstat_ref, acc_ref, *, n_head, scale):
    ki = pl.program_id(2)

    @pl.when(ki == 0)
    def _():
        mstat_ref[...] = jnp.full(mstat_ref.shape, -jnp.inf, jnp.float32)
        lstat_ref[...] = jnp.zeros_like(lstat_ref)
        acc_ref[...] = jnp.zeros_like(acc_ref)

    q = q_ref[0]                        # [tq, D] f32
    k = k_ref[0]                        # [tk, D] f32
    v = v_ref[0]                        # [tk, D] f32
    # additive mask bias + q scaling hoisted out of the head loop
    neg = jnp.where(m_ref[0] == 0.0, jnp.float32(_MASK_NEG), jnp.float32(0.0))
    qs = (q * scale).astype(jnp.bfloat16)
    kb = k.astype(jnp.bfloat16)
    vb = v.astype(jnp.bfloat16)

    dh = q.shape[-1] // n_head
    for h in range(n_head):
        sl = slice(h * dh, (h + 1) * dh)
        s = jax.lax.dot_general(qs[:, sl], kb[:, sl],
                                (((1,), (1,)), ((), ())),
                                preferred_element_type=jnp.float32)  # [tq, tk]
        s = s + neg
        m_prev = mstat_ref[h]                                        # [tq, 1]
        m_new = jnp.maximum(m_prev, jnp.max(s, axis=-1, keepdims=True))
        alpha = jnp.exp(m_prev - m_new)
        p = jnp.exp(s - m_new)
        lstat_ref[h] = alpha * lstat_ref[h] + jnp.sum(p, axis=-1, keepdims=True)
        pv = jnp.dot(p.astype(jnp.bfloat16), vb[:, sl],
                     preferred_element_type=jnp.float32)             # [tq, dh]
        acc_ref[:, sl] = alpha * acc_ref[:, sl] + pv
        mstat_ref[h] = m_new

    @pl.when(ki == pl.num_programs(2) - 1)
    def _():
        # single lane-dense [tq, D] store
        inv = [jnp.broadcast_to(pl.reciprocal(lstat_ref[h], approx=True),
                                (q.shape[0], dh)) for h in range(n_head)]
        o_ref[0] = acc_ref[...] * jnp.concatenate(inv, axis=-1)


def mha_attention(q, k, v, mask, n_head, tq=256, tk=512):
    """q: [B,Sq,D], k/v: [B,Sk,D], mask: [B or 1, Sq or 1, Sk] -> [B,Sq,D]."""
    B, Sq, D = q.shape
    Sk = k.shape[1]
    Bm, Sm, _ = mask.shape
    dh = D // n_head
    tq = _pick_tile(Sq, tq, 8)
    tk = _pick_tile(Sk, tk, 128)
    grid = (B, Sq // tq, Sk // tk)

    mask_blk = (1, tq if Sm > 1 else 1, tk)

    def mask_map(b, qi, ki):
        return (b if Bm > 1 else 0, qi if Sm > 1 else 0, ki)

    kern = functools.partial(_mha_flash_kernel, n_head=n_head,
                             scale=1.0 / math.sqrt(dh))
    return pl.pallas_call(
        kern,
        out_shape=jax.ShapeDtypeStruct((B, Sq, D), jnp.float32),
        grid_spec=pltpu.PrefetchScalarGridSpec(
            num_scalar_prefetch=0,
            grid=grid,
            in_specs=[
                pl.BlockSpec((1, tq, D), lambda b, qi, ki: (b, qi, 0)),
                pl.BlockSpec((1, tk, D), lambda b, qi, ki: (b, ki, 0)),
                pl.BlockSpec((1, tk, D), lambda b, qi, ki: (b, ki, 0)),
                pl.BlockSpec(mask_blk, mask_map),
            ],
            out_specs=pl.BlockSpec((1, tq, D), lambda b, qi, ki: (b, qi, 0)),
            scratch_shapes=[
                pltpu.VMEM((n_head, tq, 1), jnp.float32),   # running max
                pltpu.VMEM((n_head, tq, 1), jnp.float32),   # running denom
                pltpu.VMEM((tq, D), jnp.float32),           # output accumulator
            ]),
        compiler_params=pltpu.CompilerParams(
            dimension_semantics=("parallel", "parallel", "arbitrary"),
            vmem_limit_bytes=_VMEM_LIMIT),
        cost_estimate=pl.CostEstimate(
            flops=4 * B * Sq * Sk * D,
            transcendentals=B * n_head * Sq * Sk,
            bytes_accessed=4 * (2 * B * Sq * D + 2 * B * Sk * D + Bm * Sm * Sk)),
    )(q, k, v, mask)


# ----------------------------------------------------------------------------
# Sub-layer blocks
# ----------------------------------------------------------------------------

def attention_block(p, ln_g, ln_b, x_q, x_kv, mask, n_head, *, self_attn):
    B, Sq, D = x_q.shape
    Sk = x_kv.shape[1]
    xq2 = x_q.reshape(B * Sq, D)

    if self_attn:
        # fused Q/K/V projection: one matmul against [D, 3D]
        qkv = linear(xq2, p["wqkv"], p["bqkv"])
        q = qkv[:, :D].reshape(B, Sq, D)
        k = qkv[:, D:2 * D].reshape(B, Sk, D)
        v = qkv[:, 2 * D:].reshape(B, Sk, D)
    else:
        # cross-attention: Q from decoder stream, fused K/V from memory
        q = linear(xq2, p["wqkv"][:, :D], p["bqkv"][:D]).reshape(B, Sq, D)
        kv = linear(x_kv.reshape(B * Sk, D), p["wqkv"][:, D:], p["bqkv"][D:])
        k = kv[:, :D].reshape(B, Sk, D)
        v = kv[:, D:].reshape(B, Sk, D)

    attn = mha_attention(q, k, v, mask, n_head)               # [B, Sq, D]

    # output projection fused with residual-add + LayerNorm
    y = linear_add_ln(attn.reshape(B * Sq, D), p["wo"], p["bo"],
                      xq2, ln_g, ln_b)
    return y.reshape(B, Sq, D)


def encoder_layer(p, x, src_mask, n_head):
    x = attention_block(p["self_attn"], p["ln1_g"], p["ln1_b"],
                        x, x, src_mask, n_head, self_attn=True)
    x = ffn_add_ln(x, p["ffn"], p["ln2_g"], p["ln2_b"])
    return x


def decoder_layer(p, x, memory, tgt_mask, src_mask, n_head):
    x = attention_block(p["self_attn"], p["ln1_g"], p["ln1_b"],
                        x, x, tgt_mask, n_head, self_attn=True)
    x = attention_block(p["cross_attn"], p["ln2_g"], p["ln2_b"],
                        x, memory, src_mask, n_head, self_attn=False)
    x = ffn_add_ln(x, p["ffn"], p["ln3_g"], p["ln3_b"])
    return x


def positional_encoding(S, D):
    pos = jnp.arange(S, dtype=jnp.float32)[:, None]
    div = jnp.exp(jnp.arange(0, D, 2, dtype=jnp.float32)
                  * (-math.log(10000.0) / D))
    pe = jnp.zeros((S, D), jnp.float32)
    pe = pe.at[:, 0::2].set(jnp.sin(pos * div))
    pe = pe.at[:, 1::2].set(jnp.cos(pos * div))
    return pe


def transformer_forward(params, inputs, outputs, src_mask, tgt_mask, n_head):
    D = params["embedding"].shape[1]

    # Embeddings: lookup * sqrt(d_model)  (gather = JAX glue)
    emb_in = params["embedding"][inputs] * math.sqrt(D)       # [B, Ss, D]
    emb_out = params["embedding"][outputs] * math.sqrt(D)     # [B, St, D]

    # PositionalEncoding (dropout is identity in eval mode)
    emb_in = emb_in + positional_encoding(emb_in.shape[1], D)[None]
    emb_out = emb_out + positional_encoding(emb_out.shape[1], D)[None]

    x = emb_in
    for lp in params["enc_layers"]:
        x = encoder_layer(lp, x, src_mask, n_head)
    memory = x

    y = emb_out
    for lp in params["dec_layers"]:
        y = decoder_layer(lp, y, memory, tgt_mask, src_mask, n_head)

    B, St, _ = y.shape
    V = params["fc_w"].shape[1]
    logits = linear(y.reshape(B * St, D), params["fc_w"], params["fc_b"])
    return logits.reshape(B, St, V)


# ----------------------------------------------------------------------------
# Deterministic parameter init (xavier_uniform for dim>1 matrices, zeros bias,
# ones/zeros LayerNorm — mirrors _reset_parameters).  Matmul weights stored in
# bf16 (MXU operand dtype); biases / LN params / embedding stay f32.
# ----------------------------------------------------------------------------

def xavier(key, shape):
    fan_in, fan_out = shape[0], shape[1]
    lim = math.sqrt(6.0 / (fan_in + fan_out))
    return jax.random.uniform(key, shape, jnp.float32, -lim, lim)


def xavier_bf16(key, shape):
    return xavier(key, shape).astype(jnp.bfloat16)


def init_mha(key, d_model):
    ks = jax.random.split(key, 4)
    wq = xavier(ks[0], (d_model, d_model))
    wk = xavier(ks[1], (d_model, d_model))
    wv = xavier(ks[2], (d_model, d_model))
    return {
        "wqkv": jnp.concatenate([wq, wk, wv], axis=1).astype(jnp.bfloat16),
        "bqkv": jnp.zeros((3 * d_model,), jnp.float32),
        "wo": xavier_bf16(ks[3], (d_model, d_model)),
        "bo": jnp.zeros((d_model,), jnp.float32),
    }


def init_ffn(key, d_model, d_ff):
    k1, k2 = jax.random.split(key)
    return {
        "w1": xavier_bf16(k1, (d_model, d_ff)),
        "b1": jnp.zeros((d_ff,), jnp.float32),
        "w2": xavier_bf16(k2, (d_ff, d_model)),
        "b2": jnp.zeros((d_model,), jnp.float32),
    }


def init_enc_layer(key, d_model, d_ff):
    k1, k2 = jax.random.split(key)
    return {
        "self_attn": init_mha(k1, d_model),
        "ffn": init_ffn(k2, d_model, d_ff),
        "ln1_g": jnp.ones((d_model,)), "ln1_b": jnp.zeros((d_model,)),
        "ln2_g": jnp.ones((d_model,)), "ln2_b": jnp.zeros((d_model,)),
    }


def init_dec_layer(key, d_model, d_ff):
    k1, k2, k3 = jax.random.split(key, 3)
    return {
        "self_attn": init_mha(k1, d_model),
        "cross_attn": init_mha(k2, d_model),
        "ffn": init_ffn(k3, d_model, d_ff),
        "ln1_g": jnp.ones((d_model,)), "ln1_b": jnp.zeros((d_model,)),
        "ln2_g": jnp.ones((d_model,)), "ln2_b": jnp.zeros((d_model,)),
        "ln3_g": jnp.ones((d_model,)), "ln3_b": jnp.zeros((d_model,)),
    }


def init_params(key, vocab_size, d_model, d_ff, n_layers):
    keys = jax.random.split(key, 2 * n_layers + 2)
    return {
        "embedding": xavier(keys[0], (vocab_size, d_model)),
        "fc_w": xavier_bf16(keys[1], (d_model, vocab_size)),
        "fc_b": jnp.zeros((vocab_size,), jnp.float32),
        "enc_layers": [init_enc_layer(keys[2 + i], d_model, d_ff)
                       for i in range(n_layers)],
        "dec_layers": [init_dec_layer(keys[2 + n_layers + i], d_model, d_ff)
                       for i in range(n_layers)],
    }


# ----------------------------------------------------------------------------
# Main
# ----------------------------------------------------------------------------

if __name__ == "__main__":
    vocab_size, d_model, d_ff, n_head, n_layers = 50, 32, 64, 4, 2
    B, S_src, S_tgt = 2, 8, 8

    root = jax.random.PRNGKey(0)
    kp, ki, ko = jax.random.split(root, 3)

    params = init_params(kp, vocab_size, d_model, d_ff, n_layers)

    inputs = jax.random.randint(ki, (B, S_src), 0, vocab_size, jnp.int32)
    outputs = jax.random.randint(ko, (B, S_tgt), 0, vocab_size, jnp.int32)
    # compact masks (never broadcast to [B, Sq, Sk] in HBM)
    src_mask = jnp.ones((B, 1, S_src), jnp.float32)                    # pad mask
    tgt_mask = jnp.tril(jnp.ones((S_tgt, S_tgt), jnp.float32))[None]   # causal [1,S,S]

    fwd = jax.jit(functools.partial(transformer_forward, n_head=n_head))
    logits = fwd(params, inputs, outputs, src_mask, tgt_mask)
    jax.block_until_ready(logits)

    assert logits.shape == (B, S_tgt, vocab_size)
    assert bool(jnp.all(jnp.isfinite(logits)))
    print("KERNEL_OK")
</pallas_src>

<mosaic_0001>
module attributes {stable_mosaic.version = 11 : i64} {
  func.func @_linear_kernel(%arg0: i32, %arg1: i32, %arg2: i32, %arg3: memref<16x32xf32, #tpu.memory_space<vmem>>, %arg4: memref<32x96xbf16, #tpu.memory_space<vmem>>, %arg5: memref<1x96xf32, #tpu.memory_space<vmem>>, %arg6: memref<16x96xf32, #tpu.memory_space<vmem>>, %arg7: memref<16x96xf32, #tpu.memory_space<vmem>>) attributes {dimension_semantics = [#tpu.dimension_semantics<parallel>, #tpu.dimension_semantics<parallel>, #tpu.dimension_semantics<arbitrary>], iteration_bounds = array<i64: 1, 1, 1>, scalar_prefetch = 0 : i64, scratch_operands = 1 : i64, tpu.core_type = #tpu.core_type<tc>, window_params = [{transform_indices = @transform_0, window_bounds = array<i64: 16, 32>}, {transform_indices = @transform_1, window_bounds = array<i64: 32, 96>}, {transform_indices = @transform_2, window_bounds = array<i64: 1, 96>}, {transform_indices = @transform_3, window_bounds = array<i64: 16, 96>}]} {
    %c0_i32 = arith.constant 0 : i32
    %0 = arith.cmpi eq, %arg2, %c0_i32 : i32
    %1 = arith.extui %0 : i1 to i32
    %c0_i32_0 = arith.constant 0 : i32
    %2 = arith.cmpi ne, %1, %c0_i32_0 : i32
    scf.if %2 {
      %cst_10 = arith.constant 0.000000e+00 : f32
      %13 = vector.broadcast %cst_10 : f32 to vector<16x96xf32>
      %c0_11 = arith.constant 0 : index
      %c0_12 = arith.constant 0 : index
      %14 = vector.load %arg7[%c0_11, %c0_12] : memref<16x96xf32, #tpu.memory_space<vmem>>, vector<16x96xf32>
      tpu.vector_store %arg7[%c0_11, %c0_12], %13 {strides = array<i32>} : memref<16x96xf32, #tpu.memory_space<vmem>>, vector<16x96xf32>,
    } else {
    }
    %c0 = arith.constant 0 : index
    %c0_1 = arith.constant 0 : index
    %3 = vector.load %arg7[%c0, %c0_1] : memref<16x96xf32, #tpu.memory_space<vmem>>, vector<16x96xf32>
    %c0_2 = arith.constant 0 : index
    %c0_3 = arith.constant 0 : index
    %4 = vector.load %arg3[%c0_2, %c0_3] : memref<16x32xf32, #tpu.memory_space<vmem>>, vector<16x32xf32>
    %5 = arith.truncf %4 : vector<16x32xf32> to vector<16x32xbf16>
    %c0_4 = arith.constant 0 : index
    %c0_5 = arith.constant 0 : index
    %6 = vector.load %arg4[%c0_4, %c0_5] : memref<32x96xbf16, #tpu.memory_space<vmem>>, vector<32x96xbf16>
    %cst = arith.constant dense<0.000000e+00> : vector<16x96xf32>
    %7 = tpu.matmul %5, %6, %cst {dimension_numbers = #tpu.dot_dimension_numbers<[1], [0], [0], [1], [0, 0, 1, 1], [], []>} : vector<16x32xbf16>, vector<32x96xbf16>, vector<16x96xf32> -> vector<16x96xf32>
    %8 = arith.addf %3, %7 : vector<16x96xf32>
    %c0_6 = arith.constant 0 : index
    %c0_7 = arith.constant 0 : index
    %9 = vector.load %arg7[%c0_6, %c0_7] : memref<16x96xf32, #tpu.memory_space<vmem>>, vector<16x96xf32>
    tpu.vector_store %arg7[%c0_6, %c0_7], %8 {strides = array<i32>} : memref<16x96xf32, #tpu.memory_space<vmem>>, vector<16x96xf32>,
    %c0_i32_8 = arith.constant 0 : i32
    %10 = arith.cmpi eq, %arg2, %c0_i32_8 : i32
    %11 = arith.extui %10 : i1 to i32
    %c0_i32_9 = arith.constant 0 : i32
    %12 = arith.cmpi ne, %11, %c0_i32_9 : i32
    scf.if %12 {
      %c0_10 = arith.constant 0 : index
      %c0_11 = arith.constant 0 : index
      %13 = vector.load %arg7[%c0_10, %c0_11] : memref<16x96xf32, #tpu.memory_space<vmem>>, vector<16x96xf32>
      %c0_12 = arith.constant 0 : index
      %c0_13 = arith.constant 0 : index
      %14 = vector.load %arg5[%c0_12, %c0_13] : memref<1x96xf32, #tpu.memory_space<vmem>>, vector<1x96xf32>
      %15 = vector.broadcast %14 : vector<1x96xf32> to vector<16x96xf32>
      %16 = arith.addf %13, %15 : vector<16x96xf32>
      %c0_14 = arith.constant 0 : index
      %c0_15 = arith.constant 0 : index
      %17 = vector.load %arg6[%c0_14, %c0_15] : memref<16x96xf32, #tpu.memory_space<vmem>>, vector<16x96xf32>
      tpu.vector_store %arg6[%c0_14, %c0_15], %16 {strides = array<i32>} : memref<16x96xf32, #tpu.memory_space<vmem>>, vector<16x96xf32>,
    } else {
    }
    return
  }
  func.func @transform_0(%arg0: i32, %arg1: i32, %arg2: i32) -> (i32, i32) {
    %c0_i32 = arith.constant 0 : i32
    return %arg0, %arg2 : i32, i32
  }
  func.func @transform_1(%arg0: i32, %arg1: i32, %arg2: i32) -> (i32, i32) {
    %c0_i32 = arith.constant 0 : i32
    return %arg2, %arg1 : i32, i32
  }
  func.func @transform_2(%arg0: i32, %arg1: i32, %arg2: i32) -> (i32, i32) {
    %c0_i32 = arith.constant 0 : i32
    %c0_i32_0 = arith.constant 0 : i32
    return %c0_i32, %arg1 : i32, i32
  }
  func.func @transform_3(%arg0: i32, %arg1: i32, %arg2: i32) -> (i32, i32) {
    %c0_i32 = arith.constant 0 : i32
    return %arg0, %arg1 : i32, i32
  }
}

module attributes {stable_mosaic.version = 11 : i64} {
  func.func @_linear_add_ln_kernel(%arg0: i32, %arg1: i32, %arg2: memref<16x32xf32, #tpu.memory_space<vmem>>, %arg3: memref<32x32xbf16, #tpu.memory_space<vmem>>, %arg4: memref<1x32xf32, #tpu.memory_space<vmem>>, %arg5: memref<16x32xf32, #tpu.memory_space<vmem>>, %arg6: memref<1x32xf32, #tpu.memory_space<vmem>>, %arg7: memref<1x32xf32, #tpu.memory_space<vmem>>, %arg8: memref<16x32xf32, #tpu.memory_space<vmem>>, %arg9: memref<16x32xf32, #tpu.memory_space<vmem>>) attributes {dimension_semantics = [#tpu.dimension_semantics<parallel>, #tpu.dimension_semantics<arbitrary>], iteration_bounds = array<i64: 1, 1>, scalar_prefetch = 0 : i64, scratch_operands = 1 : i64, tpu.core_type = #tpu.core_type<tc>, window_params = [{transform_indices = @transform_0, window_bounds = array<i64: 16, 32>}, {transform_indices = @transform_1, window_bounds = array<i64: 32, 32>}, {pipeline_mode = #tpu.pipeline_mode<synchronous>, transform_indices = @transform_2, window_bounds = array<i64: 1, 32>}, {transform_indices = @transform_3, window_bounds = array<i64: 16, 32>}, {pipeline_mode = #tpu.pipeline_mode<synchronous>, transform_indices = @transform_4, window_bounds = array<i64: 1, 32>}, {pipeline_mode = #tpu.pipeline_mode<synchronous>, transform_indices = @transform_5, window_bounds = array<i64: 1, 32>}, {transform_indices = @transform_6, window_bounds = array<i64: 16, 32>}]} {
    %c0_i32 = arith.constant 0 : i32
    %0 = arith.cmpi eq, %arg1, %c0_i32 : i32
    %1 = arith.extui %0 : i1 to i32
    %c0_i32_0 = arith.constant 0 : i32
    %2 = arith.cmpi ne, %1, %c0_i32_0 : i32
    scf.if %2 {
      %cst_10 = arith.constant 0.000000e+00 : f32
      %13 = vector.broadcast %cst_10 : f32 to vector<16x32xf32>
      %c0_11 = arith.constant 0 : index
      %c0_12 = arith.constant 0 : index
      %14 = vector.load %arg9[%c0_11, %c0_12] : memref<16x32xf32, #tpu.memory_space<vmem>>, vector<16x32xf32>
      tpu.vector_store %arg9[%c0_11, %c0_12], %13 {strides = array<i32>} : memref<16x32xf32, #tpu.memory_space<vmem>>, vector<16x32xf32>,
    } else {
    }
    %c0 = arith.constant 0 : index
    %c0_1 = arith.constant 0 : index
    %3 = vector.load %arg9[%c0, %c0_1] : memref<16x32xf32, #tpu.memory_space<vmem>>, vector<16x32xf32>
    %c0_2 = arith.constant 0 : index
    %c0_3 = arith.constant 0 : index
    %4 = vector.load %arg2[%c0_2, %c0_3] : memref<16x32xf32, #tpu.memory_space<vmem>>, vector<16x32xf32>
    %5 = arith.truncf %4 : vector<16x32xf32> to vector<16x32xbf16>
    %c0_4 = arith.constant 0 : index
    %c0_5 = arith.constant 0 : index
    %6 = vector.load %arg3[%c0_4, %c0_5] : memref<32x32xbf16, #tpu.memory_space<vmem>>, vector<32x32xbf16>
    %cst = arith.constant dense<0.000000e+00> : vector<16x32xf32>
    %7 = tpu.matmul %5, %6, %cst {dimension_numbers = #tpu.dot_dimension_numbers<[1], [0], [0], [1], [0, 0, 1, 1], [], []>} : vector<16x32xbf16>, vector<32x32xbf16>, vector<16x32xf32> -> vector<16x32xf32>
    %8 = arith.addf %3, %7 : vector<16x32xf32>
    %c0_6 = arith.constant 0 : index
    %c0_7 = arith.constant 0 : index
    %9 = vector.load %arg9[%c0_6, %c0_7] : memref<16x32xf32, #tpu.memory_space<vmem>>, vector<16x32xf32>
    tpu.vector_store %arg9[%c0_6, %c0_7], %8 {strides = array<i32>} : memref<16x32xf32, #tpu.memory_space<vmem>>, vector<16x32xf32>,
    %c0_i32_8 = arith.constant 0 : i32
    %10 = arith.cmpi eq, %arg1, %c0_i32_8 : i32
    %11 = arith.extui %10 : i1 to i32
    %c0_i32_9 = arith.constant 0 : i32
    %12 = arith.cmpi ne, %11, %c0_i32_9 : i32
    scf.if %12 {
      %c0_10 = arith.constant 0 : index
      %c0_11 = arith.constant 0 : index
      %13 = vector.load %arg9[%c0_10, %c0_11] : memref<16x32xf32, #tpu.memory_space<vmem>>, vector<16x32xf32>
      %c0_12 = arith.constant 0 : index
      %c0_13 = arith.constant 0 : index
      %14 = vector.load %arg4[%c0_12, %c0_13] : memref<1x32xf32, #tpu.memory_space<vmem>>, vector<1x32xf32>
      %15 = vector.broadcast %14 : vector<1x32xf32> to vector<16x32xf32>
      %16 = arith.addf %13, %15 : vector<16x32xf32>
      %c0_14 = arith.constant 0 : index
      %c0_15 = arith.constant 0 : index
      %17 = vector.load %arg5[%c0_14, %c0_15] : memref<16x32xf32, #tpu.memory_space<vmem>>, vector<16x32xf32>
      %18 = arith.addf %16, %17 : vector<16x32xf32>
      %cst_16 = arith.constant dense<0.000000e+00> : vector<16xf32>
      %19 = vector.multi_reduction <add>, %18, %cst_16 [1] : vector<16x32xf32> to vector<16xf32>
      %20 = vector.shape_cast %19 : vector<16xf32> to vector<16x1xf32>
      %cst_17 = arith.constant 3.200000e+01 : f32
      %21 = vector.broadcast %cst_17 : f32 to vector<16x1xf32>
      %22 = arith.divf %20, %21 : vector<16x1xf32>
      %23 = vector.broadcast %22 : vector<16x1xf32> to vector<16x32xf32>
      %24 = arith.subf %18, %23 : vector<16x32xf32>
      %25 = arith.mulf %24, %24 : vector<16x32xf32>
      %cst_18 = arith.constant dense<0.000000e+00> : vector<16xf32>
      %26 = vector.multi_reduction <add>, %25, %cst_18 [1] : vector<16x32xf32> to vector<16xf32>
      %27 = vector.shape_cast %26 : vector<16xf32> to vector<16x1xf32>
      %cst_19 = arith.constant 3.200000e+01 : f32
      %28 = vector.broadcast %cst_19 : f32 to vector<16x1xf32>
      %29 = arith.divf %27, %28 : vector<16x1xf32>
      %cst_20 = arith.constant 9.99999974E-6 : f32
      %30 = vector.broadcast %cst_20 : f32 to vector<16x1xf32>
      %31 = arith.addf %29, %30 : vector<16x1xf32>
      %32 = math.rsqrt %31 : vector<16x1xf32>
      %33 = vector.broadcast %32 : vector<16x1xf32> to vector<16x32xf32>
      %34 = arith.mulf %24, %33 : vector<16x32xf32>
      %c0_21 = arith.constant 0 : index
      %c0_22 = arith.constant 0 : index
      %35 = vector.load %arg6[%c0_21, %c0_22] : memref<1x32xf32, #tpu.memory_space<vmem>>, vector<1x32xf32>
      %36 = vector.broadcast %35 : vector<1x32xf32> to vector<16x32xf32>
      %37 = arith.mulf %34, %36 : vector<16x32xf32>
      %c0_23 = arith.constant 0 : index
      %c0_24 = arith.constant 0 : index
      %38 = vector.load %arg7[%c0_23, %c0_24] : memref<1x32xf32, #tpu.memory_space<vmem>>, vector<1x32xf32>
      %39 = vector.broadcast %38 : vector<1x32xf32> to vector<16x32xf32>
      %40 = arith.addf %37, %39 : vector<16x32xf32>
      %c0_25 = arith.constant 0 : index
      %c0_26 = arith.constant 0 : index
      %41 = vector.load %arg8[%c0_25, %c0_26] : memref<16x32xf32, #tpu.memory_space<vmem>>, vector<16x32xf32>
      tpu.vector_store %arg8[%c0_25, %c0_26], %40 {strides = array<i32>} : memref<16x32xf32, #tpu.memory_space<vmem>>, vector<16x32xf32>,
    } else {
    }
    return
  }
  func.func @transform_0(%arg0: i32, %arg1: i32) -> (i32, i32) {
    %c0_i32 = arith.constant 0 : i32
    return %arg0, %arg1 : i32, i32
  }
  func.func @transform_1(%arg0: i32, %arg1: i32) -> (i32, i32) {
    %c0_i32 = arith.constant 0 : i32
    %c0_i32_0 = arith.constant 0 : i32
    return %arg1, %c0_i32 : i32, i32
  }
  func.func @transform_2(%arg0: i32, %arg1: i32) -> (i32, i32) {
    %c0_i32 = arith.constant 0 : i32
    %c0_i32_0 = arith.constant 0 : i32
    %c0_i32_1 = arith.constant 0 : i32
    return %c0_i32, %c0_i32_0 : i32, i32
  }
  func.func @transform_3(%arg0: i32, %arg1: i32) -> (i32, i32) {
    %c0_i32 = arith.constant 0 : i32
    %c0_i32_0 = arith.constant 0 : i32
    return %arg0, %c0_i32 : i32, i32
  }
  func.func @transform_4(%arg0: i32, %arg1: i32) -> (i32, i32) {
    %c0_i32 = arith.constant 0 : i32
    %c0_i32_0 = arith.constant 0 : i32
    %c0_i32_1 = arith.constant 0 : i32
    return %c0_i32, %c0_i32_0 : i32, i32
  }
  func.func @transform_5(%arg0: i32, %arg1: i32) -> (i32, i32) {
    %c0_i32 = arith.constant 0 : i32
    %c0_i32_0 = arith.constant 0 : i32
    %c0_i32_1 = arith.constant 0 : i32
    return %c0_i32, %c0_i32_0 : i32, i32
  }
  func.func @transform_6(%arg0: i32, %arg1: i32) -> (i32, i32) {
    %c0_i32 = arith.constant 0 : i32
    %c0_i32_0 = arith.constant 0 : i32
    return %arg0, %c0_i32 : i32, i32
  }
}

module attributes {stable_mosaic.version = 11 : i64} {
  func.func @_mha_flash_kernel(%arg0: i32, %arg1: i32, %arg2: i32, %arg3: memref<1x8x32xf32, #tpu.memory_space<vmem>>, %arg4: memref<1x8x32xf32, #tpu.memory_space<vmem>>, %arg5: memref<1x8x32xf32, #tpu.memory_space<vmem>>, %arg6: memref<1x1x8xf32, #tpu.memory_space<vmem>>, %arg7: memref<1x8x32xf32, #tpu.memory_space<vmem>>, %arg8: memref<4x8x1xf32, #tpu.memory_space<vmem>>, %arg9: memref<4x8x1xf32, #tpu.memory_space<vmem>>, %arg10: memref<8x32xf32, #tpu.memory_space<vmem>>) attributes {dimension_semantics = [#tpu.dimension_semantics<parallel>, #tpu.dimension_semantics<parallel>, #tpu.dimension_semantics<arbitrary>], iteration_bounds = array<i64: 2, 1, 1>, scalar_prefetch = 0 : i64, scratch_operands = 3 : i64, tpu.core_type = #tpu.core_type<tc>, window_params = [{transform_indices = @transform_0, window_bounds = array<i64: 1, 8, 32>}, {transform_indices = @transform_1, window_bounds = array<i64: 1, 8, 32>}, {transform_indices = @transform_2, window_bounds = array<i64: 1, 8, 32>}, {transform_indices = @transform_3, window_bounds = array<i64: 1, 1, 8>}, {transform_indices = @transform_4, window_bounds = array<i64: 1, 8, 32>}]} {
    %c0_i32 = arith.constant 0 : i32
    %0 = arith.cmpi eq, %arg2, %c0_i32 : i32
    %1 = arith.extui %0 : i1 to i32
    %c0_i32_0 = arith.constant 0 : i32
    %2 = arith.cmpi ne, %1, %c0_i32_0 : i32
    scf.if %2 {
      %cst_91 = arith.constant 0xFF800000 : f32
      %164 = vector.broadcast %cst_91 : f32 to vector<4x8x1xf32>
      %c0_92 = arith.constant 0 : index
      %c0_93 = arith.constant 0 : index
      %c0_94 = arith.constant 0 : index
      %165 = vector.load %arg8[%c0_92, %c0_93, %c0_94] : memref<4x8x1xf32, #tpu.memory_space<vmem>>, vector<4x8x1xf32>
      tpu.vector_store %arg8[%c0_92, %c0_93, %c0_94], %164 {strides = array<i32>} : memref<4x8x1xf32, #tpu.memory_space<vmem>>, vector<4x8x1xf32>,
      %cst_95 = arith.constant 0.000000e+00 : f32
      %166 = vector.broadcast %cst_95 : f32 to vector<4x8x1xf32>
      %c0_96 = arith.constant 0 : index
      %c0_97 = arith.constant 0 : index
      %c0_98 = arith.constant 0 : index
      %167 = vector.load %arg9[%c0_96, %c0_97, %c0_98] : memref<4x8x1xf32, #tpu.memory_space<vmem>>, vector<4x8x1xf32>
      tpu.vector_store %arg9[%c0_96, %c0_97, %c0_98], %166 {strides = array<i32>} : memref<4x8x1xf32, #tpu.memory_space<vmem>>, vector<4x8x1xf32>,
      %cst_99 = arith.constant 0.000000e+00 : f32
      %168 = vector.broadcast %cst_99 : f32 to vector<8x32xf32>
      %c0_100 = arith.constant 0 : index
      %c0_101 = arith.constant 0 : index
      %169 = vector.load %arg10[%c0_100, %c0_101] : memref<8x32xf32, #tpu.memory_space<vmem>>, vector<8x32xf32>
      tpu.vector_store %arg10[%c0_100, %c0_101], %168 {strides = array<i32>} : memref<8x32xf32, #tpu.memory_space<vmem>>, vector<8x32xf32>,
    } else {
    }
    %c0 = arith.constant 0 : index
    %c0_1 = arith.constant 0 : index
    %c0_2 = arith.constant 0 : index
    %3 = vector.load %arg3[%c0, %c0_1, %c0_2] : memref<1x8x32xf32, #tpu.memory_space<vmem>>, vector<1x8x32xf32>
    %4 = vector.shape_cast %3 : vector<1x8x32xf32> to vector<8x32xf32>
    %c0_3 = arith.constant 0 : index
    %c0_4 = arith.constant 0 : index
    %c0_5 = arith.constant 0 : index
    %5 = vector.load %arg4[%c0_3, %c0_4, %c0_5] : memref<1x8x32xf32, #tpu.memory_space<vmem>>, vector<1x8x32xf32>
    %6 = vector.shape_cast %5 : vector<1x8x32xf32> to vector<8x32xf32>
    %c0_6 = arith.constant 0 : index
    %c0_7 = arith.constant 0 : index
    %c0_8 = arith.constant 0 : index
    %7 = vector.load %arg5[%c0_6, %c0_7, %c0_8] : memref<1x8x32xf32, #tpu.memory_space<vmem>>, vector<1x8x32xf32>
    %8 = vector.shape_cast %7 : vector<1x8x32xf32> to vector<8x32xf32>
    %c0_9 = arith.constant 0 : index
    %c0_10 = arith.constant 0 : index
    %c0_11 = arith.constant 0 : index
    %9 = vector.load %arg6[%c0_9, %c0_10, %c0_11] : memref<1x1x8xf32, #tpu.memory_space<vmem>>, vector<1x1x8xf32>
    %10 = vector.shape_cast %9 : vector<1x1x8xf32> to vector<1x8xf32>
    %cst = arith.constant 0.000000e+00 : f32
    %11 = vector.broadcast %cst : f32 to vector<1x8xf32>
    %12 = arith.cmpf oeq, %10, %11 : vector<1x8xf32>
    %cst_12 = arith.constant -1.000000e+09 : f32
    %cst_13 = arith.constant 0.000000e+00 : f32
    %13 = vector.broadcast %cst_12 : f32 to vector<1x8xf32>
    %14 = vector.broadcast %cst_13 : f32 to vector<1x8xf32>
    %15 = arith.select %12, %13, %14 : vector<1x8xi1>, vector<1x8xf32>
    %cst_14 = arith.constant 0.353553385 : f32
    %16 = vector.broadcast %cst_14 : f32 to vector<8x32xf32>
    %17 = arith.mulf %4, %16 : vector<8x32xf32>
    %18 = arith.truncf %17 : vector<8x32xf32> to vector<8x32xbf16>
    %19 = arith.truncf %6 : vector<8x32xf32> to vector<8x32xbf16>
    %20 = arith.truncf %8 : vector<8x32xf32> to vector<8x32xbf16>
    %21 = vector.extract_strided_slice %18 {offsets = [0, 0], sizes = [8, 8], strides = [1, 1]} : vector<8x32xbf16> to vector<8x8xbf16>
    %22 = vector.extract_strided_slice %19 {offsets = [0, 0], sizes = [8, 8], strides = [1, 1]} : vector<8x32xbf16> to vector<8x8xbf16>
    %cst_15 = arith.constant dense<0.000000e+00> : vector<8x8xf32>
    %23 = tpu.matmul %21, %22, %cst_15 {dimension_numbers = #tpu.dot_dimension_numbers<[1], [1], [0], [0], [0, 0, 1, 0], [], []>} : vector<8x8xbf16>, vector<8x8xbf16>, vector<8x8xf32> -> vector<8x8xf32>
    %24 = vector.broadcast %15 : vector<1x8xf32> to vector<8x8xf32>
    %25 = arith.addf %23, %24 : vector<8x8xf32>
    %c0_16 = arith.constant 0 : index
    %c0_17 = arith.constant 0 : index
    %c0_18 = arith.constant 0 : index
    %26 = vector.load %arg8[%c0_16, %c0_17, %c0_18] : memref<4x8x1xf32, #tpu.memory_space<vmem>>, vector<1x8x1xf32>
    %27 = vector.shape_cast %26 : vector<1x8x1xf32> to vector<8x1xf32>
    %cst_19 = arith.constant dense<0xFF800000> : vector<8xf32>
    %28 = vector.multi_reduction <maximumf>, %25, %cst_19 [1] : vector<8x8xf32> to vector<8xf32>
    %29 = vector.shape_cast %28 : vector<8xf32> to vector<8x1xf32>
    %30 = arith.maximumf %27, %29 : vector<8x1xf32>
    %31 = arith.subf %27, %30 : vector<8x1xf32>
    %32 = math.exp %31 : vector<8x1xf32>
    %33 = vector.broadcast %30 : vector<8x1xf32> to vector<8x8xf32>
    %34 = arith.subf %25, %33 : vector<8x8xf32>
    %35 = math.exp %34 : vector<8x8xf32>
    %c0_20 = arith.constant 0 : index
    %c0_21 = arith.constant 0 : index
    %c0_22 = arith.constant 0 : index
    %36 = vector.load %arg9[%c0_20, %c0_21, %c0_22] : memref<4x8x1xf32, #tpu.memory_space<vmem>>, vector<1x8x1xf32>
    %37 = vector.shape_cast %36 : vector<1x8x1xf32> to vector<8x1xf32>
    %38 = arith.mulf %32, %37 : vector<8x1xf32>
    %cst_23 = arith.constant dense<0.000000e+00> : vector<8xf32>
    %39 = vector.multi_reduction <add>, %35, %cst_23 [1] : vector<8x8xf32> to vector<8xf32>
    %40 = vector.shape_cast %39 : vector<8xf32> to vector<8x1xf32>
    %41 = arith.addf %38, %40 : vector<8x1xf32>
    %c0_24 = arith.constant 0 : index
    %c0_25 = arith.constant 0 : index
    %c0_26 = arith.constant 0 : index
    %42 = vector.load %arg9[%c0_24, %c0_25, %c0_26] : memref<4x8x1xf32, #tpu.memory_space<vmem>>, vector<1x8x1xf32>
    %43 = vector.shape_cast %42 : vector<1x8x1xf32> to vector<8x1xf32>
    %44 = vector.shape_cast %41 : vector<8x1xf32> to vector<1x8x1xf32>
    tpu.vector_store %arg9[%c0_24, %c0_25, %c0_26], %44 {strides = array<i32>} : memref<4x8x1xf32, #tpu.memory_space<vmem>>, vector<1x8x1xf32>,
    %45 = arith.truncf %35 : vector<8x8xf32> to vector<8x8xbf16>
    %46 = vector.extract_strided_slice %20 {offsets = [0, 0], sizes = [8, 8], strides = [1, 1]} : vector<8x32xbf16> to vector<8x8xbf16>
    %cst_27 = arith.constant dense<0.000000e+00> : vector<8x8xf32>
    %47 = tpu.matmul %45, %46, %cst_27 {dimension_numbers = #tpu.dot_dimension_numbers<[1], [0], [0], [1], [0, 0, 1, 1], [], []>} : vector<8x8xbf16>, vector<8x8xbf16>, vector<8x8xf32> -> vector<8x8xf32>
    %c0_28 = arith.constant 0 : index
    %c0_29 = arith.constant 0 : index
    %48 = vector.load %arg10[%c0_28, %c0_29] : memref<8x32xf32, #tpu.memory_space<vmem>>, vector<8x8xf32>
    %49 = vector.broadcast %32 : vector<8x1xf32> to vector<8x8xf32>
    %50 = arith.mulf %49, %48 : vector<8x8xf32>
    %51 = arith.addf %50, %47 : vector<8x8xf32>
    %c0_30 = arith.constant 0 : index
    %c0_31 = arith.constant 0 : index
    %52 = vector.load %arg10[%c0_30, %c0_31] : memref<8x32xf32, #tpu.memory_space<vmem>>, vector<8x8xf32>
    tpu.vector_store %arg10[%c0_30, %c0_31], %51 {strides = array<i32>} : memref<8x32xf32, #tpu.memory_space<vmem>>, vector<8x8xf32>,
    %c0_32 = arith.constant 0 : index
    %c0_33 = arith.constant 0 : index
    %c0_34 = arith.constant 0 : index
    %53 = vector.load %arg8[%c0_32, %c0_33, %c0_34] : memref<4x8x1xf32, #tpu.memory_space<vmem>>, vector<1x8x1xf32>
    %54 = vector.shape_cast %53 : vector<1x8x1xf32> to vector<8x1xf32>
    %55 = vector.shape_cast %30 : vector<8x1xf32> to vector<1x8x1xf32>
    tpu.vector_store %arg8[%c0_32, %c0_33, %c0_34], %55 {strides = array<i32>} : memref<4x8x1xf32, #tpu.memory_space<vmem>>, vector<1x8x1xf32>,
    %56 = vector.extract_strided_slice %18 {offsets = [0, 8], sizes = [8, 8], strides = [1, 1]} : vector<8x32xbf16> to vector<8x8xbf16>
    %57 = vector.extract_strided_slice %19 {offsets = [0, 8], sizes = [8, 8], strides = [1, 1]} : vector<8x32xbf16> to vector<8x8xbf16>
    %cst_35 = arith.constant dense<0.000000e+00> : vector<8x8xf32>
    %58 = tpu.matmul %56, %57, %cst_35 {dimension_numbers = #tpu.dot_dimension_numbers<[1], [1], [0], [0], [0, 0, 1, 0], [], []>} : vector<8x8xbf16>, vector<8x8xbf16>, vector<8x8xf32> -> vector<8x8xf32>
    %59 = vector.broadcast %15 : vector<1x8xf32> to vector<8x8xf32>
    %60 = arith.addf %58, %59 : vector<8x8xf32>
    %c1 = arith.constant 1 : index
    %c0_36 = arith.constant 0 : index
    %c0_37 = arith.constant 0 : index
    %61 = vector.load %arg8[%c1, %c0_36, %c0_37] : memref<4x8x1xf32, #tpu.memory_space<vmem>>, vector<1x8x1xf32>
    %62 = vector.shape_cast %61 : vector<1x8x1xf32> to vector<8x1xf32>
    %cst_38 = arith.constant dense<0xFF800000> : vector<8xf32>
    %63 = vector.multi_reduction <maximumf>, %60, %cst_38 [1] : vector<8x8xf32> to vector<8xf32>
    %64 = vector.shape_cast %63 : vector<8xf32> to vector<8x1xf32>
    %65 = arith.maximumf %62, %64 : vector<8x1xf32>
    %66 = arith.subf %62, %65 : vector<8x1xf32>
    %67 = math.exp %66 : vector<8x1xf32>
    %68 = vector.broadcast %65 : vector<8x1xf32> to vector<8x8xf32>
    %69 = arith.subf %60, %68 : vector<8x8xf32>
    %70 = math.exp %69 : vector<8x8xf32>
    %c1_39 = arith.constant 1 : index
    %c0_40 = arith.constant 0 : index
    %c0_41 = arith.constant 0 : index
    %71 = vector.load %arg9[%c1_39, %c0_40, %c0_41] : memref<4x8x1xf32, #tpu.memory_space<vmem>>, vector<1x8x1xf32>
    %72 = vector.shape_cast %71 : vector<1x8x1xf32> to vector<8x1xf32>
    %73 = arith.mulf %67, %72 : vector<8x1xf32>
    %cst_42 = arith.constant dense<0.000000e+00> : vector<8xf32>
    %74 = vector.multi_reduction <add>, %70, %cst_42 [1] : vector<8x8xf32> to vector<8xf32>
    %75 = vector.shape_cast %74 : vector<8xf32> to vector<8x1xf32>
    %76 = arith.addf %73, %75 : vector<8x1xf32>
    %c1_43 = arith.constant 1 : index
    %c0_44 = arith.constant 0 : index
    %c0_45 = arith.constant 0 : index
    %77 = vector.load %arg9[%c1_43, %c0_44, %c0_45] : memref<4x8x1xf32, #tpu.memory_space<vmem>>, vector<1x8x1xf32>
    %78 = vector.shape_cast %77 : vector<1x8x1xf32> to vector<8x1xf32>
    %79 = vector.shape_cast %76 : vector<8x1xf32> to vector<1x8x1xf32>
    tpu.vector_store %arg9[%c1_43, %c0_44, %c0_45], %79 {strides = array<i32>} : memref<4x8x1xf32, #tpu.memory_space<vmem>>, vector<1x8x1xf32>,
    %80 = arith.truncf %70 : vector<8x8xf32> to vector<8x8xbf16>
    %81 = vector.extract_strided_slice %20 {offsets = [0, 8], sizes = [8, 8], strides = [1, 1]} : vector<8x32xbf16> to vector<8x8xbf16>
    %cst_46 = arith.constant dense<0.000000e+00> : vector<8x8xf32>
    %82 = tpu.matmul %80, %81, %cst_46 {dimension_numbers = #tpu.dot_dimension_numbers<[1], [0], [0], [1], [0, 0, 1, 1], [], []>} : vector<8x8xbf16>, vector<8x8xbf16>, vector<8x8xf32> -> vector<8x8xf32>
    %c0_47 = arith.constant 0 : index
    %c8 = arith.constant 8 : index
    %83 = vector.load %arg10[%c0_47, %c8] : memref<8x32xf32, #tpu.memory_space<vmem>>, vector<8x8xf32>
    %84 = vector.broadcast %67 : vector<8x1xf32> to vector<8x8xf32>
    %85 = arith.mulf %84, %83 : vector<8x8xf32>
    %86 = arith.addf %85, %82 : vector<8x8xf32>
    %c0_48 = arith.constant 0 : index
    %c8_49 = arith.constant 8 : index
    %87 = vector.load %arg10[%c0_48, %c8_49] : memref<8x32xf32, #tpu.memory_space<vmem>>, vector<8x8xf32>
    tpu.vector_store %arg10[%c0_48, %c8_49], %86 {strides = array<i32>} : memref<8x32xf32, #tpu.memory_space<vmem>>, vector<8x8xf32>,
    %c1_50 = arith.constant 1 : index
    %c0_51 = arith.constant 0 : index
    %c0_52 = arith.constant 0 : index
    %88 = vector.load %arg8[%c1_50, %c0_51, %c0_52] : memref<4x8x1xf32, #tpu.memory_space<vmem>>, vector<1x8x1xf32>
    %89 = vector.shape_cast %88 : vector<1x8x1xf32> to vector<8x1xf32>
    %90 = vector.shape_cast %65 : vector<8x1xf32> to vector<1x8x1xf32>
    tpu.vector_store %arg8[%c1_50, %c0_51, %c0_52], %90 {strides = array<i32>} : memref<4x8x1xf32, #tpu.memory_space<vmem>>, vector<1x8x1xf32>,
    %91 = vector.extract_strided_slice %18 {offsets = [0, 16], sizes = [8, 8], strides = [1, 1]} : vector<8x32xbf16> to vector<8x8xbf16>
    %92 = vector.extract_strided_slice %19 {offsets = [0, 16], sizes = [8, 8], strides = [1, 1]} : vector<8x32xbf16> to vector<8x8xbf16>
    %cst_53 = arith.constant dense<0.000000e+00> : vector<8x8xf32>
    %93 = tpu.matmul %91, %92, %cst_53 {dimension_numbers = #tpu.dot_dimension_numbers<[1], [1], [0], [0], [0, 0, 1, 0], [], []>} : vector<8x8xbf16>, vector<8x8xbf16>, vector<8x8xf32> -> vector<8x8xf32>
    %94 = vector.broadcast %15 : vector<1x8xf32> to vector<8x8xf32>
    %95 = arith.addf %93, %94 : vector<8x8xf32>
    %c2 = arith.constant 2 : index
    %c0_54 = arith.constant 0 : index
    %c0_55 = arith.constant 0 : index
    %96 = vector.load %arg8[%c2, %c0_54, %c0_55] : memref<4x8x1xf32, #tpu.memory_space<vmem>>, vector<1x8x1xf32>
    %97 = vector.shape_cast %96 : vector<1x8x1xf32> to vector<8x1xf32>
    %cst_56 = arith.constant dense<0xFF800000> : vector<8xf32>
    %98 = vector.multi_reduction <maximumf>, %95, %cst_56 [1] : vector<8x8xf32> to vector<8xf32>
    %99 = vector.shape_cast %98 : vector<8xf32> to vector<8x1xf32>
    %100 = arith.maximumf %97, %99 : vector<8x1xf32>
    %101 = arith.subf %97, %100 : vector<8x1xf32>
    %102 = math.exp %101 : vector<8x1xf32>
    %103 = vector.broadcast %100 : vector<8x1xf32> to vector<8x8xf32>
    %104 = arith.subf %95, %103 : vector<8x8xf32>
    %105 = math.exp %104 : vector<8x8xf32>
    %c2_57 = arith.constant 2 : index
    %c0_58 = arith.constant 0 : index
    %c0_59 = arith.constant 0 : index
    %106 = vector.load %arg9[%c2_57, %c0_58, %c0_59] : memref<4x8x1xf32, #tpu.memory_space<vmem>>, vector<1x8x1xf32>
    %107 = vector.shape_cast %106 : vector<1x8x1xf32> to vector<8x1xf32>
    %108 = arith.mulf %102, %107 : vector<8x1xf32>
    %cst_60 = arith.constant dense<0.000000e+00> : vector<8xf32>
    %109 = vector.multi_reduction <add>, %105, %cst_60 [1] : vector<8x8xf32> to vector<8xf32>
    %110 = vector.shape_cast %109 : vector<8xf32> to vector<8x1xf32>
    %111 = arith.addf %108, %110 : vector<8x1xf32>
    %c2_61 = arith.constant 2 : index
    %c0_62 = arith.constant 0 : index
    %c0_63 = arith.constant 0 : index
    %112 = vector.load %arg9[%c2_61, %c0_62, %c0_63] : memref<4x8x1xf32, #tpu.memory_space<vmem>>, vector<1x8x1xf32>
    %113 = vector.shape_cast %112 : vector<1x8x1xf32> to vector<8x1xf32>
    %114 = vector.shape_cast %111 : vector<8x1xf32> to vector<1x8x1xf32>
    tpu.vector_store %arg9[%c2_61, %c0_62, %c0_63], %114 {strides = array<i32>} : memref<4x8x1xf32, #tpu.memory_space<vmem>>, vector<1x8x1xf32>,
    %115 = arith.truncf %105 : vector<8x8xf32> to vector<8x8xbf16>
    %116 = vector.extract_strided_slice %20 {offsets = [0, 16], sizes = [8, 8], strides = [1, 1]} : vector<8x32xbf16> to vector<8x8xbf16>
    %cst_64 = arith.constant dense<0.000000e+00> : vector<8x8xf32>
    %117 = tpu.matmul %115, %116, %cst_64 {dimension_numbers = #tpu.dot_dimension_numbers<[1], [0], [0], [1], [0, 0, 1, 1], [], []>} : vector<8x8xbf16>, vector<8x8xbf16>, vector<8x8xf32> -> vector<8x8xf32>
    %c0_65 = arith.constant 0 : index
    %c16 = arith.constant 16 : index
    %118 = vector.load %arg10[%c0_65, %c16] : memref<8x32xf32, #tpu.memory_space<vmem>>, vector<8x8xf32>
    %119 = vector.broadcast %102 : vector<8x1xf32> to vector<8x8xf32>
    %120 = arith.mulf %119, %118 : vector<8x8xf32>
    %121 = arith.addf %120, %117 : vector<8x8xf32>
    %c0_66 = arith.constant 0 : index
    %c16_67 = arith.constant 16 : index
    %122 = vector.load %arg10[%c0_66, %c16_67] : memref<8x32xf32, #tpu.memory_space<vmem>>, vector<8x8xf32>
    tpu.vector_store %arg10[%c0_66, %c16_67], %121 {strides = array<i32>} : memref<8x32xf32, #tpu.memory_space<vmem>>, vector<8x8xf32>,
    %c2_68 = arith.constant 2 : index
    %c0_69 = arith.constant 0 : index
    %c0_70 = arith.constant 0 : index
    %123 = vector.load %arg8[%c2_68, %c0_69, %c0_70] : memref<4x8x1xf32, #tpu.memory_space<vmem>>, vector<1x8x1xf32>
    %124 = vector.shape_cast %123 : vector<1x8x1xf32> to vector<8x1xf32>
    %125 = vector.shape_cast %100 : vector<8x1xf32> to vector<1x8x1xf32>
    tpu.vector_store %arg8[%c2_68, %c0_69, %c0_70], %125 {strides = array<i32>} : memref<4x8x1xf32, #tpu.memory_space<vmem>>, vector<1x8x1xf32>,
    %126 = vector.extract_strided_slice %18 {offsets = [0, 24], sizes = [8, 8], strides = [1, 1]} : vector<8x32xbf16> to vector<8x8xbf16>
    %127 = vector.extract_strided_slice %19 {offsets = [0, 24], sizes = [8, 8], strides = [1, 1]} : vector<8x32xbf16> to vector<8x8xbf16>
    %cst_71 = arith.constant dense<0.000000e+00> : vector<8x8xf32>
    %128 = tpu.matmul %126, %127, %cst_71 {dimension_numbers = #tpu.dot_dimension_numbers<[1], [1], [0], [0], [0, 0, 1, 0], [], []>} : vector<8x8xbf16>, vector<8x8xbf16>, vector<8x8xf32> -> vector<8x8xf32>
    %129 = vector.broadcast %15 : vector<1x8xf32> to vector<8x8xf32>
    %130 = arith.addf %128, %129 : vector<8x8xf32>
    %c3 = arith.constant 3 : index
    %c0_72 = arith.constant 0 : index
    %c0_73 = arith.constant 0 : index
    %131 = vector.load %arg8[%c3, %c0_72, %c0_73] : memref<4x8x1xf32, #tpu.memory_space<vmem>>, vector<1x8x1xf32>
    %132 = vector.shape_cast %131 : vector<1x8x1xf32> to vector<8x1xf32>
    %cst_74 = arith.constant dense<0xFF800000> : vector<8xf32>
    %133 = vector.multi_reduction <maximumf>, %130, %cst_74 [1] : vector<8x8xf32> to vector<8xf32>
    %134 = vector.shape_cast %133 : vector<8xf32> to vector<8x1xf32>
    %135 = arith.maximumf %132, %134 : vector<8x1xf32>
    %136 = arith.subf %132, %135 : vector<8x1xf32>
    %137 = math.exp %136 : vector<8x1xf32>
    %138 = vector.broadcast %135 : vector<8x1xf32> to vector<8x8xf32>
    %139 = arith.subf %130, %138 : vector<8x8xf32>
    %140 = math.exp %139 : vector<8x8xf32>
    %c3_75 = arith.constant 3 : index
    %c0_76 = arith.constant 0 : index
    %c0_77 = arith.constant 0 : index
    %141 = vector.load %arg9[%c3_75, %c0_76, %c0_77] : memref<4x8x1xf32, #tpu.memory_space<vmem>>, vector<1x8x1xf32>
    %142 = vector.shape_cast %141 : vector<1x8x1xf32> to vector<8x1xf32>
    %143 = arith.mulf %137, %142 : vector<8x1xf32>
    %cst_78 = arith.constant dense<0.000000e+00> : vector<8xf32>
    %144 = vector.multi_reduction <add>, %140, %cst_78 [1] : vector<8x8xf32> to vector<8xf32>
    %145 = vector.shape_cast %144 : vector<8xf32> to vector<8x1xf32>
    %146 = arith.addf %143, %145 : vector<8x1xf32>
    %c3_79 = arith.constant 3 : index
    %c0_80 = arith.constant 0 : index
    %c0_81 = arith.constant 0 : index
    %147 = vector.load %arg9[%c3_79, %c0_80, %c0_81] : memref<4x8x1xf32, #tpu.memory_space<vmem>>, vector<1x8x1xf32>
    %148 = vector.shape_cast %147 : vector<1x8x1xf32> to vector<8x1xf32>
    %149 = vector.shape_cast %146 : vector<8x1xf32> to vector<1x8x1xf32>
    tpu.vector_store %arg9[%c3_79, %c0_80, %c0_81], %149 {strides = array<i32>} : memref<4x8x1xf32, #tpu.memory_space<vmem>>, vector<1x8x1xf32>,
    %150 = arith.truncf %140 : vector<8x8xf32> to vector<8x8xbf16>
    %151 = vector.extract_strided_slice %20 {offsets = [0, 24], sizes = [8, 8], strides = [1, 1]} : vector<8x32xbf16> to vector<8x8xbf16>
    %cst_82 = arith.constant dense<0.000000e+00> : vector<8x8xf32>
    %152 = tpu.matmul %150, %151, %cst_82 {dimension_numbers = #tpu.dot_dimension_numbers<[1], [0], [0], [1], [0, 0, 1, 1], [], []>} : vector<8x8xbf16>, vector<8x8xbf16>, vector<8x8xf32> -> vector<8x8xf32>
    %c0_83 = arith.constant 0 : index
    %c24 = arith.constant 24 : index
    %153 = vector.load %arg10[%c0_83, %c24] : memref<8x32xf32, #tpu.memory_space<vmem>>, vector<8x8xf32>
    %154 = vector.broadcast %137 : vector<8x1xf32> to vector<8x8xf32>
    %155 = arith.mulf %154, %153 : vector<8x8xf32>
    %156 = arith.addf %155, %152 : vector<8x8xf32>
    %c0_84 = arith.constant 0 : index
    %c24_85 = arith.constant 24 : index
    %157 = vector.load %arg10[%c0_84, %c24_85] : memref<8x32xf32, #tpu.memory_space<vmem>>, vector<8x8xf32>
    tpu.vector_store %arg10[%c0_84, %c24_85], %156 {strides = array<i32>} : memref<8x32xf32, #tpu.memory_space<vmem>>, vector<8x8xf32>,
    %c3_86 = arith.constant 3 : index
    %c0_87 = arith.constant 0 : index
    %c0_88 = arith.constant 0 : index
    %158 = vector.load %arg8[%c3_86, %c0_87, %c0_88] : memref<4x8x1xf32, #tpu.memory_space<vmem>>, vector<1x8x1xf32>
    %159 = vector.shape_cast %158 : vector<1x8x1xf32> to vector<8x1xf32>
    %160 = vector.shape_cast %135 : vector<8x1xf32> to vector<1x8x1xf32>
    tpu.vector_store %arg8[%c3_86, %c0_87, %c0_88], %160 {strides = array<i32>} : memref<4x8x1xf32, #tpu.memory_space<vmem>>, vector<1x8x1xf32>,
    %c0_i32_89 = arith.constant 0 : i32
    %161 = arith.cmpi eq, %arg2, %c0_i32_89 : i32
    %162 = arith.extui %161 : i1 to i32
    %c0_i32_90 = arith.constant 0 : i32
    %163 = arith.cmpi ne, %162, %c0_i32_90 : i32
    scf.if %163 {
      %c0_91 = arith.constant 0 : index
      %c0_92 = arith.constant 0 : index
      %c0_93 = arith.constant 0 : index
      %164 = vector.load %arg9[%c0_91, %c0_92, %c0_93] : memref<4x8x1xf32, #tpu.memory_space<vmem>>, vector<1x8x1xf32>
      %165 = vector.shape_cast %164 : vector<1x8x1xf32> to vector<8x1xf32>
      %166 = tpu.reciprocal %165 {approx = true} : vector<8x1xf32> -> vector<8x1xf32>
      %167 = vector.shape_cast %166 : vector<8x1xf32> to vector<8x1xf32>
      %168 = vector.broadcast %167 : vector<8x1xf32> to vector<8x8xf32>
      %c1_94 = arith.constant 1 : index
      %c0_95 = arith.constant 0 : index
      %c0_96 = arith.constant 0 : index
      %169 = vector.load %arg9[%c1_94, %c0_95, %c0_96] : memref<4x8x1xf32, #tpu.memory_space<vmem>>, vector<1x8x1xf32>
      %170 = vector.shape_cast %169 : vector<1x8x1xf32> to vector<8x1xf32>
      %171 = tpu.reciprocal %170 {approx = true} : vector<8x1xf32> -> vector<8x1xf32>
      %172 = vector.shape_cast %171 : vector<8x1xf32> to vector<8x1xf32>
      %173 = vector.broadcast %172 : vector<8x1xf32> to vector<8x8xf32>
      %c2_97 = arith.constant 2 : index
      %c0_98 = arith.constant 0 : index
      %c0_99 = arith.constant 0 : index
      %174 = vector.load %arg9[%c2_97, %c0_98, %c0_99] : memref<4x8x1xf32, #tpu.memory_space<vmem>>, vector<1x8x1xf32>
      %175 = vector.shape_cast %174 : vector<1x8x1xf32> to vector<8x1xf32>
      %176 = tpu.reciprocal %175 {approx = true} : vector<8x1xf32> -> vector<8x1xf32>
      %177 = vector.shape_cast %176 : vector<8x1xf32> to vector<8x1xf32>
      %178 = vector.broadcast %177 : vector<8x1xf32> to vector<8x8xf32>
      %c3_100 = arith.constant 3 : index
      %c0_101 = arith.constant 0 : index
      %c0_102 = arith.constant 0 : index
      %179 = vector.load %arg9[%c3_100, %c0_101, %c0_102] : memref<4x8x1xf32, #tpu.memory_space<vmem>>, vector<1x8x1xf32>
      %180 = vector.shape_cast %179 : vector<1x8x1xf32> to vector<8x1xf32>
      %181 = tpu.reciprocal %180 {approx = true} : vector<8x1xf32> -> vector<8x1xf32>
      %182 = vector.shape_cast %181 : vector<8x1xf32> to vector<8x1xf32>
      %183 = vector.broadcast %182 : vector<8x1xf32> to vector<8x8xf32>
      %c0_103 = arith.constant 0 : index
      %c0_104 = arith.constant 0 : index
      %184 = vector.load %arg10[%c0_103, %c0_104] : memref<8x32xf32, #tpu.memory_space<vmem>>, vector<8x32xf32>
      %185 = tpu.concatenate %168, %173, %178, %183 in 1 : vector<8x8xf32>, vector<8x8xf32>, vector<8x8xf32>, vector<8x8xf32> -> vector<8x32xf32>
      %186 = arith.mulf %184, %185 : vector<8x32xf32>
      %c0_105 = arith.constant 0 : index
      %c0_106 = arith.constant 0 : index
      %c0_107 = arith.constant 0 : index
      %187 = vector.load %arg7[%c0_105, %c0_106, %c0_107] : memref<1x8x32xf32, #tpu.memory_space<vmem>>, vector<1x8x32xf32>
      %188 = vector.shape_cast %187 : vector<1x8x32xf32> to vector<8x32xf32>
      %189 = vector.shape_cast %186 : vector<8x32xf32> to vector<1x8x32xf32>
      tpu.vector_store %arg7[%c0_105, %c0_106, %c0_107], %189 {strides = array<i32>} : memref<1x8x32xf32, #tpu.memory_space<vmem>>, vector<1x8x32xf32>,
    } else {
    }
    return
  }
  func.func @transform_0(%arg0: i32, %arg1: i32, %arg2: i32) -> (i32, i32, i32) {
    %c0_i32 = arith.constant 0 : i32
    %c0_i32_0 = arith.constant 0 : i32
    return %arg0, %arg1, %c0_i32 : i32, i32, i32
  }
  func.func @transform_1(%arg0: i32, %arg1: i32, %arg2: i32) -> (i32, i32, i32) {
    %c0_i32 = arith.constant 0 : i32
    %c0_i32_0 = arith.constant 0 : i32
    return %arg0, %arg2, %c0_i32 : i32, i32, i32
  }
  func.func @transform_2(%arg0: i32, %arg1: i32, %arg2: i32) -> (i32, i32, i32) {
    %c0_i32 = arith.constant 0 : i32
    %c0_i32_0 = arith.constant 0 : i32
    return %arg0, %arg2, %c0_i32 : i32, i32, i32
  }
  func.func @transform_3(%arg0: i32, %arg1: i32, %arg2: i32) -> (i32, i32, i32) {
    %c0_i32 = arith.constant 0 : i32
    %c0_i32_0 = arith.constant 0 : i32
    return %arg0, %c0_i32, %arg2 : i32, i32, i32
  }
  func.func @transform_4(%arg0: i32, %arg1: i32, %arg2: i32) -> (i32, i32, i32) {
    %c0_i32 = arith.constant 0 : i32
    %c0_i32_0 = arith.constant 0 : i32
    return %arg0, %arg1, %c0_i32 : i32, i32, i32
  }
}

module attributes {stable_mosaic.version = 11 : i64} {
  func.func @_ffn_add_ln_kernel(%arg0: i32, %arg1: i32, %arg2: memref<16x32xf32, #tpu.memory_space<vmem>>, %arg3: memref<32x64xbf16, #tpu.memory_space<vmem>>, %arg4: memref<1x64xf32, #tpu.memory_space<vmem>>, %arg5: memref<64x32xbf16, #tpu.memory_space<vmem>>, %arg6: memref<1x32xf32, #tpu.memory_space<vmem>>, %arg7: memref<1x32xf32, #tpu.memory_space<vmem>>, %arg8: memref<1x32xf32, #tpu.memory_space<vmem>>, %arg9: memref<16x32xf32, #tpu.memory_space<vmem>>, %arg10: memref<16x32xf32, #tpu.memory_space<vmem>>) attributes {dimension_semantics = [#tpu.dimension_semantics<parallel>, #tpu.dimension_semantics<arbitrary>], iteration_bounds = array<i64: 1, 1>, scalar_prefetch = 0 : i64, scratch_operands = 1 : i64, tpu.core_type = #tpu.core_type<tc>, window_params = [{transform_indices = @transform_0, window_bounds = array<i64: 16, 32>}, {transform_indices = @transform_1, window_bounds = array<i64: 32, 64>}, {transform_indices = @transform_2, window_bounds = array<i64: 1, 64>}, {transform_indices = @transform_3, window_bounds = array<i64: 64, 32>}, {pipeline_mode = #tpu.pipeline_mode<synchronous>, transform_indices = @transform_4, window_bounds = array<i64: 1, 32>}, {pipeline_mode = #tpu.pipeline_mode<synchronous>, transform_indices = @transform_5, window_bounds = array<i64: 1, 32>}, {pipeline_mode = #tpu.pipeline_mode<synchronous>, transform_indices = @transform_6, window_bounds = array<i64: 1, 32>}, {transform_indices = @transform_7, window_bounds = array<i64: 16, 32>}]} {
    %c0_i32 = arith.constant 0 : i32
    %0 = arith.cmpi eq, %arg1, %c0_i32 : i32
    %1 = arith.extui %0 : i1 to i32
    %c0_i32_0 = arith.constant 0 : i32
    %2 = arith.cmpi ne, %1, %c0_i32_0 : i32
    scf.if %2 {
      %cst_16 = arith.constant 0.000000e+00 : f32
      %21 = vector.broadcast %cst_16 : f32 to vector<16x32xf32>
      %c0_17 = arith.constant 0 : index
      %c0_18 = arith.constant 0 : index
      %22 = vector.load %arg10[%c0_17, %c0_18] : memref<16x32xf32, #tpu.memory_space<vmem>>, vector<16x32xf32>
      tpu.vector_store %arg10[%c0_17, %c0_18], %21 {strides = array<i32>} : memref<16x32xf32, #tpu.memory_space<vmem>>, vector<16x32xf32>,
    } else {
    }
    %c0 = arith.constant 0 : index
    %c0_1 = arith.constant 0 : index
    %3 = vector.load %arg2[%c0, %c0_1] : memref<16x32xf32, #tpu.memory_space<vmem>>, vector<16x32xf32>
    %4 = arith.truncf %3 : vector<16x32xf32> to vector<16x32xbf16>
    %c0_2 = arith.constant 0 : index
    %c0_3 = arith.constant 0 : index
    %5 = vector.load %arg3[%c0_2, %c0_3] : memref<32x64xbf16, #tpu.memory_space<vmem>>, vector<32x64xbf16>
    %cst = arith.constant dense<0.000000e+00> : vector<16x64xf32>
    %6 = tpu.matmul %4, %5, %cst {dimension_numbers = #tpu.dot_dimension_numbers<[1], [0], [0], [1], [0, 0, 1, 1], [], []>} : vector<16x32xbf16>, vector<32x64xbf16>, vector<16x64xf32> -> vector<16x64xf32>
    %c0_4 = arith.constant 0 : index
    %c0_5 = arith.constant 0 : index
    %7 = vector.load %arg4[%c0_4, %c0_5] : memref<1x64xf32, #tpu.memory_space<vmem>>, vector<1x64xf32>
    %8 = vector.broadcast %7 : vector<1x64xf32> to vector<16x64xf32>
    %9 = arith.addf %6, %8 : vector<16x64xf32>
    %cst_6 = arith.constant 0.000000e+00 : f32
    %10 = vector.broadcast %cst_6 : f32 to vector<16x64xf32>
    %11 = arith.maximumf %9, %10 : vector<16x64xf32>
    %c0_7 = arith.constant 0 : index
    %c0_8 = arith.constant 0 : index
    %12 = vector.load %arg10[%c0_7, %c0_8] : memref<16x32xf32, #tpu.memory_space<vmem>>, vector<16x32xf32>
    %13 = arith.truncf %11 : vector<16x64xf32> to vector<16x64xbf16>
    %c0_9 = arith.constant 0 : index
    %c0_10 = arith.constant 0 : index
    %14 = vector.load %arg5[%c0_9, %c0_10] : memref<64x32xbf16, #tpu.memory_space<vmem>>, vector<64x32xbf16>
    %cst_11 = arith.constant dense<0.000000e+00> : vector<16x32xf32>
    %15 = tpu.matmul %13, %14, %cst_11 {dimension_numbers = #tpu.dot_dimension_numbers<[1], [0], [0], [1], [0, 0, 1, 1], [], []>} : vector<16x64xbf16>, vector<64x32xbf16>, vector<16x32xf32> -> vector<16x32xf32>
    %16 = arith.addf %12, %15 : vector<16x32xf32>
    %c0_12 = arith.constant 0 : index
    %c0_13 = arith.constant 0 : index
    %17 = vector.load %arg10[%c0_12, %c0_13] : memref<16x32xf32, #tpu.memory_space<vmem>>, vector<16x32xf32>
    tpu.vector_store %arg10[%c0_12, %c0_13], %16 {strides = array<i32>} : memref<16x32xf32, #tpu.memory_space<vmem>>, vector<16x32xf32>,
    %c0_i32_14 = arith.constant 0 : i32
    %18 = arith.cmpi eq, %arg1, %c0_i32_14 : i32
    %19 = arith.extui %18 : i1 to i32
    %c0_i32_15 = arith.constant 0 : i32
    %20 = arith.cmpi ne, %19, %c0_i32_15 : i32
    scf.if %20 {
      %c0_16 = arith.constant 0 : index
      %c0_17 = arith.constant 0 : index
      %21 = vector.load %arg10[%c0_16, %c0_17] : memref<16x32xf32, #tpu.memory_space<vmem>>, vector<16x32xf32>
      %c0_18 = arith.constant 0 : index
      %c0_19 = arith.constant 0 : index
      %22 = vector.load %arg6[%c0_18, %c0_19] : memref<1x32xf32, #tpu.memory_space<vmem>>, vector<1x32xf32>
      %23 = vector.broadcast %22 : vector<1x32xf32> to vector<16x32xf32>
      %24 = arith.addf %21, %23 : vector<16x32xf32>
      %c0_20 = arith.constant 0 : index
      %c0_21 = arith.constant 0 : index
      %25 = vector.load %arg2[%c0_20, %c0_21] : memref<16x32xf32, #tpu.memory_space<vmem>>, vector<16x32xf32>
      %26 = arith.addf %24, %25 : vector<16x32xf32>
      %cst_22 = arith.constant dense<0.000000e+00> : vector<16xf32>
      %27 = vector.multi_reduction <add>, %26, %cst_22 [1] : vector<16x32xf32> to vector<16xf32>
      %28 = vector.shape_cast %27 : vector<16xf32> to vector<16x1xf32>
      %cst_23 = arith.constant 3.200000e+01 : f32
      %29 = vector.broadcast %cst_23 : f32 to vector<16x1xf32>
      %30 = arith.divf %28, %29 : vector<16x1xf32>
      %31 = vector.broadcast %30 : vector<16x1xf32> to vector<16x32xf32>
      %32 = arith.subf %26, %31 : vector<16x32xf32>
      %33 = arith.mulf %32, %32 : vector<16x32xf32>
      %cst_24 = arith.constant dense<0.000000e+00> : vector<16xf32>
      %34 = vector.multi_reduction <add>, %33, %cst_24 [1] : vector<16x32xf32> to vector<16xf32>
      %35 = vector.shape_cast %34 : vector<16xf32> to vector<16x1xf32>
      %cst_25 = arith.constant 3.200000e+01 : f32
      %36 = vector.broadcast %cst_25 : f32 to vector<16x1xf32>
      %37 = arith.divf %35, %36 : vector<16x1xf32>
      %cst_26 = arith.constant 9.99999974E-6 : f32
      %38 = vector.broadcast %cst_26 : f32 to vector<16x1xf32>
      %39 = arith.addf %37, %38 : vector<16x1xf32>
      %40 = math.rsqrt %39 : vector<16x1xf32>
      %41 = vector.broadcast %40 : vector<16x1xf32> to vector<16x32xf32>
      %42 = arith.mulf %32, %41 : vector<16x32xf32>
      %c0_27 = arith.constant 0 : index
      %c0_28 = arith.constant 0 : index
      %43 = vector.load %arg7[%c0_27, %c0_28] : memref<1x32xf32, #tpu.memory_space<vmem>>, vector<1x32xf32>
      %44 = vector.broadcast %43 : vector<1x32xf32> to vector<16x32xf32>
      %45 = arith.mulf %42, %44 : vector<16x32xf32>
      %c0_29 = arith.constant 0 : index
      %c0_30 = arith.constant 0 : index
      %46 = vector.load %arg8[%c0_29, %c0_30] : memref<1x32xf32, #tpu.memory_space<vmem>>, vector<1x32xf32>
      %47 = vector.broadcast %46 : vector<1x32xf32> to vector<16x32xf32>
      %48 = arith.addf %45, %47 : vector<16x32xf32>
      %c0_31 = arith.constant 0 : index
      %c0_32 = arith.constant 0 : index
      %49 = vector.load %arg9[%c0_31, %c0_32] : memref<16x32xf32, #tpu.memory_space<vmem>>, vector<16x32xf32>
      tpu.vector_store %arg9[%c0_31, %c0_32], %48 {strides = array<i32>} : memref<16x32xf32, #tpu.memory_space<vmem>>, vector<16x32xf32>,
    } else {
    }
    return
  }
  func.func @transform_0(%arg0: i32, %arg1: i32) -> (i32, i32) {
    %c0_i32 = arith.constant 0 : i32
    %c0_i32_0 = arith.constant 0 : i32
    return %arg0, %c0_i32 : i32, i32
  }
  func.func @transform_1(%arg0: i32, %arg1: i32) -> (i32, i32) {
    %c0_i32 = arith.constant 0 : i32
    %c0_i32_0 = arith.constant 0 : i32
    return %c0_i32, %arg1 : i32, i32
  }
  func.func @transform_2(%arg0: i32, %arg1: i32) -> (i32, i32) {
    %c0_i32 = arith.constant 0 : i32
    %c0_i32_0 = arith.constant 0 : i32
    return %c0_i32, %arg1 : i32, i32
  }
  func.func @transform_3(%arg0: i32, %arg1: i32) -> (i32, i32) {
    %c0_i32 = arith.constant 0 : i32
    %c0_i32_0 = arith.constant 0 : i32
    return %arg1, %c0_i32 : i32, i32
  }
  func.func @transform_4(%arg0: i32, %arg1: i32) -> (i32, i32) {
    %c0_i32 = arith.constant 0 : i32
    %c0_i32_0 = arith.constant 0 : i32
    %c0_i32_1 = arith.constant 0 : i32
    return %c0_i32, %c0_i32_0 : i32, i32
  }
  func.func @transform_5(%arg0: i32, %arg1: i32) -> (i32, i32) {
    %c0_i32 = arith.constant 0 : i32
    %c0_i32_0 = arith.constant 0 : i32
    %c0_i32_1 = arith.constant 0 : i32
    return %c0_i32, %c0_i32_0 : i32, i32
  }
  func.func @transform_6(%arg0: i32, %arg1: i32) -> (i32, i32) {
    %c0_i32 = arith.constant 0 : i32
    %c0_i32_0 = arith.constant 0 : i32
    %c0_i32_1 = arith.constant 0 : i32
    return %c0_i32, %c0_i32_0 : i32, i32
  }
  func.func @transform_7(%arg0: i32, %arg1: i32) -> (i32, i32) {
    %c0_i32 = arith.constant 0 : i32
    %c0_i32_0 = arith.constant 0 : i32
    return %arg0, %c0_i32 : i32, i32
  }
}

module attributes {stable_mosaic.version = 11 : i64} {
  func.func @_linear_kernel(%arg0: i32, %arg1: i32, %arg2: i32, %arg3: memref<16x32xf32, #tpu.memory_space<vmem>>, %arg4: memref<32x64xbf16, #tpu.memory_space<vmem>>, %arg5: memref<1x64xf32, #tpu.memory_space<vmem>>, %arg6: memref<16x64xf32, #tpu.memory_space<vmem>>, %arg7: memref<16x64xf32, #tpu.memory_space<vmem>>) attributes {dimension_semantics = [#tpu.dimension_semantics<parallel>, #tpu.dimension_semantics<parallel>, #tpu.dimension_semantics<arbitrary>], iteration_bounds = array<i64: 1, 1, 1>, scalar_prefetch = 0 : i64, scratch_operands = 1 : i64, tpu.core_type = #tpu.core_type<tc>, window_params = [{transform_indices = @transform_0, window_bounds = array<i64: 16, 32>}, {transform_indices = @transform_1, window_bounds = array<i64: 32, 64>}, {transform_indices = @transform_2, window_bounds = array<i64: 1, 64>}, {transform_indices = @transform_3, window_bounds = array<i64: 16, 64>}]} {
    %c0_i32 = arith.constant 0 : i32
    %0 = arith.cmpi eq, %arg2, %c0_i32 : i32
    %1 = arith.extui %0 : i1 to i32
    %c0_i32_0 = arith.constant 0 : i32
    %2 = arith.cmpi ne, %1, %c0_i32_0 : i32
    scf.if %2 {
      %cst_10 = arith.constant 0.000000e+00 : f32
      %13 = vector.broadcast %cst_10 : f32 to vector<16x64xf32>
      %c0_11 = arith.constant 0 : index
      %c0_12 = arith.constant 0 : index
      %14 = vector.load %arg7[%c0_11, %c0_12] : memref<16x64xf32, #tpu.memory_space<vmem>>, vector<16x64xf32>
      tpu.vector_store %arg7[%c0_11, %c0_12], %13 {strides = array<i32>} : memref<16x64xf32, #tpu.memory_space<vmem>>, vector<16x64xf32>,
    } else {
    }
    %c0 = arith.constant 0 : index
    %c0_1 = arith.constant 0 : index
    %3 = vector.load %arg7[%c0, %c0_1] : memref<16x64xf32, #tpu.memory_space<vmem>>, vector<16x64xf32>
    %c0_2 = arith.constant 0 : index
    %c0_3 = arith.constant 0 : index
    %4 = vector.load %arg3[%c0_2, %c0_3] : memref<16x32xf32, #tpu.memory_space<vmem>>, vector<16x32xf32>
    %5 = arith.truncf %4 : vector<16x32xf32> to vector<16x32xbf16>
    %c0_4 = arith.constant 0 : index
    %c0_5 = arith.constant 0 : index
    %6 = vector.load %arg4[%c0_4, %c0_5] : memref<32x64xbf16, #tpu.memory_space<vmem>>, vector<32x64xbf16>
    %cst = arith.constant dense<0.000000e+00> : vector<16x64xf32>
    %7 = tpu.matmul %5, %6, %cst {dimension_numbers = #tpu.dot_dimension_numbers<[1], [0], [0], [1], [0, 0, 1, 1], [], []>} : vector<16x32xbf16>, vector<32x64xbf16>, vector<16x64xf32> -> vector<16x64xf32>
    %8 = arith.addf %3, %7 : vector<16x64xf32>
    %c0_6 = arith.constant 0 : index
    %c0_7 = arith.constant 0 : index
    %9 = vector.load %arg7[%c0_6, %c0_7] : memref<16x64xf32, #tpu.memory_space<vmem>>, vector<16x64xf32>
    tpu.vector_store %arg7[%c0_6, %c0_7], %8 {strides = array<i32>} : memref<16x64xf32, #tpu.memory_space<vmem>>, vector<16x64xf32>,
    %c0_i32_8 = arith.constant 0 : i32
    %10 = arith.cmpi eq, %arg2, %c0_i32_8 : i32
    %11 = arith.extui %10 : i1 to i32
    %c0_i32_9 = arith.constant 0 : i32
    %12 = arith.cmpi ne, %11, %c0_i32_9 : i32
    scf.if %12 {
      %c0_10 = arith.constant 0 : index
      %c0_11 = arith.constant 0 : index
      %13 = vector.load %arg7[%c0_10, %c0_11] : memref<16x64xf32, #tpu.memory_space<vmem>>, vector<16x64xf32>
      %c0_12 = arith.constant 0 : index
      %c0_13 = arith.constant 0 : index
      %14 = vector.load %arg5[%c0_12, %c0_13] : memref<1x64xf32, #tpu.memory_space<vmem>>, vector<1x64xf32>
      %15 = vector.broadcast %14 : vector<1x64xf32> to vector<16x64xf32>
      %16 = arith.addf %13, %15 : vector<16x64xf32>
      %c0_14 = arith.constant 0 : index
      %c0_15 = arith.constant 0 : index
      %17 = vector.load %arg6[%c0_14, %c0_15] : memref<16x64xf32, #tpu.memory_space<vmem>>, vector<16x64xf32>
      tpu.vector_store %arg6[%c0_14, %c0_15], %16 {strides = array<i32>} : memref<16x64xf32, #tpu.memory_space<vmem>>, vector<16x64xf32>,
    } else {
    }
    return
  }
  func.func @transform_0(%arg0: i32, %arg1: i32, %arg2: i32) -> (i32, i32) {
    %c0_i32 = arith.constant 0 : i32
    return %arg0, %arg2 : i32, i32
  }
  func.func @transform_1(%arg0: i32, %arg1: i32, %arg2: i32) -> (i32, i32) {
    %c0_i32 = arith.constant 0 : i32
    return %arg2, %arg1 : i32, i32
  }
  func.func @transform_2(%arg0: i32, %arg1: i32, %arg2: i32) -> (i32, i32) {
    %c0_i32 = arith.constant 0 : i32
    %c0_i32_0 = arith.constant 0 : i32
    return %c0_i32, %arg1 : i32, i32
  }
  func.func @transform_3(%arg0: i32, %arg1: i32, %arg2: i32) -> (i32, i32) {
    %c0_i32 = arith.constant 0 : i32
    return %arg0, %arg1 : i32, i32
  }
}

module attributes {stable_mosaic.version = 11 : i64} {
  func.func @_linear_kernel(%arg0: i32, %arg1: i32, %arg2: i32, %arg3: memref<16x32xf32, #tpu.memory_space<vmem>>, %arg4: memref<32x32xbf16, #tpu.memory_space<vmem>>, %arg5: memref<1x32xf32, #tpu.memory_space<vmem>>, %arg6: memref<16x32xf32, #tpu.memory_space<vmem>>, %arg7: memref<16x32xf32, #tpu.memory_space<vmem>>) attributes {dimension_semantics = [#tpu.dimension_semantics<parallel>, #tpu.dimension_semantics<parallel>, #tpu.dimension_semantics<arbitrary>], iteration_bounds = array<i64: 1, 1, 1>, scalar_prefetch = 0 : i64, scratch_operands = 1 : i64, tpu.core_type = #tpu.core_type<tc>, window_params = [{transform_indices = @transform_0, window_bounds = array<i64: 16, 32>}, {transform_indices = @transform_1, window_bounds = array<i64: 32, 32>}, {transform_indices = @transform_2, window_bounds = array<i64: 1, 32>}, {transform_indices = @transform_3, window_bounds = array<i64: 16, 32>}]} {
    %c0_i32 = arith.constant 0 : i32
    %0 = arith.cmpi eq, %arg2, %c0_i32 : i32
    %1 = arith.extui %0 : i1 to i32
    %c0_i32_0 = arith.constant 0 : i32
    %2 = arith.cmpi ne, %1, %c0_i32_0 : i32
    scf.if %2 {
      %cst_10 = arith.constant 0.000000e+00 : f32
      %13 = vector.broadcast %cst_10 : f32 to vector<16x32xf32>
      %c0_11 = arith.constant 0 : index
      %c0_12 = arith.constant 0 : index
      %14 = vector.load %arg7[%c0_11, %c0_12] : memref<16x32xf32, #tpu.memory_space<vmem>>, vector<16x32xf32>
      tpu.vector_store %arg7[%c0_11, %c0_12], %13 {strides = array<i32>} : memref<16x32xf32, #tpu.memory_space<vmem>>, vector<16x32xf32>,
    } else {
    }
    %c0 = arith.constant 0 : index
    %c0_1 = arith.constant 0 : index
    %3 = vector.load %arg7[%c0, %c0_1] : memref<16x32xf32, #tpu.memory_space<vmem>>, vector<16x32xf32>
    %c0_2 = arith.constant 0 : index
    %c0_3 = arith.constant 0 : index
    %4 = vector.load %arg3[%c0_2, %c0_3] : memref<16x32xf32, #tpu.memory_space<vmem>>, vector<16x32xf32>
    %5 = arith.truncf %4 : vector<16x32xf32> to vector<16x32xbf16>
    %c0_4 = arith.constant 0 : index
    %c0_5 = arith.constant 0 : index
    %6 = vector.load %arg4[%c0_4, %c0_5] : memref<32x32xbf16, #tpu.memory_space<vmem>>, vector<32x32xbf16>
    %cst = arith.constant dense<0.000000e+00> : vector<16x32xf32>
    %7 = tpu.matmul %5, %6, %cst {dimension_numbers = #tpu.dot_dimension_numbers<[1], [0], [0], [1], [0, 0, 1, 1], [], []>} : vector<16x32xbf16>, vector<32x32xbf16>, vector<16x32xf32> -> vector<16x32xf32>
    %8 = arith.addf %3, %7 : vector<16x32xf32>
    %c0_6 = arith.constant 0 : index
    %c0_7 = arith.constant 0 : index
    %9 = vector.load %arg7[%c0_6, %c0_7] : memref<16x32xf32, #tpu.memory_space<vmem>>, vector<16x32xf32>
    tpu.vector_store %arg7[%c0_6, %c0_7], %8 {strides = array<i32>} : memref<16x32xf32, #tpu.memory_space<vmem>>, vector<16x32xf32>,
    %c0_i32_8 = arith.constant 0 : i32
    %10 = arith.cmpi eq, %arg2, %c0_i32_8 : i32
    %11 = arith.extui %10 : i1 to i32
    %c0_i32_9 = arith.constant 0 : i32
    %12 = arith.cmpi ne, %11, %c0_i32_9 : i32
    scf.if %12 {
      %c0_10 = arith.constant 0 : index
      %c0_11 = arith.constant 0 : index
      %13 = vector.load %arg7[%c0_10, %c0_11] : memref<16x32xf32, #tpu.memory_space<vmem>>, vector<16x32xf32>
      %c0_12 = arith.constant 0 : index
      %c0_13 = arith.constant 0 : index
      %14 = vector.load %arg5[%c0_12, %c0_13] : memref<1x32xf32, #tpu.memory_space<vmem>>, vector<1x32xf32>
      %15 = vector.broadcast %14 : vector<1x32xf32> to vector<16x32xf32>
      %16 = arith.addf %13, %15 : vector<16x32xf32>
      %c0_14 = arith.constant 0 : index
      %c0_15 = arith.constant 0 : index
      %17 = vector.load %arg6[%c0_14, %c0_15] : memref<16x32xf32, #tpu.memory_space<vmem>>, vector<16x32xf32>
      tpu.vector_store %arg6[%c0_14, %c0_15], %16 {strides = array<i32>} : memref<16x32xf32, #tpu.memory_space<vmem>>, vector<16x32xf32>,
    } else {
    }
    return
  }
  func.func @transform_0(%arg0: i32, %arg1: i32, %arg2: i32) -> (i32, i32) {
    %c0_i32 = arith.constant 0 : i32
    return %arg0, %arg2 : i32, i32
  }
  func.func @transform_1(%arg0: i32, %arg1: i32, %arg2: i32) -> (i32, i32) {
    %c0_i32 = arith.constant 0 : i32
    return %arg2, %arg1 : i32, i32
  }
  func.func @transform_2(%arg0: i32, %arg1: i32, %arg2: i32) -> (i32, i32) {
    %c0_i32 = arith.constant 0 : i32
    %c0_i32_0 = arith.constant 0 : i32
    return %c0_i32, %arg1 : i32, i32
  }
  func.func @transform_3(%arg0: i32, %arg1: i32, %arg2: i32) -> (i32, i32) {
    %c0_i32 = arith.constant 0 : i32
    return %arg0, %arg1 : i32, i32
  }
}

module attributes {stable_mosaic.version = 11 : i64} {
  func.func @_mha_flash_kernel(%arg0: i32, %arg1: i32, %arg2: i32, %arg3: memref<1x8x32xf32, #tpu.memory_space<vmem>>, %arg4: memref<1x8x32xf32, #tpu.memory_space<vmem>>, %arg5: memref<1x8x32xf32, #tpu.memory_space<vmem>>, %arg6: memref<1x8x8xf32, #tpu.memory_space<vmem>>, %arg7: memref<1x8x32xf32, #tpu.memory_space<vmem>>, %arg8: memref<4x8x1xf32, #tpu.memory_space<vmem>>, %arg9: memref<4x8x1xf32, #tpu.memory_space<vmem>>, %arg10: memref<8x32xf32, #tpu.memory_space<vmem>>) attributes {dimension_semantics = [#tpu.dimension_semantics<parallel>, #tpu.dimension_semantics<parallel>, #tpu.dimension_semantics<arbitrary>], iteration_bounds = array<i64: 2, 1, 1>, scalar_prefetch = 0 : i64, scratch_operands = 3 : i64, tpu.core_type = #tpu.core_type<tc>, window_params = [{transform_indices = @transform_0, window_bounds = array<i64: 1, 8, 32>}, {transform_indices = @transform_1, window_bounds = array<i64: 1, 8, 32>}, {transform_indices = @transform_2, window_bounds = array<i64: 1, 8, 32>}, {transform_indices = @transform_3, window_bounds = array<i64: 1, 8, 8>}, {transform_indices = @transform_4, window_bounds = array<i64: 1, 8, 32>}]} {
    %c0_i32 = arith.constant 0 : i32
    %0 = arith.cmpi eq, %arg2, %c0_i32 : i32
    %1 = arith.extui %0 : i1 to i32
    %c0_i32_0 = arith.constant 0 : i32
    %2 = arith.cmpi ne, %1, %c0_i32_0 : i32
    scf.if %2 {
      %cst_91 = arith.constant 0xFF800000 : f32
      %160 = vector.broadcast %cst_91 : f32 to vector<4x8x1xf32>
      %c0_92 = arith.constant 0 : index
      %c0_93 = arith.constant 0 : index
      %c0_94 = arith.constant 0 : index
      %161 = vector.load %arg8[%c0_92, %c0_93, %c0_94] : memref<4x8x1xf32, #tpu.memory_space<vmem>>, vector<4x8x1xf32>
      tpu.vector_store %arg8[%c0_92, %c0_93, %c0_94], %160 {strides = array<i32>} : memref<4x8x1xf32, #tpu.memory_space<vmem>>, vector<4x8x1xf32>,
      %cst_95 = arith.constant 0.000000e+00 : f32
      %162 = vector.broadcast %cst_95 : f32 to vector<4x8x1xf32>
      %c0_96 = arith.constant 0 : index
      %c0_97 = arith.constant 0 : index
      %c0_98 = arith.constant 0 : index
      %163 = vector.load %arg9[%c0_96, %c0_97, %c0_98] : memref<4x8x1xf32, #tpu.memory_space<vmem>>, vector<4x8x1xf32>
      tpu.vector_store %arg9[%c0_96, %c0_97, %c0_98], %162 {strides = array<i32>} : memref<4x8x1xf32, #tpu.memory_space<vmem>>, vector<4x8x1xf32>,
      %cst_99 = arith.constant 0.000000e+00 : f32
      %164 = vector.broadcast %cst_99 : f32 to vector<8x32xf32>
      %c0_100 = arith.constant 0 : index
      %c0_101 = arith.constant 0 : index
      %165 = vector.load %arg10[%c0_100, %c0_101] : memref<8x32xf32, #tpu.memory_space<vmem>>, vector<8x32xf32>
      tpu.vector_store %arg10[%c0_100, %c0_101], %164 {strides = array<i32>} : memref<8x32xf32, #tpu.memory_space<vmem>>, vector<8x32xf32>,
    } else {
    }
    %c0 = arith.constant 0 : index
    %c0_1 = arith.constant 0 : index
    %c0_2 = arith.constant 0 : index
    %3 = vector.load %arg3[%c0, %c0_1, %c0_2] : memref<1x8x32xf32, #tpu.memory_space<vmem>>, vector<1x8x32xf32>
    %4 = vector.shape_cast %3 : vector<1x8x32xf32> to vector<8x32xf32>
    %c0_3 = arith.constant 0 : index
    %c0_4 = arith.constant 0 : index
    %c0_5 = arith.constant 0 : index
    %5 = vector.load %arg4[%c0_3, %c0_4, %c0_5] : memref<1x8x32xf32, #tpu.memory_space<vmem>>, vector<1x8x32xf32>
    %6 = vector.shape_cast %5 : vector<1x8x32xf32> to vector<8x32xf32>
    %c0_6 = arith.constant 0 : index
    %c0_7 = arith.constant 0 : index
    %c0_8 = arith.constant 0 : index
    %7 = vector.load %arg5[%c0_6, %c0_7, %c0_8] : memref<1x8x32xf32, #tpu.memory_space<vmem>>, vector<1x8x32xf32>
    %8 = vector.shape_cast %7 : vector<1x8x32xf32> to vector<8x32xf32>
    %c0_9 = arith.constant 0 : index
    %c0_10 = arith.constant 0 : index
    %c0_11 = arith.constant 0 : index
    %9 = vector.load %arg6[%c0_9, %c0_10, %c0_11] : memref<1x8x8xf32, #tpu.memory_space<vmem>>, vector<1x8x8xf32>
    %10 = vector.shape_cast %9 : vector<1x8x8xf32> to vector<8x8xf32>
    %cst = arith.constant 0.000000e+00 : f32
    %11 = vector.broadcast %cst : f32 to vector<8x8xf32>
    %12 = arith.cmpf oeq, %10, %11 : vector<8x8xf32>
    %cst_12 = arith.constant -1.000000e+09 : f32
    %cst_13 = arith.constant 0.000000e+00 : f32
    %13 = vector.broadcast %cst_12 : f32 to vector<8x8xf32>
    %14 = vector.broadcast %cst_13 : f32 to vector<8x8xf32>
    %15 = arith.select %12, %13, %14 : vector<8x8xi1>, vector<8x8xf32>
    %cst_14 = arith.constant 0.353553385 : f32
    %16 = vector.broadcast %cst_14 : f32 to vector<8x32xf32>
    %17 = arith.mulf %4, %16 : vector<8x32xf32>
    %18 = arith.truncf %17 : vector<8x32xf32> to vector<8x32xbf16>
    %19 = arith.truncf %6 : vector<8x32xf32> to vector<8x32xbf16>
    %20 = arith.truncf %8 : vector<8x32xf32> to vector<8x32xbf16>
    %21 = vector.extract_strided_slice %18 {offsets = [0, 0], sizes = [8, 8], strides = [1, 1]} : vector<8x32xbf16> to vector<8x8xbf16>
    %22 = vector.extract_strided_slice %19 {offsets = [0, 0], sizes = [8, 8], strides = [1, 1]} : vector<8x32xbf16> to vector<8x8xbf16>
    %cst_15 = arith.constant dense<0.000000e+00> : vector<8x8xf32>
    %23 = tpu.matmul %21, %22, %cst_15 {dimension_numbers = #tpu.dot_dimension_numbers<[1], [1], [0], [0], [0, 0, 1, 0], [], []>} : vector<8x8xbf16>, vector<8x8xbf16>, vector<8x8xf32> -> vector<8x8xf32>
    %24 = arith.addf %23, %15 : vector<8x8xf32>
    %c0_16 = arith.constant 0 : index
    %c0_17 = arith.constant 0 : index
    %c0_18 = arith.constant 0 : index
    %25 = vector.load %arg8[%c0_16, %c0_17, %c0_18] : memref<4x8x1xf32, #tpu.memory_space<vmem>>, vector<1x8x1xf32>
    %26 = vector.shape_cast %25 : vector<1x8x1xf32> to vector<8x1xf32>
    %cst_19 = arith.constant dense<0xFF800000> : vector<8xf32>
    %27 = vector.multi_reduction <maximumf>, %24, %cst_19 [1] : vector<8x8xf32> to vector<8xf32>
    %28 = vector.shape_cast %27 : vector<8xf32> to vector<8x1xf32>
    %29 = arith.maximumf %26, %28 : vector<8x1xf32>
    %30 = arith.subf %26, %29 : vector<8x1xf32>
    %31 = math.exp %30 : vector<8x1xf32>
    %32 = vector.broadcast %29 : vector<8x1xf32> to vector<8x8xf32>
    %33 = arith.subf %24, %32 : vector<8x8xf32>
    %34 = math.exp %33 : vector<8x8xf32>
    %c0_20 = arith.constant 0 : index
    %c0_21 = arith.constant 0 : index
    %c0_22 = arith.constant 0 : index
    %35 = vector.load %arg9[%c0_20, %c0_21, %c0_22] : memref<4x8x1xf32, #tpu.memory_space<vmem>>, vector<1x8x1xf32>
    %36 = vector.shape_cast %35 : vector<1x8x1xf32> to vector<8x1xf32>
    %37 = arith.mulf %31, %36 : vector<8x1xf32>
    %cst_23 = arith.constant dense<0.000000e+00> : vector<8xf32>
    %38 = vector.multi_reduction <add>, %34, %cst_23 [1] : vector<8x8xf32> to vector<8xf32>
    %39 = vector.shape_cast %38 : vector<8xf32> to vector<8x1xf32>
    %40 = arith.addf %37, %39 : vector<8x1xf32>
    %c0_24 = arith.constant 0 : index
    %c0_25 = arith.constant 0 : index
    %c0_26 = arith.constant 0 : index
    %41 = vector.load %arg9[%c0_24, %c0_25, %c0_26] : memref<4x8x1xf32, #tpu.memory_space<vmem>>, vector<1x8x1xf32>
    %42 = vector.shape_cast %41 : vector<1x8x1xf32> to vector<8x1xf32>
    %43 = vector.shape_cast %40 : vector<8x1xf32> to vector<1x8x1xf32>
    tpu.vector_store %arg9[%c0_24, %c0_25, %c0_26], %43 {strides = array<i32>} : memref<4x8x1xf32, #tpu.memory_space<vmem>>, vector<1x8x1xf32>,
    %44 = arith.truncf %34 : vector<8x8xf32> to vector<8x8xbf16>
    %45 = vector.extract_strided_slice %20 {offsets = [0, 0], sizes = [8, 8], strides = [1, 1]} : vector<8x32xbf16> to vector<8x8xbf16>
    %cst_27 = arith.constant dense<0.000000e+00> : vector<8x8xf32>
    %46 = tpu.matmul %44, %45, %cst_27 {dimension_numbers = #tpu.dot_dimension_numbers<[1], [0], [0], [1], [0, 0, 1, 1], [], []>} : vector<8x8xbf16>, vector<8x8xbf16>, vector<8x8xf32> -> vector<8x8xf32>
    %c0_28 = arith.constant 0 : index
    %c0_29 = arith.constant 0 : index
    %47 = vector.load %arg10[%c0_28, %c0_29] : memref<8x32xf32, #tpu.memory_space<vmem>>, vector<8x8xf32>
    %48 = vector.broadcast %31 : vector<8x1xf32> to vector<8x8xf32>
    %49 = arith.mulf %48, %47 : vector<8x8xf32>
    %50 = arith.addf %49, %46 : vector<8x8xf32>
    %c0_30 = arith.constant 0 : index
    %c0_31 = arith.constant 0 : index
    %51 = vector.load %arg10[%c0_30, %c0_31] : memref<8x32xf32, #tpu.memory_space<vmem>>, vector<8x8xf32>
    tpu.vector_store %arg10[%c0_30, %c0_31], %50 {strides = array<i32>} : memref<8x32xf32, #tpu.memory_space<vmem>>, vector<8x8xf32>,
    %c0_32 = arith.constant 0 : index
    %c0_33 = arith.constant 0 : index
    %c0_34 = arith.constant 0 : index
    %52 = vector.load %arg8[%c0_32, %c0_33, %c0_34] : memref<4x8x1xf32, #tpu.memory_space<vmem>>, vector<1x8x1xf32>
    %53 = vector.shape_cast %52 : vector<1x8x1xf32> to vector<8x1xf32>
    %54 = vector.shape_cast %29 : vector<8x1xf32> to vector<1x8x1xf32>
    tpu.vector_store %arg8[%c0_32, %c0_33, %c0_34], %54 {strides = array<i32>} : memref<4x8x1xf32, #tpu.memory_space<vmem>>, vector<1x8x1xf32>,
    %55 = vector.extract_strided_slice %18 {offsets = [0, 8], sizes = [8, 8], strides = [1, 1]} : vector<8x32xbf16> to vector<8x8xbf16>
    %56 = vector.extract_strided_slice %19 {offsets = [0, 8], sizes = [8, 8], strides = [1, 1]} : vector<8x32xbf16> to vector<8x8xbf16>
    %cst_35 = arith.constant dense<0.000000e+00> : vector<8x8xf32>
    %57 = tpu.matmul %55, %56, %cst_35 {dimension_numbers = #tpu.dot_dimension_numbers<[1], [1], [0], [0], [0, 0, 1, 0], [], []>} : vector<8x8xbf16>, vector<8x8xbf16>, vector<8x8xf32> -> vector<8x8xf32>
    %58 = arith.addf %57, %15 : vector<8x8xf32>
    %c1 = arith.constant 1 : index
    %c0_36 = arith.constant 0 : index
    %c0_37 = arith.constant 0 : index
    %59 = vector.load %arg8[%c1, %c0_36, %c0_37] : memref<4x8x1xf32, #tpu.memory_space<vmem>>, vector<1x8x1xf32>
    %60 = vector.shape_cast %59 : vector<1x8x1xf32> to vector<8x1xf32>
    %cst_38 = arith.constant dense<0xFF800000> : vector<8xf32>
    %61 = vector.multi_reduction <maximumf>, %58, %cst_38 [1] : vector<8x8xf32> to vector<8xf32>
    %62 = vector.shape_cast %61 : vector<8xf32> to vector<8x1xf32>
    %63 = arith.maximumf %60, %62 : vector<8x1xf32>
    %64 = arith.subf %60, %63 : vector<8x1xf32>
    %65 = math.exp %64 : vector<8x1xf32>
    %66 = vector.broadcast %63 : vector<8x1xf32> to vector<8x8xf32>
    %67 = arith.subf %58, %66 : vector<8x8xf32>
    %68 = math.exp %67 : vector<8x8xf32>
    %c1_39 = arith.constant 1 : index
    %c0_40 = arith.constant 0 : index
    %c0_41 = arith.constant 0 : index
    %69 = vector.load %arg9[%c1_39, %c0_40, %c0_41] : memref<4x8x1xf32, #tpu.memory_space<vmem>>, vector<1x8x1xf32>
    %70 = vector.shape_cast %69 : vector<1x8x1xf32> to vector<8x1xf32>
    %71 = arith.mulf %65, %70 : vector<8x1xf32>
    %cst_42 = arith.constant dense<0.000000e+00> : vector<8xf32>
    %72 = vector.multi_reduction <add>, %68, %cst_42 [1] : vector<8x8xf32> to vector<8xf32>
    %73 = vector.shape_cast %72 : vector<8xf32> to vector<8x1xf32>
    %74 = arith.addf %71, %73 : vector<8x1xf32>
    %c1_43 = arith.constant 1 : index
    %c0_44 = arith.constant 0 : index
    %c0_45 = arith.constant 0 : index
    %75 = vector.load %arg9[%c1_43, %c0_44, %c0_45] : memref<4x8x1xf32, #tpu.memory_space<vmem>>, vector<1x8x1xf32>
    %76 = vector.shape_cast %75 : vector<1x8x1xf32> to vector<8x1xf32>
    %77 = vector.shape_cast %74 : vector<8x1xf32> to vector<1x8x1xf32>
    tpu.vector_store %arg9[%c1_43, %c0_44, %c0_45], %77 {strides = array<i32>} : memref<4x8x1xf32, #tpu.memory_space<vmem>>, vector<1x8x1xf32>,
    %78 = arith.truncf %68 : vector<8x8xf32> to vector<8x8xbf16>
    %79 = vector.extract_strided_slice %20 {offsets = [0, 8], sizes = [8, 8], strides = [1, 1]} : vector<8x32xbf16> to vector<8x8xbf16>
    %cst_46 = arith.constant dense<0.000000e+00> : vector<8x8xf32>
    %80 = tpu.matmul %78, %79, %cst_46 {dimension_numbers = #tpu.dot_dimension_numbers<[1], [0], [0], [1], [0, 0, 1, 1], [], []>} : vector<8x8xbf16>, vector<8x8xbf16>, vector<8x8xf32> -> vector<8x8xf32>
    %c0_47 = arith.constant 0 : index
    %c8 = arith.constant 8 : index
    %81 = vector.load %arg10[%c0_47, %c8] : memref<8x32xf32, #tpu.memory_space<vmem>>, vector<8x8xf32>
    %82 = vector.broadcast %65 : vector<8x1xf32> to vector<8x8xf32>
    %83 = arith.mulf %82, %81 : vector<8x8xf32>
    %84 = arith.addf %83, %80 : vector<8x8xf32>
    %c0_48 = arith.constant 0 : index
    %c8_49 = arith.constant 8 : index
    %85 = vector.load %arg10[%c0_48, %c8_49] : memref<8x32xf32, #tpu.memory_space<vmem>>, vector<8x8xf32>
    tpu.vector_store %arg10[%c0_48, %c8_49], %84 {strides = array<i32>} : memref<8x32xf32, #tpu.memory_space<vmem>>, vector<8x8xf32>,
    %c1_50 = arith.constant 1 : index
    %c0_51 = arith.constant 0 : index
    %c0_52 = arith.constant 0 : index
    %86 = vector.load %arg8[%c1_50, %c0_51, %c0_52] : memref<4x8x1xf32, #tpu.memory_space<vmem>>, vector<1x8x1xf32>
    %87 = vector.shape_cast %86 : vector<1x8x1xf32> to vector<8x1xf32>
    %88 = vector.shape_cast %63 : vector<8x1xf32> to vector<1x8x1xf32>
    tpu.vector_store %arg8[%c1_50, %c0_51, %c0_52], %88 {strides = array<i32>} : memref<4x8x1xf32, #tpu.memory_space<vmem>>, vector<1x8x1xf32>,
    %89 = vector.extract_strided_slice %18 {offsets = [0, 16], sizes = [8, 8], strides = [1, 1]} : vector<8x32xbf16> to vector<8x8xbf16>
    %90 = vector.extract_strided_slice %19 {offsets = [0, 16], sizes = [8, 8], strides = [1, 1]} : vector<8x32xbf16> to vector<8x8xbf16>
    %cst_53 = arith.constant dense<0.000000e+00> : vector<8x8xf32>
    %91 = tpu.matmul %89, %90, %cst_53 {dimension_numbers = #tpu.dot_dimension_numbers<[1], [1], [0], [0], [0, 0, 1, 0], [], []>} : vector<8x8xbf16>, vector<8x8xbf16>, vector<8x8xf32> -> vector<8x8xf32>
    %92 = arith.addf %91, %15 : vector<8x8xf32>
    %c2 = arith.constant 2 : index
    %c0_54 = arith.constant 0 : index
    %c0_55 = arith.constant 0 : index
    %93 = vector.load %arg8[%c2, %c0_54, %c0_55] : memref<4x8x1xf32, #tpu.memory_space<vmem>>, vector<1x8x1xf32>
    %94 = vector.shape_cast %93 : vector<1x8x1xf32> to vector<8x1xf32>
    %cst_56 = arith.constant dense<0xFF800000> : vector<8xf32>
    %95 = vector.multi_reduction <maximumf>, %92, %cst_56 [1] : vector<8x8xf32> to vector<8xf32>
    %96 = vector.shape_cast %95 : vector<8xf32> to vector<8x1xf32>
    %97 = arith.maximumf %94, %96 : vector<8x1xf32>
    %98 = arith.subf %94, %97 : vector<8x1xf32>
    %99 = math.exp %98 : vector<8x1xf32>
    %100 = vector.broadcast %97 : vector<8x1xf32> to vector<8x8xf32>
    %101 = arith.subf %92, %100 : vector<8x8xf32>
    %102 = math.exp %101 : vector<8x8xf32>
    %c2_57 = arith.constant 2 : index
    %c0_58 = arith.constant 0 : index
    %c0_59 = arith.constant 0 : index
    %103 = vector.load %arg9[%c2_57, %c0_58, %c0_59] : memref<4x8x1xf32, #tpu.memory_space<vmem>>, vector<1x8x1xf32>
    %104 = vector.shape_cast %103 : vector<1x8x1xf32> to vector<8x1xf32>
    %105 = arith.mulf %99, %104 : vector<8x1xf32>
    %cst_60 = arith.constant dense<0.000000e+00> : vector<8xf32>
    %106 = vector.multi_reduction <add>, %102, %cst_60 [1] : vector<8x8xf32> to vector<8xf32>
    %107 = vector.shape_cast %106 : vector<8xf32> to vector<8x1xf32>
    %108 = arith.addf %105, %107 : vector<8x1xf32>
    %c2_61 = arith.constant 2 : index
    %c0_62 = arith.constant 0 : index
    %c0_63 = arith.constant 0 : index
    %109 = vector.load %arg9[%c2_61, %c0_62, %c0_63] : memref<4x8x1xf32, #tpu.memory_space<vmem>>, vector<1x8x1xf32>
    %110 = vector.shape_cast %109 : vector<1x8x1xf32> to vector<8x1xf32>
    %111 = vector.shape_cast %108 : vector<8x1xf32> to vector<1x8x1xf32>
    tpu.vector_store %arg9[%c2_61, %c0_62, %c0_63], %111 {strides = array<i32>} : memref<4x8x1xf32, #tpu.memory_space<vmem>>, vector<1x8x1xf32>,
    %112 = arith.truncf %102 : vector<8x8xf32> to vector<8x8xbf16>
    %113 = vector.extract_strided_slice %20 {offsets = [0, 16], sizes = [8, 8], strides = [1, 1]} : vector<8x32xbf16> to vector<8x8xbf16>
    %cst_64 = arith.constant dense<0.000000e+00> : vector<8x8xf32>
    %114 = tpu.matmul %112, %113, %cst_64 {dimension_numbers = #tpu.dot_dimension_numbers<[1], [0], [0], [1], [0, 0, 1, 1], [], []>} : vector<8x8xbf16>, vector<8x8xbf16>, vector<8x8xf32> -> vector<8x8xf32>
    %c0_65 = arith.constant 0 : index
    %c16 = arith.constant 16 : index
    %115 = vector.load %arg10[%c0_65, %c16] : memref<8x32xf32, #tpu.memory_space<vmem>>, vector<8x8xf32>
    %116 = vector.broadcast %99 : vector<8x1xf32> to vector<8x8xf32>
    %117 = arith.mulf %116, %115 : vector<8x8xf32>
    %118 = arith.addf %117, %114 : vector<8x8xf32>
    %c0_66 = arith.constant 0 : index
    %c16_67 = arith.constant 16 : index
    %119 = vector.load %arg10[%c0_66, %c16_67] : memref<8x32xf32, #tpu.memory_space<vmem>>, vector<8x8xf32>
    tpu.vector_store %arg10[%c0_66, %c16_67], %118 {strides = array<i32>} : memref<8x32xf32, #tpu.memory_space<vmem>>, vector<8x8xf32>,
    %c2_68 = arith.constant 2 : index
    %c0_69 = arith.constant 0 : index
    %c0_70 = arith.constant 0 : index
    %120 = vector.load %arg8[%c2_68, %c0_69, %c0_70] : memref<4x8x1xf32, #tpu.memory_space<vmem>>, vector<1x8x1xf32>
    %121 = vector.shape_cast %120 : vector<1x8x1xf32> to vector<8x1xf32>
    %122 = vector.shape_cast %97 : vector<8x1xf32> to vector<1x8x1xf32>
    tpu.vector_store %arg8[%c2_68, %c0_69, %c0_70], %122 {strides = array<i32>} : memref<4x8x1xf32, #tpu.memory_space<vmem>>, vector<1x8x1xf32>,
    %123 = vector.extract_strided_slice %18 {offsets = [0, 24], sizes = [8, 8], strides = [1, 1]} : vector<8x32xbf16> to vector<8x8xbf16>
    %124 = vector.extract_strided_slice %19 {offsets = [0, 24], sizes = [8, 8], strides = [1, 1]} : vector<8x32xbf16> to vector<8x8xbf16>
    %cst_71 = arith.constant dense<0.000000e+00> : vector<8x8xf32>
    %125 = tpu.matmul %123, %124, %cst_71 {dimension_numbers = #tpu.dot_dimension_numbers<[1], [1], [0], [0], [0, 0, 1, 0], [], []>} : vector<8x8xbf16>, vector<8x8xbf16>, vector<8x8xf32> -> vector<8x8xf32>
    %126 = arith.addf %125, %15 : vector<8x8xf32>
    %c3 = arith.constant 3 : index
    %c0_72 = arith.constant 0 : index
    %c0_73 = arith.constant 0 : index
    %127 = vector.load %arg8[%c3, %c0_72, %c0_73] : memref<4x8x1xf32, #tpu.memory_space<vmem>>, vector<1x8x1xf32>
    %128 = vector.shape_cast %127 : vector<1x8x1xf32> to vector<8x1xf32>
    %cst_74 = arith.constant dense<0xFF800000> : vector<8xf32>
    %129 = vector.multi_reduction <maximumf>, %126, %cst_74 [1] : vector<8x8xf32> to vector<8xf32>
    %130 = vector.shape_cast %129 : vector<8xf32> to vector<8x1xf32>
    %131 = arith.maximumf %128, %130 : vector<8x1xf32>
    %132 = arith.subf %128, %131 : vector<8x1xf32>
    %133 = math.exp %132 : vector<8x1xf32>
    %134 = vector.broadcast %131 : vector<8x1xf32> to vector<8x8xf32>
    %135 = arith.subf %126, %134 : vector<8x8xf32>
    %136 = math.exp %135 : vector<8x8xf32>
    %c3_75 = arith.constant 3 : index
    %c0_76 = arith.constant 0 : index
    %c0_77 = arith.constant 0 : index
    %137 = vector.load %arg9[%c3_75, %c0_76, %c0_77] : memref<4x8x1xf32, #tpu.memory_space<vmem>>, vector<1x8x1xf32>
    %138 = vector.shape_cast %137 : vector<1x8x1xf32> to vector<8x1xf32>
    %139 = arith.mulf %133, %138 : vector<8x1xf32>
    %cst_78 = arith.constant dense<0.000000e+00> : vector<8xf32>
    %140 = vector.multi_reduction <add>, %136, %cst_78 [1] : vector<8x8xf32> to vector<8xf32>
    %141 = vector.shape_cast %140 : vector<8xf32> to vector<8x1xf32>
    %142 = arith.addf %139, %141 : vector<8x1xf32>
    %c3_79 = arith.constant 3 : index
    %c0_80 = arith.constant 0 : index
    %c0_81 = arith.constant 0 : index
    %143 = vector.load %arg9[%c3_79, %c0_80, %c0_81] : memref<4x8x1xf32, #tpu.memory_space<vmem>>, vector<1x8x1xf32>
    %144 = vector.shape_cast %143 : vector<1x8x1xf32> to vector<8x1xf32>
    %145 = vector.shape_cast %142 : vector<8x1xf32> to vector<1x8x1xf32>
    tpu.vector_store %arg9[%c3_79, %c0_80, %c0_81], %145 {strides = array<i32>} : memref<4x8x1xf32, #tpu.memory_space<vmem>>, vector<1x8x1xf32>,
    %146 = arith.truncf %136 : vector<8x8xf32> to vector<8x8xbf16>
    %147 = vector.extract_strided_slice %20 {offsets = [0, 24], sizes = [8, 8], strides = [1, 1]} : vector<8x32xbf16> to vector<8x8xbf16>
    %cst_82 = arith.constant dense<0.000000e+00> : vector<8x8xf32>
    %148 = tpu.matmul %146, %147, %cst_82 {dimension_numbers = #tpu.dot_dimension_numbers<[1], [0], [0], [1], [0, 0, 1, 1], [], []>} : vector<8x8xbf16>, vector<8x8xbf16>, vector<8x8xf32> -> vector<8x8xf32>
    %c0_83 = arith.constant 0 : index
    %c24 = arith.constant 24 : index
    %149 = vector.load %arg10[%c0_83, %c24] : memref<8x32xf32, #tpu.memory_space<vmem>>, vector<8x8xf32>
    %150 = vector.broadcast %133 : vector<8x1xf32> to vector<8x8xf32>
    %151 = arith.mulf %150, %149 : vector<8x8xf32>
    %152 = arith.addf %151, %148 : vector<8x8xf32>
    %c0_84 = arith.constant 0 : index
    %c24_85 = arith.constant 24 : index
    %153 = vector.load %arg10[%c0_84, %c24_85] : memref<8x32xf32, #tpu.memory_space<vmem>>, vector<8x8xf32>
    tpu.vector_store %arg10[%c0_84, %c24_85], %152 {strides = array<i32>} : memref<8x32xf32, #tpu.memory_space<vmem>>, vector<8x8xf32>,
    %c3_86 = arith.constant 3 : index
    %c0_87 = arith.constant 0 : index
    %c0_88 = arith.constant 0 : index
    %154 = vector.load %arg8[%c3_86, %c0_87, %c0_88] : memref<4x8x1xf32, #tpu.memory_space<vmem>>, vector<1x8x1xf32>
    %155 = vector.shape_cast %154 : vector<1x8x1xf32> to vector<8x1xf32>
    %156 = vector.shape_cast %131 : vector<8x1xf32> to vector<1x8x1xf32>
    tpu.vector_store %arg8[%c3_86, %c0_87, %c0_88], %156 {strides = array<i32>} : memref<4x8x1xf32, #tpu.memory_space<vmem>>, vector<1x8x1xf32>,
    %c0_i32_89 = arith.constant 0 : i32
    %157 = arith.cmpi eq, %arg2, %c0_i32_89 : i32
    %158 = arith.extui %157 : i1 to i32
    %c0_i32_90 = arith.constant 0 : i32
    %159 = arith.cmpi ne, %158, %c0_i32_90 : i32
    scf.if %159 {
      %c0_91 = arith.constant 0 : index
      %c0_92 = arith.constant 0 : index
      %c0_93 = arith.constant 0 : index
      %160 = vector.load %arg9[%c0_91, %c0_92, %c0_93] : memref<4x8x1xf32, #tpu.memory_space<vmem>>, vector<1x8x1xf32>
      %161 = vector.shape_cast %160 : vector<1x8x1xf32> to vector<8x1xf32>
      %162 = tpu.reciprocal %161 {approx = true} : vector<8x1xf32> -> vector<8x1xf32>
      %163 = vector.shape_cast %162 : vector<8x1xf32> to vector<8x1xf32>
      %164 = vector.broadcast %163 : vector<8x1xf32> to vector<8x8xf32>
      %c1_94 = arith.constant 1 : index
      %c0_95 = arith.constant 0 : index
      %c0_96 = arith.constant 0 : index
      %165 = vector.load %arg9[%c1_94, %c0_95, %c0_96] : memref<4x8x1xf32, #tpu.memory_space<vmem>>, vector<1x8x1xf32>
      %166 = vector.shape_cast %165 : vector<1x8x1xf32> to vector<8x1xf32>
      %167 = tpu.reciprocal %166 {approx = true} : vector<8x1xf32> -> vector<8x1xf32>
      %168 = vector.shape_cast %167 : vector<8x1xf32> to vector<8x1xf32>
      %169 = vector.broadcast %168 : vector<8x1xf32> to vector<8x8xf32>
      %c2_97 = arith.constant 2 : index
      %c0_98 = arith.constant 0 : index
      %c0_99 = arith.constant 0 : index
      %170 = vector.load %arg9[%c2_97, %c0_98, %c0_99] : memref<4x8x1xf32, #tpu.memory_space<vmem>>, vector<1x8x1xf32>
      %171 = vector.shape_cast %170 : vector<1x8x1xf32> to vector<8x1xf32>
      %172 = tpu.reciprocal %171 {approx = true} : vector<8x1xf32> -> vector<8x1xf32>
      %173 = vector.shape_cast %172 : vector<8x1xf32> to vector<8x1xf32>
      %174 = vector.broadcast %173 : vector<8x1xf32> to vector<8x8xf32>
      %c3_100 = arith.constant 3 : index
      %c0_101 = arith.constant 0 : index
      %c0_102 = arith.constant 0 : index
      %175 = vector.load %arg9[%c3_100, %c0_101, %c0_102] : memref<4x8x1xf32, #tpu.memory_space<vmem>>, vector<1x8x1xf32>
      %176 = vector.shape_cast %175 : vector<1x8x1xf32> to vector<8x1xf32>
      %177 = tpu.reciprocal %176 {approx = true} : vector<8x1xf32> -> vector<8x1xf32>
      %178 = vector.shape_cast %177 : vector<8x1xf32> to vector<8x1xf32>
      %179 = vector.broadcast %178 : vector<8x1xf32> to vector<8x8xf32>
      %c0_103 = arith.constant 0 : index
      %c0_104 = arith.constant 0 : index
      %180 = vector.load %arg10[%c0_103, %c0_104] : memref<8x32xf32, #tpu.memory_space<vmem>>, vector<8x32xf32>
      %181 = tpu.concatenate %164, %169, %174, %179 in 1 : vector<8x8xf32>, vector<8x8xf32>, vector<8x8xf32>, vector<8x8xf32> -> vector<8x32xf32>
      %182 = arith.mulf %180, %181 : vector<8x32xf32>
      %c0_105 = arith.constant 0 : index
      %c0_106 = arith.constant 0 : index
      %c0_107 = arith.constant 0 : index
      %183 = vector.load %arg7[%c0_105, %c0_106, %c0_107] : memref<1x8x32xf32, #tpu.memory_space<vmem>>, vector<1x8x32xf32>
      %184 = vector.shape_cast %183 : vector<1x8x32xf32> to vector<8x32xf32>
      %185 = vector.shape_cast %182 : vector<8x32xf32> to vector<1x8x32xf32>
      tpu.vector_store %arg7[%c0_105, %c0_106, %c0_107], %185 {strides = array<i32>} : memref<1x8x32xf32, #tpu.memory_space<vmem>>, vector<1x8x32xf32>,
    } else {
    }
    return
  }
  func.func @transform_0(%arg0: i32, %arg1: i32, %arg2: i32) -> (i32, i32, i32) {
    %c0_i32 = arith.constant 0 : i32
    %c0_i32_0 = arith.constant 0 : i32
    return %arg0, %arg1, %c0_i32 : i32, i32, i32
  }
  func.func @transform_1(%arg0: i32, %arg1: i32, %arg2: i32) -> (i32, i32, i32) {
    %c0_i32 = arith.constant 0 : i32
    %c0_i32_0 = arith.constant 0 : i32
    return %arg0, %arg2, %c0_i32 : i32, i32, i32
  }
  func.func @transform_2(%arg0: i32, %arg1: i32, %arg2: i32) -> (i32, i32, i32) {
    %c0_i32 = arith.constant 0 : i32
    %c0_i32_0 = arith.constant 0 : i32
    return %arg0, %arg2, %c0_i32 : i32, i32, i32
  }
  func.func @transform_3(%arg0: i32, %arg1: i32, %arg2: i32) -> (i32, i32, i32) {
    %c0_i32 = arith.constant 0 : i32
    %c0_i32_0 = arith.constant 0 : i32
    return %c0_i32, %arg1, %arg2 : i32, i32, i32
  }
  func.func @transform_4(%arg0: i32, %arg1: i32, %arg2: i32) -> (i32, i32, i32) {
    %c0_i32 = arith.constant 0 : i32
    %c0_i32_0 = arith.constant 0 : i32
    return %arg0, %arg1, %c0_i32 : i32, i32, i32
  }
}

module attributes {stable_mosaic.version = 11 : i64} {
  func.func @_linear_kernel(%arg0: i32, %arg1: i32, %arg2: i32, %arg3: memref<16x32xf32, #tpu.memory_space<vmem>>, %arg4: memref<32x50xbf16, #tpu.memory_space<vmem>>, %arg5: memref<1x50xf32, #tpu.memory_space<vmem>>, %arg6: memref<16x50xf32, #tpu.memory_space<vmem>>, %arg7: memref<16x50xf32, #tpu.memory_space<vmem>>) attributes {dimension_semantics = [#tpu.dimension_semantics<parallel>, #tpu.dimension_semantics<parallel>, #tpu.dimension_semantics<arbitrary>], iteration_bounds = array<i64: 1, 1, 1>, scalar_prefetch = 0 : i64, scratch_operands = 1 : i64, tpu.core_type = #tpu.core_type<tc>, window_params = [{transform_indices = @transform_0, window_bounds = array<i64: 16, 32>}, {transform_indices = @transform_1, window_bounds = array<i64: 32, 50>}, {transform_indices = @transform_2, window_bounds = array<i64: 1, 50>}, {transform_indices = @transform_3, window_bounds = array<i64: 16, 50>}]} {
    %c0_i32 = arith.constant 0 : i32
    %0 = arith.cmpi eq, %arg2, %c0_i32 : i32
    %1 = arith.extui %0 : i1 to i32
    %c0_i32_0 = arith.constant 0 : i32
    %2 = arith.cmpi ne, %1, %c0_i32_0 : i32
    scf.if %2 {
      %cst_10 = arith.constant 0.000000e+00 : f32
      %13 = vector.broadcast %cst_10 : f32 to vector<16x50xf32>
      %c0_11 = arith.constant 0 : index
      %c0_12 = arith.constant 0 : index
      %14 = vector.load %arg7[%c0_11, %c0_12] : memref<16x50xf32, #tpu.memory_space<vmem>>, vector<16x50xf32>
      tpu.vector_store %arg7[%c0_11, %c0_12], %13 {strides = array<i32>} : memref<16x50xf32, #tpu.memory_space<vmem>>, vector<16x50xf32>,
    } else {
    }
    %c0 = arith.constant 0 : index
    %c0_1 = arith.constant 0 : index
    %3 = vector.load %arg7[%c0, %c0_1] : memref<16x50xf32, #tpu.memory_space<vmem>>, vector<16x50xf32>
    %c0_2 = arith.constant 0 : index
    %c0_3 = arith.constant 0 : index
    %4 = vector.load %arg3[%c0_2, %c0_3] : memref<16x32xf32, #tpu.memory_space<vmem>>, vector<16x32xf32>
    %5 = arith.truncf %4 : vector<16x32xf32> to vector<16x32xbf16>
    %c0_4 = arith.constant 0 : index
    %c0_5 = arith.constant 0 : index
    %6 = vector.load %arg4[%c0_4, %c0_5] : memref<32x50xbf16, #tpu.memory_space<vmem>>, vector<32x50xbf16>
    %cst = arith.constant dense<0.000000e+00> : vector<16x50xf32>
    %7 = tpu.matmul %5, %6, %cst {dimension_numbers = #tpu.dot_dimension_numbers<[1], [0], [0], [1], [0, 0, 1, 1], [], []>} : vector<16x32xbf16>, vector<32x50xbf16>, vector<16x50xf32> -> vector<16x50xf32>
    %8 = arith.addf %3, %7 : vector<16x50xf32>
    %c0_6 = arith.constant 0 : index
    %c0_7 = arith.constant 0 : index
    %9 = vector.load %arg7[%c0_6, %c0_7] : memref<16x50xf32, #tpu.memory_space<vmem>>, vector<16x50xf32>
    tpu.vector_store %arg7[%c0_6, %c0_7], %8 {strides = array<i32>} : memref<16x50xf32, #tpu.memory_space<vmem>>, vector<16x50xf32>,
    %c0_i32_8 = arith.constant 0 : i32
    %10 = arith.cmpi eq, %arg2, %c0_i32_8 : i32
    %11 = arith.extui %10 : i1 to i32
    %c0_i32_9 = arith.constant 0 : i32
    %12 = arith.cmpi ne, %11, %c0_i32_9 : i32
    scf.if %12 {
      %c0_10 = arith.constant 0 : index
      %c0_11 = arith.constant 0 : index
      %13 = vector.load %arg7[%c0_10, %c0_11] : memref<16x50xf32, #tpu.memory_space<vmem>>, vector<16x50xf32>
      %c0_12 = arith.constant 0 : index
      %c0_13 = arith.constant 0 : index
      %14 = vector.load %arg5[%c0_12, %c0_13] : memref<1x50xf32, #tpu.memory_space<vmem>>, vector<1x50xf32>
      %15 = vector.broadcast %14 : vector<1x50xf32> to vector<16x50xf32>
      %16 = arith.addf %13, %15 : vector<16x50xf32>
      %c0_14 = arith.constant 0 : index
      %c0_15 = arith.constant 0 : index
      %17 = vector.load %arg6[%c0_14, %c0_15] : memref<16x50xf32, #tpu.memory_space<vmem>>, vector<16x50xf32>
      tpu.vector_store %arg6[%c0_14, %c0_15], %16 {strides = array<i32>} : memref<16x50xf32, #tpu.memory_space<vmem>>, vector<16x50xf32>,
    } else {
    }
    return
  }
  func.func @transform_0(%arg0: i32, %arg1: i32, %arg2: i32) -> (i32, i32) {
    %c0_i32 = arith.constant 0 : i32
    return %arg0, %arg2 : i32, i32
  }
  func.func @transform_1(%arg0: i32, %arg1: i32, %arg2: i32) -> (i32, i32) {
    %c0_i32 = arith.constant 0 : i32
    return %arg2, %arg1 : i32, i32
  }
  func.func @transform_2(%arg0: i32, %arg1: i32, %arg2: i32) -> (i32, i32) {
    %c0_i32 = arith.constant 0 : i32
    %c0_i32_0 = arith.constant 0 : i32
    return %c0_i32, %arg1 : i32, i32
  }
  func.func @transform_3(%arg0: i32, %arg1: i32, %arg2: i32) -> (i32, i32) {
    %c0_i32 = arith.constant 0 : i32
    return %arg0, %arg1 : i32, i32
  }
}

</mosaic_0001>

<llo_original>
// kernel: transformer_forward.27
$region0: #{transformer_forward.27}
  #allocation0 [shape = 'u32[]', space=smem, size = 0x4, offset = 0x4, fixed_abs, tag = 'smem constant byte address 0x4 - core index']
  #allocation1 [shape = 'u32[72,128]{1,0:T(1,128)}', space=vmem, size = 0x9000, scoped, tag = 'internal scratch']
  #allocation2 [shape = 'f32[16,32]{1,0:T(8,128)}', space=vmem, size = 0x2000, scoped, tag = 'scratch operand']
  %s0 = inlined_call_operand.vmem [shape: f32[16,32], index: 0, kind: input, shape index: {}]
  %s1 = inlined_call_operand.vmem [shape: bf16[32,32], index: 1, kind: input, shape index: {}]
  %s2 = inlined_call_operand.vmem [shape: f32[1,32], index: 2, kind: input, shape index: {}]
  %s3 = inlined_call_operand.vmem [shape: f32[16,32], index: 3, kind: input, shape index: {}]
  %s4 = inlined_call_operand.vmem [shape: f32[1,32], index: 4, kind: input, shape index: {}]
  %s5 = inlined_call_operand.vmem [shape: f32[1,32], index: 5, kind: input, shape index: {}]
  %s6 = inlined_call_operand.vmem [shape: f32[16,32], index: 6, kind: output, shape index: {}]
  %s7 = sld [smem:[#allocation0]]
  $region42: #{transformer_forward.27} parent=0
    _
  %s9 = ssub.s32 1, %s7
  %s10 = scalar_select 0, %s9, %s7
  // Predicated region
  $region2: #{transformer_forward.27} parent=0 // pred_check
    _
  $region3: #{transformer_forward.27} parent=0 // pred_check_branch
    %12 = sbr.rel (0) target = $region5
  $region4: #{transformer_forward.27} parent=0 // pred_region
    _
  $region5: #{transformer_forward.27} parent=0 // pred_fallthru
    _
  // Predicated region
  $region6: #{transformer_forward.27} parent=0 // pred_check
    _
  $region7: #{transformer_forward.27} parent=0 // pred_check_branch
    %14 = sbr.rel (0) target = $region9
  $region8: #{transformer_forward.27} parent=0 // pred_region
    _
  $region9: #{transformer_forward.27} parent=0 // pred_fallthru
    _
  // Predicated region
  $region10: #{transformer_forward.27} parent=0 // pred_check
    _
  $region11: #{transformer_forward.27} parent=0 // pred_check_branch
    %16 = sbr.rel (0) target = $region13
  $region12: #{transformer_forward.27} parent=0 // pred_region
    _
  $region13: #{transformer_forward.27} parent=0 // pred_fallthru
    _
  // Predicated region
  $region14: #{transformer_forward.27} parent=0 // pred_check
    _
  $region15: #{transformer_forward.27} parent=0 // pred_check_branch
    %18 = sbr.rel (0) target = $region17
  $region16: #{transformer_forward.27} parent=0 // pred_region
    _
  $region17: #{transformer_forward.27} parent=0 // pred_fallthru
    _
  // Predicated region
  $region18: #{transformer_forward.27} parent=0 // pred_check
    _
  $region19: #{transformer_forward.27} parent=0 // pred_check_branch
    %20 = sbr.rel (0) target = $region21
  $region20: #{transformer_forward.27} parent=0 // pred_region
    _
  $region21: #{transformer_forward.27} parent=0 // pred_fallthru
    _
  // Predicated region
  $region22: #{transformer_forward.27} parent=0 // pred_check
    _
  $region23: #{transformer_forward.27} parent=0 // pred_check_branch
    %22 = sbr.rel (0) target = $region25
  $region24: #{transformer_forward.27} parent=0 // pred_region
    _
  $region25: #{transformer_forward.27} parent=0 // pred_fallthru
    _
  %p24 = scmp.eq.s32.totalorder 0, 0
  // Predicated region
  $region26: #{transformer_forward.27} parent=0 // pred_check
    %p25 = pneg %p24
  $region27: #{transformer_forward.27} parent=0 // pred_check_branch
    %27 = sbr.rel (%p25) target = $region29
  $region28: #{transformer_forward.27} parent=0 // pred_region
    %vm28 = vcmask 261120
    %29 = vst.msk [vmem:[#allocation2] sm:$0xff] %vm28, 0.0
    %30 = vst.msk [vmem:[#allocation2 + $0x8] sm:$0xff] %vm28, 0.0
  $region29: #{transformer_forward.27} parent=0 // pred_fallthru
    _
  %v31 = vld [vmem:[#allocation2] sm:$0xff]
  %v32 = vld [vmem:[#allocation2 + $0x8] sm:$0xff]
  %v33 = vld [vmem:[%s0] sm:$0xff]
  %v34 = vld [vmem:[%s0 + $0x8] sm:$0xff]
  %v35 = vpack.c.bf16 %v34, %v33
  %v36 = vld [vmem:[%s1] sm:$0xf]
  %v37 = vld [vmem:[%s1 + $0x4] sm:$0xf]
  %v38 = vld [vmem:[%s1 + $0x8] sm:$0xf]
  %v39 = vld [vmem:[%s1 + $0xc] sm:$0xf]
  %v44 = vunpack.c.l.b16 %v36
  %v45 = vunpack.c.l.b16 %v37
  %v46 = vunpack.c.l.b16 %v38
  %v47 = vunpack.c.l.b16 %v39
  %v48 = vpack.c.b16 %v45, %v44
  %v49 = vpack.c.b16 %v47, %v46
  %vm52 = vcmask 261120
  %v54 = vsel %vm52, %v35, 0
  %56 = vmatpush.bf16.msra.mxu0 0
  %57 = vmatpush.bf16.msra.mxu0 0
  %58 = vmatpush.bf16.msra.mxu0 0
  %59 = vmatpush.bf16.msra.mxu0 0
  %60 = vmatpush.bf16.msra.mxu0 0
  %61 = vmatpush.bf16.msra.mxu0 0
  %62 = vmatpush.bf16.msra.mxu0 %v49
  %63 = vmatpush.bf16.msra.mxu0 %v48
  %64 = vmatmul.bf16.gmra.mxu0 %v54
  %v65 = vpop.f32.mrf.mxu0
  %v66 = vadd.f32 0.0, %v65
  %v67 = vpop.f32.mrf.mxu0
  %v68 = vadd.f32 0.0, %v67
  %69 = vdwg.mxu0
  %v70 = vadd.f32 %v31, %v66
  %v71 = vadd.f32 %v32, %v68
  %72 = vst.msk [vmem:[#allocation2] sm:$0xff] %vm52, %v70
  %73 = vst.msk [vmem:[#allocation2 + $0x8] sm:$0xff] %vm52, %v71
  // Predicated region
  $region30: #{transformer_forward.27} parent=0 // pred_check
    %p74 = pneg %p24
  $region31: #{transformer_forward.27} parent=0 // pred_check_branch
    %76 = sbr.rel (%p74) target = $region33
  $region32: #{transformer_forward.27} parent=0 // pred_region
    %v77 = vld [vmem:[#allocation2] sm:$0xff]
    %v78 = vld [vmem:[#allocation2 + $0x8] sm:$0xff]
    %v79 = vld [vmem:[%s2] sm:$0x1]
    %v81 = vperm.slane %v79, 0
    %v83 = vadd.f32 %v77, %v81
    %v84 = vadd.f32 %v78, %v81
    %v85 = vld [vmem:[%s3] sm:$0xff]
    %v86 = vld [vmem:[%s3 + $0x8] sm:$0xff]
    %v87 = vadd.f32 %v83, %v85
    %v88 = vadd.f32 %v84, %v86
    %v89 = vsel %vm52, %v87, 0.0
    %90 = vadd.xlane.f32.xlu0 %v89
    %v91 = vpop.xlane.xlu0 %90
    %v92 = vsel %vm52, %v88, 0.0
    %93 = vadd.xlane.f32.xlu0 %v92
    %v94 = vpop.xlane.xlu0 %93
    %v95 = vrcp.pop 32.0
    %v96 = vmul.f32 32.0, %v95
    %v97 = vsub.f32 1.0, %v96
    %v98 = vmul.f32 %v95, %v97
    %v99 = vadd.f32 %v95, %v98
    %vm100 = vweird.f32 %v95
    %v101 = vsel %vm100, %v95, %v99
    %v102 = vmul.f32 %v91, %v101
    %v103 = vmul.f32 %v94, %v101
    %v104 = vsub.f32 %v87, %v102
    %v105 = vsub.f32 %v88, %v103
    %v106 = vmul.f32 %v104, %v104
    %v107 = vmul.f32 %v105, %v105
    %v108 = vsel %vm52, %v106, 0.0
    %109 = vadd.xlane.f32.xlu0 %v108
    %v110 = vpop.xlane.xlu0 %109
    %v111 = vsel %vm52, %v107, 0.0
    %112 = vadd.xlane.f32.xlu0 %v111
    %v113 = vpop.xlane.xlu0 %112
    %v114 = vmul.f32 %v110, %v101
    %v115 = vmul.f32 %v113, %v101
    %v116 = vadd.f32 %v114, 1e-05
    %v117 = vadd.f32 %v115, 1e-05
    %v118 = vrsqrt.pop %v116
    %v119 = vmul.f32 %v118, %v116
    %v120 = vmul.f32 %v119, %v118
    %v121 = vmul.f32 0.5, %v120
    %v122 = vsub.f32 1.5, %v121
    %v123 = vmul.f32 %v118, %v122
    %vm124 = vweird.f32 %v116
    %vm125 = vweird.f32 %v118
    %vm126 = vmor %vm124, %vm125
    %v127 = vsel %vm126, %v118, %v123
    %v128 = vrsqrt.pop %v117
    %v129 = vmul.f32 %v128, %v117
    %v130 = vmul.f32 %v129, %v128
    %v131 = vmul.f32 0.5, %v130
    %v132 = vsub.f32 1.5, %v131
    %v133 = vmul.f32 %v128, %v132
    %vm134 = vweird.f32 %v117
    %vm135 = vweird.f32 %v128
    %vm136 = vmor %vm134, %vm135
    %v137 = vsel %vm136, %v128, %v133
    %v138 = vmul.f32 %v104, %v127
    %v139 = vmul.f32 %v105, %v137
    %v140 = vld [vmem:[%s4] sm:$0x1]
    %v142 = vperm.slane %v140, 0
    %v144 = vmul.f32 %v138, %v142
    %v145 = vmul.f32 %v139, %v142
    %v146 = vld [vmem:[%s5] sm:$0x1]
    %v148 = vperm.slane %v146, 0
    %v150 = vadd.f32 %v144, %v148
    %v151 = vadd.f32 %v145, %v148
    %152 = vst.msk [vmem:[%s6] sm:$0xff] %vm52, %v150
    %153 = vst.msk [vmem:[%s6 + $0x8] sm:$0xff] %vm52, %v151
  $region33: #{transformer_forward.27} parent=0 // pred_fallthru
    _
  // Predicated region
  $region34: #{transformer_forward.27} parent=0 // pred_check
    _
  $region35: #{transformer_forward.27} parent=0 // pred_check_branch
    %155 = sbr.rel (0) target = $region37
  $region36: #{transformer_forward.27} parent=0 // pred_region
    _
  $region37: #{transformer_forward.27} parent=0 // pred_fallthru
    _
  // Predicated region
  $region38: #{transformer_forward.27} parent=0 // pred_check
    _
  $region39: #{transformer_forward.27} parent=0 // pred_check_branch
    %157 = sbr.rel (0) target = $region41
  $region40: #{transformer_forward.27} parent=0 // pred_region
    _
  $region41: #{transformer_forward.27} parent=0 // pred_fallthru
    _

// kernel: transformer_forward.28
$region0: #{transformer_forward.28}
  #allocation0 [shape = 'u32[]', space=smem, size = 0x4, offset = 0x4, fixed_abs, tag = 'smem constant byte address 0x4 - core index']
  #allocation1 [shape = 'u32[72,128]{1,0:T(1,128)}', space=vmem, size = 0x9000, scoped, tag = 'internal scratch']
  #allocation2 [shape = 'f32[16,32]{1,0:T(8,128)}', space=vmem, size = 0x2000, scoped, tag = 'scratch operand']
  %s0 = inlined_call_operand.vmem [shape: f32[16,32], index: 0, kind: input, shape index: {}]
  %s1 = inlined_call_operand.vmem [shape: bf16[32,64], index: 1, kind: input, shape index: {}]
  %s2 = inlined_call_operand.vmem [shape: f32[1,64], index: 2, kind: input, shape index: {}]
  %s3 = inlined_call_operand.vmem [shape: bf16[64,32], index: 3, kind: input, shape index: {}]
  %s4 = inlined_call_operand.vmem [shape: f32[1,32], index: 4, kind: input, shape index: {}]
  %s5 = inlined_call_operand.vmem [shape: f32[1,32], index: 5, kind: input, shape index: {}]
  %s6 = inlined_call_operand.vmem [shape: f32[1,32], index: 6, kind: input, shape index: {}]
  %s7 = inlined_call_operand.vmem [shape: f32[16,32], index: 7, kind: output, shape index: {}]
  %s8 = sld [smem:[#allocation0]]
  $region46: #{transformer_forward.28} parent=0
    _
  %s10 = ssub.s32 1, %s8
  %s11 = scalar_select 0, %s10, %s8
  // Predicated region
  $region2: #{transformer_forward.28} parent=0 // pred_check
    _
  $region3: #{transformer_forward.28} parent=0 // pred_check_branch
    %13 = sbr.rel (0) target = $region5
  $region4: #{transformer_forward.28} parent=0 // pred_region
    _
  $region5: #{transformer_forward.28} parent=0 // pred_fallthru
    _
  // Predicated region
  $region6: #{transformer_forward.28} parent=0 // pred_check
    _
  $region7: #{transformer_forward.28} parent=0 // pred_check_branch
    %15 = sbr.rel (0) target = $region9
  $region8: #{transformer_forward.28} parent=0 // pred_region
    _
  $region9: #{transformer_forward.28} parent=0 // pred_fallthru
    _
  // Predicated region
  $region10: #{transformer_forward.28} parent=0 // pred_check
    _
  $region11: #{transformer_forward.28} parent=0 // pred_check_branch
    %17 = sbr.rel (0) target = $region13
  $region12: #{transformer_forward.28} parent=0 // pred_region
    _
  $region13: #{transformer_forward.28} parent=0 // pred_fallthru
    _
  // Predicated region
  $region14: #{transformer_forward.28} parent=0 // pred_check
    _
  $region15: #{transformer_forward.28} parent=0 // pred_check_branch
    %19 = sbr.rel (0) target = $region17
  $region16: #{transformer_forward.28} parent=0 // pred_region
    _
  $region17: #{transformer_forward.28} parent=0 // pred_fallthru
    _
  // Predicated region
  $region18: #{transformer_forward.28} parent=0 // pred_check
    _
  $region19: #{transformer_forward.28} parent=0 // pred_check_branch
    %21 = sbr.rel (0) target = $region21
  $region20: #{transformer_forward.28} parent=0 // pred_region
    _
  $region21: #{transformer_forward.28} parent=0 // pred_fallthru
    _
  // Predicated region
  $region22: #{transformer_forward.28} parent=0 // pred_check
    _
  $region23: #{transformer_forward.28} parent=0 // pred_check_branch
    %23 = sbr.rel (0) target = $region25
  $region24: #{transformer_forward.28} parent=0 // pred_region
    _
  $region25: #{transformer_forward.28} parent=0 // pred_fallthru
    _
  // Predicated region
  $region26: #{transformer_forward.28} parent=0 // pred_check
    _
  $region27: #{transformer_forward.28} parent=0 // pred_check_branch
    %25 = sbr.rel (0) target = $region29
  $region28: #{transformer_forward.28} parent=0 // pred_region
    _
  $region29: #{transformer_forward.28} parent=0 // pred_fallthru
    _
  %p27 = scmp.eq.s32.totalorder 0, 0
  // Predicated region
  $region30: #{transformer_forward.28} parent=0 // pred_check
    %p28 = pneg %p27
  $region31: #{transformer_forward.28} parent=0 // pred_check_branch
    %30 = sbr.rel (%p28) target = $region33
  $region32: #{transformer_forward.28} parent=0 // pred_region
    %vm31 = vcmask 261120
    %32 = vst.msk [vmem:[#allocation2] sm:$0xff] %vm31, 0.0
    %33 = vst.msk [vmem:[#allocation2 + $0x8] sm:$0xff] %vm31, 0.0
  $region33: #{transformer_forward.28} parent=0 // pred_fallthru
    _
  %v34 = vld [vmem:[%s0] sm:$0xff]
  %v35 = vld [vmem:[%s0 + $0x8] sm:$0xff]
  %v36 = vpack.c.bf16 %v35, %v34
  %v37 = vld [vmem:[%s1] sm:$0xf]
  %v38 = vld [vmem:[%s1 + $0x4] sm:$0xf]
  %v39 = vld [vmem:[%s1 + $0x8] sm:$0xf]
  %v40 = vld [vmem:[%s1 + $0xc] sm:$0xf]
  %v41 = vld [vmem:[%s2] sm:$0x1]
  %v43 = vperm.slane %v41, 0
  %v49 = vunpack.c.l.b16 %v37
  %v50 = vunpack.c.l.b16 %v38
  %v51 = vunpack.c.l.b16 %v39
  %v52 = vunpack.c.l.b16 %v40
  %v53 = vpack.c.b16 %v50, %v49
  %v54 = vpack.c.b16 %v52, %v51
  %vm57 = vcmask 261120
  %v59 = vsel %vm57, %v36, 0
  %61 = vmatpush.bf16.msra.mxu0 0
  %62 = vmatpush.bf16.msra.mxu0 0
  %63 = vmatpush.bf16.msra.mxu0 0
  %64 = vmatpush.bf16.msra.mxu0 0
  %65 = vmatpush.bf16.msra.mxu0 0
  %66 = vmatpush.bf16.msra.mxu0 0
  %67 = vmatpush.bf16.msra.mxu0 %v54
  %68 = vmatpush.bf16.msra.mxu0 %v53
  %69 = vmatmul.bf16.gmra.mxu0 %v59
  %v70 = vpop.f32.mrf.mxu0
  %v71 = vadd.f32 %v43, %v70
  %v72 = vpop.f32.mrf.mxu0
  %v73 = vadd.f32 %v43, %v72
  %74 = vdwg.mxu0
  %v75 = vmax.f32 %v71, 0.0
  %v76 = vmax.f32 %v73, 0.0
  %v77 = vld [vmem:[#allocation2] sm:$0xff]
  %v78 = vld [vmem:[#allocation2 + $0x8] sm:$0xff]
  %v79 = vpack.c.bf16 %v76, %v75
  %v80 = vld [vmem:[%s3] sm:$0xf]
  %v81 = vld [vmem:[%s3 + $0x4] sm:$0xf]
  %v82 = vld [vmem:[%s3 + $0x8] sm:$0xf]
  %v83 = vld [vmem:[%s3 + $0xc] sm:$0xf]
  %v84 = vld [vmem:[%s3 + $0x10] sm:$0xf]
  %v85 = vld [vmem:[%s3 + $0x14] sm:$0xf]
  %v86 = vld [vmem:[%s3 + $0x18] sm:$0xf]
  %v87 = vld [vmem:[%s3 + $0x1c] sm:$0xf]
  %v96 = vunpack.c.l.b16 %v80
  %v97 = vunpack.c.l.b16 %v81
  %v98 = vunpack.c.l.b16 %v82
  %v99 = vunpack.c.l.b16 %v83
  %v100 = vunpack.c.l.b16 %v84
  %v101 = vunpack.c.l.b16 %v85
  %v102 = vunpack.c.l.b16 %v86
  %v103 = vunpack.c.l.b16 %v87
  %v104 = vpack.c.b16 %v97, %v96
  %v105 = vpack.c.b16 %v99, %v98
  %v106 = vpack.c.b16 %v101, %v100
  %v107 = vpack.c.b16 %v103, %v102
  %vm112 = vcmask 523264
  %v114 = vsel %vm112, %v79, 0
  %116 = vmatpush.bf16.msra.mxu0 0
  %117 = vmatpush.bf16.msra.mxu0 0
  %118 = vmatpush.bf16.msra.mxu0 0
  %119 = vmatpush.bf16.msra.mxu0 0
  %120 = vmatpush.bf16.msra.mxu0 %v107
  %121 = vmatpush.bf16.msra.mxu0 %v106
  %122 = vmatpush.bf16.msra.mxu0 %v105
  %123 = vmatpush.bf16.msra.mxu0 %v104
  %124 = vmatmul.bf16.gmra.mxu0 %v114
  %v125 = vpop.f32.mrf.mxu0
  %v126 = vadd.f32 0.0, %v125
  %v127 = vpop.f32.mrf.mxu0
  %v128 = vadd.f32 0.0, %v127
  %129 = vdwg.mxu0
  %v130 = vadd.f32 %v77, %v126
  %v131 = vadd.f32 %v78, %v128
  %132 = vst.msk [vmem:[#allocation2] sm:$0xff] %vm57, %v130
  %133 = vst.msk [vmem:[#allocation2 + $0x8] sm:$0xff] %vm57, %v131
  // Predicated region
  $region34: #{transformer_forward.28} parent=0 // pred_check
    %p134 = pneg %p27
  $region35: #{transformer_forward.28} parent=0 // pred_check_branch
    %136 = sbr.rel (%p134) target = $region37
  $region36: #{transformer_forward.28} parent=0 // pred_region
    %v137 = vld [vmem:[#allocation2] sm:$0xff]
    %v138 = vld [vmem:[#allocation2 + $0x8] sm:$0xff]
    %v139 = vld [vmem:[%s4] sm:$0x1]
    %v141 = vperm.slane %v139, 0
    %v143 = vadd.f32 %v137, %v141
    %v144 = vadd.f32 %v138, %v141
    %v145 = vld [vmem:[%s0] sm:$0xff]
    %v146 = vld [vmem:[%s0 + $0x8] sm:$0xff]
    %v147 = vadd.f32 %v143, %v145
    %v148 = vadd.f32 %v144, %v146
    %v149 = vsel %vm57, %v147, 0.0
    %150 = vadd.xlane.f32.xlu0 %v149
    %v151 = vpop.xlane.xlu0 %150
    %v152 = vsel %vm57, %v148, 0.0
    %153 = vadd.xlane.f32.xlu0 %v152
    %v154 = vpop.xlane.xlu0 %153
    %v155 = vrcp.pop 32.0
    %v156 = vmul.f32 32.0, %v155
    %v157 = vsub.f32 1.0, %v156
    %v158 = vmul.f32 %v155, %v157
    %v159 = vadd.f32 %v155, %v158
    %vm160 = vweird.f32 %v155
    %v161 = vsel %vm160, %v155, %v159
    %v162 = vmul.f32 %v151, %v161
    %v163 = vmul.f32 %v154, %v161
    %v164 = vsub.f32 %v147, %v162
    %v165 = vsub.f32 %v148, %v163
    %v166 = vmul.f32 %v164, %v164
    %v167 = vmul.f32 %v165, %v165
    %v168 = vsel %vm57, %v166, 0.0
    %169 = vadd.xlane.f32.xlu0 %v168
    %v170 = vpop.xlane.xlu0 %169
    %v171 = vsel %vm57, %v167, 0.0
    %172 = vadd.xlane.f32.xlu0 %v171
    %v173 = vpop.xlane.xlu0 %172
    %v174 = vmul.f32 %v170, %v161
    %v175 = vmul.f32 %v173, %v161
    %v176 = vadd.f32 %v174, 1e-05
    %v177 = vadd.f32 %v175, 1e-05
    %v178 = vrsqrt.pop %v176
    %v179 = vmul.f32 %v178, %v176
    %v180 = vmul.f32 %v179, %v178
    %v181 = vmul.f32 0.5, %v180
    %v182 = vsub.f32 1.5, %v181
    %v183 = vmul.f32 %v178, %v182
    %vm184 = vweird.f32 %v176
    %vm185 = vweird.f32 %v178
    %vm186 = vmor %vm184, %vm185
    %v187 = vsel %vm186, %v178, %v183
    %v188 = vrsqrt.pop %v177
    %v189 = vmul.f32 %v188, %v177
    %v190 = vmul.f32 %v189, %v188
    %v191 = vmul.f32 0.5, %v190
    %v192 = vsub.f32 1.5, %v191
    %v193 = vmul.f32 %v188, %v192
    %vm194 = vweird.f32 %v177
    %vm195 = vweird.f32 %v188
    %vm196 = vmor %vm194, %vm195
    %v197 = vsel %vm196, %v188, %v193
    %v198 = vmul.f32 %v164, %v187
    %v199 = vmul.f32 %v165, %v197
    %v200 = vld [vmem:[%s5] sm:$0x1]
    %v202 = vperm.slane %v200, 0
    %v204 = vmul.f32 %v198, %v202
    %v205 = vmul.f32 %v199, %v202
    %v206 = vld [vmem:[%s6] sm:$0x1]
    %v208 = vperm.slane %v206, 0
    %v210 = vadd.f32 %v204, %v208
    %v211 = vadd.f32 %v205, %v208
    %212 = vst.msk [vmem:[%s7] sm:$0xff] %vm57, %v210
    %213 = vst.msk [vmem:[%s7 + $0x8] sm:$0xff] %vm57, %v211
  $region37: #{transformer_forward.28} parent=0 // pred_fallthru
    _
  // Predicated region
  $region38: #{transformer_forward.28} parent=0 // pred_check
    _
  $region39: #{transformer_forward.28} parent=0 // pred_check_branch
    %215 = sbr.rel (0) target = $region41
  $region40: #{transformer_forward.28} parent=0 // pred_region
    _
  $region41: #{transformer_forward.28} parent=0 // pred_fallthru
    _
  // Predicated region
  $region42: #{transformer_forward.28} parent=0 // pred_check
    _
  $region43: #{transformer_forward.28} parent=0 // pred_check_branch
    %217 = sbr.rel (0) target = $region45
  $region44: #{transformer_forward.28} parent=0 // pred_region
    _
  $region45: #{transformer_forward.28} parent=0 // pred_fallthru
    _

// kernel: transformer_forward.25
$region0: #{transformer_forward.25}
  #allocation0 [shape = 'u32[]', space=smem, size = 0x4, offset = 0x4, fixed_abs, tag = 'smem constant byte address 0x4 - core index']
  #allocation1 [shape = 'u32[72,128]{1,0:T(1,128)}', space=vmem, size = 0x9000, scoped, tag = 'internal scratch']
  #allocation2 [shape = 'f32[16,96]{1,0:T(8,128)}', space=vmem, size = 0x2000, scoped, tag = 'scratch operand']
  %s0 = inlined_call_operand.vmem [shape: f32[16,32], index: 0, kind: input, shape index: {}]
  %s1 = inlined_call_operand.vmem [shape: bf16[32,96], index: 1, kind: input, shape index: {}]
  %s2 = inlined_call_operand.vmem [shape: f32[1,96], index: 2, kind: input, shape index: {}]
  %s3 = inlined_call_operand.vmem [shape: f32[16,96], index: 3, kind: output, shape index: {}]
  %s4 = sld [smem:[#allocation0]]
  $region30: #{transformer_forward.25} parent=0
    _
  %s6 = ssub.s32 1, %s4
  %s7 = scalar_select 0, %s6, %s4
  // Predicated region
  $region2: #{transformer_forward.25} parent=0 // pred_check
    _
  $region3: #{transformer_forward.25} parent=0 // pred_check_branch
    %9 = sbr.rel (0) target = $region5
  $region4: #{transformer_forward.25} parent=0 // pred_region
    _
  $region5: #{transformer_forward.25} parent=0 // pred_fallthru
    _
  // Predicated region
  $region6: #{transformer_forward.25} parent=0 // pred_check
    _
  $region7: #{transformer_forward.25} parent=0 // pred_check_branch
    %11 = sbr.rel (0) target = $region9
  $region8: #{transformer_forward.25} parent=0 // pred_region
    _
  $region9: #{transformer_forward.25} parent=0 // pred_fallthru
    _
  // Predicated region
  $region10: #{transformer_forward.25} parent=0 // pred_check
    _
  $region11: #{transformer_forward.25} parent=0 // pred_check_branch
    %13 = sbr.rel (0) target = $region13
  $region12: #{transformer_forward.25} parent=0 // pred_region
    _
  $region13: #{transformer_forward.25} parent=0 // pred_fallthru
    _
  %p15 = scmp.eq.s32.totalorder 0, 0
  // Predicated region
  $region14: #{transformer_forward.25} parent=0 // pred_check
    %p16 = pneg %p15
  $region15: #{transformer_forward.25} parent=0 // pred_check_branch
    %18 = sbr.rel (%p16) target = $region17
  $region16: #{transformer_forward.25} parent=0 // pred_region
    %vm19 = vcmask 785408
    %20 = vst.msk [vmem:[#allocation2] sm:$0xff] %vm19, 0.0
    %21 = vst.msk [vmem:[#allocation2 + $0x8] sm:$0xff] %vm19, 0.0
  $region17: #{transformer_forward.25} parent=0 // pred_fallthru
    _
  %v22 = vld [vmem:[#allocation2] sm:$0xff]
  %v23 = vld [vmem:[#allocation2 + $0x8] sm:$0xff]
  %v24 = vld [vmem:[%s0] sm:$0xff]
  %v25 = vld [vmem:[%s0 + $0x8] sm:$0xff]
  %v26 = vpack.c.bf16 %v25, %v24
  %v27 = vld [vmem:[%s1] sm:$0xf]
  %v28 = vld [vmem:[%s1 + $0x4] sm:$0xf]
  %v29 = vld [vmem:[%s1 + $0x8] sm:$0xf]
  %v30 = vld [vmem:[%s1 + $0xc] sm:$0xf]
  %v35 = vunpack.c.l.b16 %v27
  %v36 = vunpack.c.l.b16 %v28
  %v37 = vunpack.c.l.b16 %v29
  %v38 = vunpack.c.l.b16 %v30
  %v39 = vpack.c.b16 %v36, %v35
  %v40 = vpack.c.b16 %v38, %v37
  %vm43 = vcmask 261120
  %v45 = vsel %vm43, %v26, 0
  %47 = vmatpush.bf16.msra.mxu0 0
  %48 = vmatpush.bf16.msra.mxu0 0
  %49 = vmatpush.bf16.msra.mxu0 0
  %50 = vmatpush.bf16.msra.mxu0 0
  %51 = vmatpush.bf16.msra.mxu0 0
  %52 = vmatpush.bf16.msra.mxu0 0
  %53 = vmatpush.bf16.msra.mxu0 %v40
  %54 = vmatpush.bf16.msra.mxu0 %v39
  %55 = vmatmul.bf16.gmra.mxu0 %v45
  %v56 = vpop.f32.mrf.mxu0
  %v57 = vadd.f32 0.0, %v56
  %v58 = vpop.f32.mrf.mxu0
  %v59 = vadd.f32 0.0, %v58
  %60 = vdwg.mxu0
  %v61 = vadd.f32 %v22, %v57
  %v62 = vadd.f32 %v23, %v59
  %vm63 = vcmask 785408
  %64 = vst.msk [vmem:[#allocation2] sm:$0xff] %vm63, %v61
  %65 = vst.msk [vmem:[#allocation2 + $0x8] sm:$0xff] %vm63, %v62
  // Predicated region
  $region18: #{transformer_forward.25} parent=0 // pred_check
    %p66 = pneg %p15
  $region19: #{transformer_forward.25} parent=0 // pred_check_branch
    %68 = sbr.rel (%p66) target = $region21
  $region20: #{transformer_forward.25} parent=0 // pred_region
    %v69 = vld [vmem:[#allocation2] sm:$0xff]
    %v70 = vld [vmem:[#allocation2 + $0x8] sm:$0xff]
    %v71 = vld [vmem:[%s2] sm:$0x1]
    %v73 = vperm.slane %v71, 0
    %v75 = vadd.f32 %v69, %v73
    %v76 = vadd.f32 %v70, %v73
    %77 = vst.msk [vmem:[%s3] sm:$0xff] %vm63, %v75
    %78 = vst.msk [vmem:[%s3 + $0x8] sm:$0xff] %vm63, %v76
  $region21: #{transformer_forward.25} parent=0 // pred_fallthru
    _
  // Predicated region
  $region22: #{transformer_forward.25} parent=0 // pred_check
    _
  $region23: #{transformer_forward.25} parent=0 // pred_check_branch
    %80 = sbr.rel (0) target = $region25
  $region24: #{transformer_forward.25} parent=0 // pred_region
    _
  $region25: #{transformer_forward.25} parent=0 // pred_fallthru
    _
  // Predicated region
  $region26: #{transformer_forward.25} parent=0 // pred_check
    _
  $region27: #{transformer_forward.25} parent=0 // pred_check_branch
    %82 = sbr.rel (0) target = $region29
  $region28: #{transformer_forward.25} parent=0 // pred_region
    _
  $region29: #{transformer_forward.25} parent=0 // pred_fallthru
    _

// kernel: transformer_forward.26
$region0: #{transformer_forward.26}
  #allocation0 [shape = 'u32[]', space=smem, size = 0x4, offset = 0x4, fixed_abs, tag = 'smem constant byte address 0x4 - core index']
  #allocation1 [shape = 'u32[72,128]{1,0:T(1,128)}', space=vmem, size = 0x9000, scoped, tag = 'internal scratch']
  #allocation2 [shape = 'f32[4,8,1]{2,1,0:T(8,128)}', space=vmem, size = 0x4000, scoped, tag = 'scratch operand']
  #allocation3 [shape = 'f32[4,8,1]{2,1,0:T(8,128)}', space=vmem, size = 0x4000, scoped, tag = 'scratch operand']
  #allocation4 [shape = 'f32[8,32]{1,0:T(8,128)}', space=vmem, size = 0x1000, scoped, tag = 'scratch operand']
  %s0 = inlined_call_operand.vmem [shape: f32[2,8,32], index: 0, kind: input, shape index: {}]
  %s1 = inlined_call_operand.vmem [shape: f32[2,8,32], index: 1, kind: input, shape index: {}]
  %s2 = inlined_call_operand.vmem [shape: f32[2,8,32], index: 2, kind: input, shape index: {}]
  %s3 = inlined_call_operand.vmem [shape: f32[2,1,8], index: 3, kind: input, shape index: {}]
  %s4 = inlined_call_operand.vmem [shape: f32[2,8,32], index: 4, kind: output, shape index: {}]
  %s5 = sld [smem:[#allocation0]]
  $region57: #{transformer_forward.26} parent=0
    _
  %s7 = ssub.s32 1, %s5
  %s8 = scalar_select 0, %s7, %s5
  loop: start=0, step=1, limit=4
  $region2: #{transformer_forward.26} parent=0 // loop_pre_header
    _
  $region3: #{transformer_forward.26} parent=0 // loop_header
    %s10 = sphi 0, %s14
    %p11 = scmp.ge.s32.totalorder %s10, 4
    %s17 = sphi 0, %s36
    %s18 = sphi 0, %s32
    %s19 = sphi 0, %s28
    %s20 = sphi 0, %s17
    %s21 = sphi 0, %s18
    %s22 = sphi 0, %s19
    %s23 = sphi 0, %s20
    %s24 = sphi 0, %s21
    %s25 = sphi 0, %s22
    %s41 = sphi 0, %s43
    %s44 = sphi 0, %s41
    %s45 = sphi 0, %s44
    %s61 = sphi 0, %s45
    %s69 = sphi 0, %s71
    %s72 = sphi 0, %s69
    %s73 = sphi 0, %s72
    %s89 = sphi 0, %s73
    %s97 = sphi 0, %s99
    %s100 = sphi 0, %s97
    %s101 = sphi 0, %s100
    %s117 = sphi 0, %s101
    %s125 = sphi 0, %s127
    %s128 = sphi 0, %s125
    %s129 = sphi 0, %s128
    %s145 = sphi 0, %s129
    %s153 = sphi 0, %s155
    %s156 = sphi 0, %s153
    %s157 = sphi 0, %s156
    %s173 = sphi 0, %s157
  $region4: #{transformer_forward.26} parent=0 // loop_header_branch
    %13 = sbr.rel (%p11) target = $region8
  $region5: #{transformer_forward.26} parent=0 // loop_body
    %s15 = ssub.s32 %s10, 1
    %s16 = ssub.s32 %s10, 2
    %s26 = sadd.s32 1, %s19
    %p27 = scmp.ge.s32.totalorder %s26, 1
    %s28 = scalar_select %p27, 0, %s26
    %s29 = sadd.s32 1, %s18
    %s30 = scalar_select %p27, %s29, %s18
    %p31 = scmp.ge.s32.totalorder %s30, 1
    %s32 = scalar_select %p31, 0, %s30
    %s33 = sadd.s32 1, %s17
    %s34 = scalar_select %p31, %s33, %s17
    %p35 = scmp.ge.s32.totalorder %s34, 2
    %s36 = scalar_select %p35, 0, %s34
    %s37 = ssub.s32 %s17, %s36
    %s38 = ssub.s32 %s18, %s32
    %s39 = sor.u32 %s37, %s38
    %p40 = scmp.eq.s32.totalorder %s39, 0
    %s42 = sadd.s32 %s41, 1
    %s43 = scalar_select %p40, %s41, %s42
    %p46 = pneg %p40
    %p47 = scmp.eq.s32.totalorder %s10, 1
    %p48 = por %p46, %p47
    %p49 = scmp.ne.s32.totalorder %s41, %s44
    %p50 = scmp.eq.s32.totalorder %s10, 0
    %p51 = por %p49, %p50
    %p52 = scmp.ne.s32.totalorder %s41, %s44
    %p53 = scmp.eq.s32.totalorder %s15, 1
    %p54 = por %p52, %p53
    %p55 = scmp.ne.s32.totalorder %s44, %s45
    %p56 = scmp.eq.s32.totalorder %s15, 0
    %p57 = por %p55, %p56
    %p58 = scmp.ne.s32.totalorder %s44, %s45
    %p59 = scmp.eq.s32.totalorder %s16, 1
    %p60 = por %p58, %p59
    %p62 = scmp.ne.s32.totalorder %s45, %s61
    %p63 = scmp.eq.s32.totalorder %s16, 0
    %p64 = por %p62, %p63
    %s65 = ssub.s32 %s17, %s36
    %s66 = ssub.s32 %s19, %s28
    %s67 = sor.u32 %s65, %s66
    %p68 = scmp.eq.s32.totalorder %s67, 0
    %s70 = sadd.s32 %s69, 1
    %s71 = scalar_select %p68, %s69, %s70
    %p74 = pneg %p68
    %p75 = scmp.eq.s32.totalorder %s10, 1
    %p76 = por %p74, %p75
    %p77 = scmp.ne.s32.totalorder %s69, %s72
    %p78 = scmp.eq.s32.totalorder %s10, 0
    %p79 = por %p77, %p78
    %p80 = scmp.ne.s32.totalorder %s69, %s72
    %p81 = scmp.eq.s32.totalorder %s15, 1
    %p82 = por %p80, %p81
    %p83 = scmp.ne.s32.totalorder %s72, %s73
    %p84 = scmp.eq.s32.totalorder %s15, 0
    %p85 = por %p83, %p84
    %p86 = scmp.ne.s32.totalorder %s72, %s73
    %p87 = scmp.eq.s32.totalorder %s16, 1
    %p88 = por %p86, %p87
    %p90 = scmp.ne.s32.totalorder %s73, %s89
    %p91 = scmp.eq.s32.totalorder %s16, 0
    %p92 = por %p90, %p91
    %s93 = ssub.s32 %s17, %s36
    %s94 = ssub.s32 %s19, %s28
    %s95 = sor.u32 %s93, %s94
    %p96 = scmp.eq.s32.totalorder %s95, 0
    %s98 = sadd.s32 %s97, 1
    %s99 = scalar_select %p96, %s97, %s98
    %p102 = pneg %p96
    %p103 = scmp.eq.s32.totalorder %s10, 1
    %p104 = por %p102, %p103
    %p105 = scmp.ne.s32.totalorder %s97, %s100
    %p106 = scmp.eq.s32.totalorder %s10, 0
    %p107 = por %p105, %p106
    %p108 = scmp.ne.s32.totalorder %s97, %s100
    %p109 = scmp.eq.s32.totalorder %s15, 1
    %p110 = por %p108, %p109
    %p111 = scmp.ne.s32.totalorder %s100, %s101
    %p112 = scmp.eq.s32.totalorder %s15, 0
    %p113 = por %p111, %p112
    %p114 = scmp.ne.s32.totalorder %s100, %s101
    %p115 = scmp.eq.s32.totalorder %s16, 1
    %p116 = por %p114, %p115
    %p118 = scmp.ne.s32.totalorder %s101, %s117
    %p119 = scmp.eq.s32.totalorder %s16, 0
    %p120 = por %p118, %p119
    %s121 = ssub.s32 %s17, %s36
    %s122 = ssub.s32 %s19, %s28
    %s123 = sor.u32 %s121, %s122
    %p124 = scmp.eq.s32.totalorder %s123, 0
    %s126 = sadd.s32 %s125, 1
    %s127 = scalar_select %p124, %s125, %s126
    %p130 = pneg %p124
    %p131 = scmp.eq.s32.totalorder %s10, 1
    %p132 = por %p130, %p131
    %p133 = scmp.ne.s32.totalorder %s125, %s128
    %p134 = scmp.eq.s32.totalorder %s10, 0
    %p135 = por %p133, %p134
    %p136 = scmp.ne.s32.totalorder %s125, %s128
    %p137 = scmp.eq.s32.totalorder %s15, 1
    %p138 = por %p136, %p137
    %p139 = scmp.ne.s32.totalorder %s128, %s129
    %p140 = scmp.eq.s32.totalorder %s15, 0
    %p141 = por %p139, %p140
    %p142 = scmp.ne.s32.totalorder %s128, %s129
    %p143 = scmp.eq.s32.totalorder %s16, 1
    %p144 = por %p142, %p143
    %p146 = scmp.ne.s32.totalorder %s129, %s145
    %p147 = scmp.eq.s32.totalorder %s16, 0
    %p148 = por %p146, %p147
    %s149 = ssub.s32 %s17, %s36
    %s150 = ssub.s32 %s18, %s32
    %s151 = sor.u32 %s149, %s150
    %p152 = scmp.eq.s32.totalorder %s151, 0
    %s154 = sadd.s32 %s153, 1
    %s155 = scalar_select %p152, %s153, %s154
    %p158 = pneg %p152
    %p159 = scmp.eq.s32.totalorder %s10, 1
    %p160 = por %p158, %p159
    %p161 = scmp.ne.s32.totalorder %s153, %s156
    %p162 = scmp.eq.s32.totalorder %s10, 0
    %p163 = por %p161, %p162
    %p164 = scmp.ne.s32.totalorder %s153, %s156
    %p165 = scmp.eq.s32.totalorder %s15, 1
    %p166 = por %p164, %p165
    %p167 = scmp.ne.s32.totalorder %s156, %s157
    %p168 = scmp.eq.s32.totalorder %s15, 0
    %p169 = por %p167, %p168
    %p170 = scmp.ne.s32.totalorder %s156, %s157
    %p171 = scmp.eq.s32.totalorder %s16, 1
    %p172 = por %p170, %p171
    %p174 = scmp.ne.s32.totalorder %s157, %s173
    %p175 = scmp.eq.s32.totalorder %s16, 0
    %p176 = por %p174, %p175
    %p177 = scmp.le.s32.totalorder 1, %s10
    %p178 = scmp.lt.s32.totalorder %s10, 3
    %p179 = pnand %p177, %p178
    %p180 = pneg %p179
    // Predicated region
    $region9: #{transformer_forward.26} parent=5 // pred_check
      _
    $region10: #{transformer_forward.26} parent=5 // pred_check_branch
      %182 = sbr.rel (%p179) target = $region12
    $region11: #{transformer_forward.26} parent=5 // pred_region
      %s183 = ssub.s32 %s10, 1
    $region12: #{transformer_forward.26} parent=5 // pred_fallthru
      _
    %p184 = scmp.lt.s32.totalorder %s10, 2
    // Predicated region
    $region13: #{transformer_forward.26} parent=5 // pred_check
      %p185 = pneg %p184
    $region14: #{transformer_forward.26} parent=5 // pred_check_branch
      %187 = sbr.rel (%p185) target = $region16
    $region15: #{transformer_forward.26} parent=5 // pred_region
      // Predicated region
      $region17: #{transformer_forward.26} parent=15 // pred_check
        %p188 = pneg %p51
      $region18: #{transformer_forward.26} parent=15 // pred_check_branch
        %190 = sbr.rel (%p188) target = $region20
      $region19: #{transformer_forward.26} parent=15 // pred_region
        %p191 = scmp.lt.s32.totalorder %s17, 1
        %s192 = scalar_select %p191, %s17, 1
        %p193 = scmp.lt.s32.totalorder %s18, 0
        %s194 = scalar_select %p193, %s18, 0
        %s195 = sadd.s32 %s194, %s192
        %s196 = smul.addr %s195, 8
        %s197 = scalar_lea.vmem %s0, %s196
      $region20: #{transformer_forward.26} parent=15 // pred_fallthru
        _
      // Predicated region
      $region21: #{transformer_forward.26} parent=15 // pred_check
        %p198 = pneg %p79
      $region22: #{transformer_forward.26} parent=15 // pred_check_branch
        %200 = sbr.rel (%p198) target = $region24
      $region23: #{transformer_forward.26} parent=15 // pred_region
        %p201 = scmp.lt.s32.totalorder %s17, 1
        %s202 = scalar_select %p201, %s17, 1
        %p203 = scmp.lt.s32.totalorder %s19, 0
        %s204 = scalar_select %p203, %s19, 0
        %s205 = sadd.s32 %s204, %s202
        %s206 = smul.addr %s205, 8
        %s207 = scalar_lea.vmem %s1, %s206
      $region24: #{transformer_forward.26} parent=15 // pred_fallthru
        _
      // Predicated region
      $region25: #{transformer_forward.26} parent=15 // pred_check
        %p208 = pneg %p107
      $region26: #{transformer_forward.26} parent=15 // pred_check_branch
        %210 = sbr.rel (%p208) target = $region28
      $region27: #{transformer_forward.26} parent=15 // pred_region
        %p211 = scmp.lt.s32.totalorder %s17, 1
        %s212 = scalar_select %p211, %s17, 1
        %p213 = scmp.lt.s32.totalorder %s19, 0
        %s214 = scalar_select %p213, %s19, 0
        %s215 = sadd.s32 %s214, %s212
        %s216 = smul.addr %s215, 8
        %s217 = scalar_lea.vmem %s2, %s216
      $region28: #{transformer_forward.26} parent=15 // pred_fallthru
        _
      // Predicated region
      $region29: #{transformer_forward.26} parent=15 // pred_check
        %p218 = pneg %p135
      $region30: #{transformer_forward.26} parent=15 // pred_check_branch
        %220 = sbr.rel (%p218) target = $region32
      $region31: #{transformer_forward.26} parent=15 // pred_region
        %p221 = scmp.lt.s32.totalorder %s17, 1
        %s222 = scalar_select %p221, %s17, 1
        %p223 = scmp.lt.s32.totalorder %s19, 0
        %s224 = scalar_select %p223, %s19, 0
        %s225 = sadd.s32 %s224, %s222
        %s226 = scalar_lea.vmem %s3, %s225
      $region32: #{transformer_forward.26} parent=15 // pred_fallthru
        _
    $region16: #{transformer_forward.26} parent=5 // pred_fallthru
      _
    %p227 = scmp.le.s32.totalorder 1, %s10
    %p228 = scmp.lt.s32.totalorder %s10, 3
    %p229 = pnand %p227, %p228
    %p230 = pneg %p229
    // Predicated region
    $region33: #{transformer_forward.26} parent=5 // pred_check
      _
    $region34: #{transformer_forward.26} parent=5 // pred_check_branch
      %232 = sbr.rel (%p229) target = $region36
    $region35: #{transformer_forward.26} parent=5 // pred_region
      %s233 = ssub.s32 %s10, 1
      %p234 = scmp.lt.s32.totalorder %s20, 1
      %s235 = scalar_select %p234, %s20, 1
      %p236 = scmp.lt.s32.totalorder %s21, 0
      %s237 = scalar_select %p236, %s21, 0
      %s238 = sadd.s32 %s237, %s235
      %s239 = smul.addr %s238, 8
      %s240 = scalar_lea.vmem %s0, %s239
      %p241 = pneg %p57
      %p242 = pneg %p54
      %p243 = scmp.lt.s32.totalorder %s20, 1
      %s244 = scalar_select %p243, %s20, 1
      %p245 = scmp.lt.s32.totalorder %s22, 0
      %s246 = scalar_select %p245, %s22, 0
      %s247 = sadd.s32 %s246, %s244
      %s248 = smul.addr %s247, 8
      %s249 = scalar_lea.vmem %s1, %s248
      %p250 = pneg %p85
      %p251 = pneg %p82
      %p252 = scmp.lt.s32.totalorder %s20, 1
      %s253 = scalar_select %p252, %s20, 1
      %p254 = scmp.lt.s32.totalorder %s22, 0
      %s255 = scalar_select %p254, %s22, 0
      %s256 = sadd.s32 %s255, %s253
      %s257 = smul.addr %s256, 8
      %s258 = scalar_lea.vmem %s2, %s257
      %p259 = pneg %p113
      %p260 = pneg %p110
      %p261 = scmp.lt.s32.totalorder %s20, 1
      %s262 = scalar_select %p261, %s20, 1
      %p263 = scmp.lt.s32.totalorder %s22, 0
      %s264 = scalar_select %p263, %s22, 0
      %s265 = sadd.s32 %s264, %s262
      %s266 = scalar_lea.vmem %s3, %s265
      %p267 = pneg %p141
      %p268 = pneg %p138
      %p269 = pneg %p169
      %p270 = pneg %p166
      %p271 = scmp.lt.s32.totalorder %s20, 1
      %s272 = scalar_select %p271, %s20, 1
      %p273 = scmp.lt.s32.totalorder %s21, 0
      %s274 = scalar_select %p273, %s21, 0
      %s275 = sadd.s32 %s274, %s272
      %s276 = smul.addr %s275, 8
      %s277 = scalar_lea.vmem %s4, %s276
      %p278 = scmp.lt.s32.totalorder %s20, 1
      %s279 = scalar_select %p278, %s20, 1
      %p280 = scmp.lt.s32.totalorder %s21, 0
      %s281 = scalar_select %p280, %s21, 0
      %s282 = sadd.s32 %s281, %s279
      %s283 = smul.addr %s282, 8
      %s284 = scalar_lea.vmem %s0, %s283
      %p285 = scmp.lt.s32.totalorder %s20, 1
      %s286 = scalar_select %p285, %s20, 1
      %p287 = scmp.lt.s32.totalorder %s22, 0
      %s288 = scalar_select %p287, %s22, 0
      %s289 = sadd.s32 %s288, %s286
      %s290 = smul.addr %s289, 8
      %s291 = scalar_lea.vmem %s1, %s290
      %p292 = scmp.lt.s32.totalorder %s20, 1
      %s293 = scalar_select %p292, %s20, 1
      %p294 = scmp.lt.s32.totalorder %s22, 0
      %s295 = scalar_select %p294, %s22, 0
      %s296 = sadd.s32 %s295, %s293
      %s297 = smul.addr %s296, 8
      %s298 = scalar_lea.vmem %s2, %s297
      %p299 = scmp.lt.s32.totalorder %s20, 1
      %s300 = scalar_select %p299, %s20, 1
      %p301 = scmp.lt.s32.totalorder %s22, 0
      %s302 = scalar_select %p301, %s22, 0
      %s303 = sadd.s32 %s302, %s300
      %s304 = scalar_lea.vmem %s3, %s303
      %p305 = scmp.lt.s32.totalorder %s20, 1
      %s306 = scalar_select %p305, %s20, 1
      %p307 = scmp.lt.s32.totalorder %s21, 0
      %s308 = scalar_select %p307, %s21, 0
      %s309 = sadd.s32 %s308, %s306
      %s310 = smul.addr %s309, 8
      %s311 = scalar_lea.vmem %s4, %s310
      %p313 = scmp.eq.s32.totalorder %s22, 0
      // Predicated region
      $region37: #{transformer_forward.26} parent=35 // pred_check
        %p314 = pneg %p313
      $region38: #{transformer_forward.26} parent=35 // pred_check_branch
        %316 = sbr.rel (%p314) target = $region40
      $region39: #{transformer_forward.26} parent=35 // pred_region
        %vm317 = vcmask 7168
        %318 = vst.msk [vmem:[#allocation2] sm:$0xff] %vm317, -inf
        %319 = vst.msk [vmem:[#allocation2 + $0x8] sm:$0xff] %vm317, -inf
        %320 = vst.msk [vmem:[#allocation2 + $0x10] sm:$0xff] %vm317, -inf
        %321 = vst.msk [vmem:[#allocation2 + $0x18] sm:$0xff] %vm317, -inf
        %322 = vst.msk [vmem:[#allocation3] sm:$0xff] %vm317, 0.0
        %323 = vst.msk [vmem:[#allocation3 + $0x8] sm:$0xff] %vm317, 0.0
        %324 = vst.msk [vmem:[#allocation3 + $0x10] sm:$0xff] %vm317, 0.0
        %325 = vst.msk [vmem:[#allocation3 + $0x18] sm:$0xff] %vm317, 0.0
        %vm326 = vcmask 261120
        %327 = vst.msk [vmem:[#allocation4] sm:$0xff] %vm326, 0.0
      $region40: #{transformer_forward.26} parent=35 // pred_fallthru
        _
      %v328 = vld [vmem:[%s284] sm:$0xff]
      %v329 = vld [vmem:[%s291] sm:$0xff]
      %v330 = vld [vmem:[%s298] sm:$0xff]
      %v331 = vld [vmem:[%s304] sm:$0x1]
      %vm332 = vcmp.eq.f32.partialorder %v331, 0.0
      %v333 = vsel %vm332, -1e+09, 0.0
      %v334 = vmul.f32 %v328, 0.35355338
      %v335 = vpack.c.bf16 %v334, %v334
      %v336 = vpack.c.bf16 %v329, %v329
      %v337 = vpack.c.bf16 %v330, %v330
      %v339 = vperm.slane %v333, 0
      %vm341 = vcmask 64512
      %v343 = vsel %vm341, %v335, 0
      %v346 = vsel %vm341, %v336, 0
      %348 = vmatpush.bf16.xpose.msra.mxu0 0
      %349 = vmatpush.bf16.xpose.msra.mxu0 0
      %350 = vmatpush.bf16.xpose.msra.mxu0 0
      %351 = vmatpush.bf16.xpose.msra.mxu0 0
      %352 = vmatpush.bf16.xpose.msra.mxu0 0
      %353 = vmatpush.bf16.xpose.msra.mxu0 0
      %354 = vmatpush.bf16.xpose.msra.mxu0 0
      %355 = vmatpush.bf16.xpose.msra.mxu0 %v346
      %356 = vmatmul.bf16.gmra.mxu0 %v343
      %v357 = vpop.f32.mrf.mxu0
      %v358 = vadd.f32 %v339, %v357
      %v359 = vpop.f32.mrf.mxu0
      %360 = vdwg.mxu0
      %v361 = vld [vmem:[#allocation2] sm:$0xff]
      %v362 = vsel %vm341, %v358, -inf
      %363 = vmax.xlane.f32.xlu0 %v362
      %v364 = vpop.xlane.xlu0 %363
      %v365 = vmax.f32 %v361, %v364
      %v366 = vsub.f32 %v361, %v365
      %v367 = vmul.f32 %v366, 1.442695
      %v368 = vpow.pop %v367
      %370 = vset.pattern.permute.xlu0 0
      %371 = vperm.xlu0 %370, %v365
      %v372 = vpop.permute.xlu0 %371
      %v374 = vsub.f32 %v358, %v372
      %v375 = vmul.f32 %v374, 1.442695
      %v376 = vpow.pop %v375
      %v377 = vld [vmem:[#allocation3] sm:$0xff]
      %v378 = vmul.f32 %v368, %v377
      %v379 = vsel %vm341, %v376, 0.0
      %380 = vadd.xlane.f32.xlu0 %v379
      %v381 = vpop.xlane.xlu0 %380
      %v382 = vadd.f32 %v378, %v381
      %vm383 = vcmask 7168
      %384 = vst.msk [vmem:[#allocation3] sm:$0xff] %vm383, %v382
      %v385 = vpack.c.bf16 %v376, %v376
      %v387 = vsel %vm341, %v385, 0
      %vm389 = vcmask 1043456
      %v391 = vsel %vm389, %v337, 0
      %393 = vmatpush.bf16.msra.mxu0 0
      %394 = vmatpush.bf16.msra.mxu0 0
      %395 = vmatpush.bf16.msra.mxu0 0
      %396 = vmatpush.bf16.msra.mxu0 0
      %397 = vmatpush.bf16.msra.mxu0 0
      %398 = vmatpush.bf16.msra.mxu0 0
      %399 = vmatpush.bf16.msra.mxu0 0
      %400 = vmatpush.bf16.msra.mxu0 %v391
      %401 = vmatmul.bf16.gmra.mxu0 %v387
      %v402 = vpop.f32.mrf.mxu0
      %v403 = vadd.f32 0.0, %v402
      %v404 = vpop.f32.mrf.mxu0
      %405 = vdwg.mxu0
      %v406 = vld [vmem:[#allocation4] sm:$0xff]
      %408 = vset.pattern.permute.xlu0 0
      %409 = vperm.xlu0 %408, %v368
      %v410 = vpop.permute.xlu0 %409
      %v412 = vmul.f32 %v410, %v406
      %v413 = vadd.f32 %v412, %v403
      %414 = vst.msk [vmem:[#allocation4] sm:$0xff] %vm341, %v413
      %415 = vst.msk [vmem:[#allocation2] sm:$0xff] %vm383, %v365
      %v417 = vunpack.c.l.b16 %v335
      %v418 = vpack.c.b16 %v417, %v417
      %419 = vrot.lane.b32.xlu0 %v418, 120
      %v420 = vpop.permute.xlu0 %419
      %v422 = vunpack.c.l.b16 %v336
      %v423 = vpack.c.b16 %v422, %v422
      %424 = vrot.lane.b32.xlu0 %v423, 120
      %v425 = vpop.permute.xlu0 %424
      %v427 = vsel %vm341, %v420, 0
      %v430 = vsel %vm341, %v425, 0
      %432 = vmatpush.bf16.xpose.msra.mxu0 0
      %433 = vmatpush.bf16.xpose.msra.mxu0 0
      %434 = vmatpush.bf16.xpose.msra.mxu0 0
      %435 = vmatpush.bf16.xpose.msra.mxu0 0
      %436 = vmatpush.bf16.xpose.msra.mxu0 0
      %437 = vmatpush.bf16.xpose.msra.mxu0 0
      %438 = vmatpush.bf16.xpose.msra.mxu0 0
      %439 = vmatpush.bf16.xpose.msra.mxu0 %v430
      %440 = vmatmul.bf16.gmra.mxu0 %v427
      %v441 = vpop.f32.mrf.mxu0
      %v442 = vadd.f32 %v339, %v441
      %v443 = vpop.f32.mrf.mxu0
      %444 = vdwg.mxu0
      %s445 = scalar_lea.vmem [#allocation2], 8
      %v446 = vld [vmem:[%s445] sm:$0xff]
      %v447 = vsel %vm341, %v442, -inf
      %448 = vmax.xlane.f32.xlu0 %v447
      %v449 = vpop.xlane.xlu0 %448
      %v450 = vmax.f32 %v446, %v449
      %v451 = vsub.f32 %v446, %v450
      %v452 = vmul.f32 %v451, 1.442695
      %v453 = vpow.pop %v452
      %455 = vset.pattern.permute.xlu0 0
      %456 = vperm.xlu0 %455, %v450
      %v457 = vpop.permute.xlu0 %456
      %v459 = vsub.f32 %v442, %v457
      %v460 = vmul.f32 %v459, 1.442695
      %v461 = vpow.pop %v460
      %s462 = scalar_lea.vmem [#allocation3], 8
      %v463 = vld [vmem:[%s462] sm:$0xff]
      %v464 = vmul.f32 %v453, %v463
      %v465 = vsel %vm341, %v461, 0.0
      %466 = vadd.xlane.f32.xlu0 %v465
      %v467 = vpop.xlane.xlu0 %466
      %v468 = vadd.f32 %v464, %v467
      %469 = vst.msk [vmem:[%s462] sm:$0xff] %vm383, %v468
      %v470 = vpack.c.bf16 %v461, %v461
      %v472 = vunpack.c.l.b16 %v337
      %v473 = vpack.c.b16 %v472, %v472
      %474 = vrot.lane.b32.xlu0 %v473, 120
      %v475 = vpop.permute.xlu0 %474
      %v477 = vsel %vm341, %v470, 0
      %v480 = vsel %vm389, %v475, 0
      %482 = vmatpush.bf16.msra.mxu0 0
      %483 = vmatpush.bf16.msra.mxu0 0
      %484 = vmatpush.bf16.msra.mxu0 0
      %485 = vmatpush.bf16.msra.mxu0 0
      %486 = vmatpush.bf16.msra.mxu0 0
      %487 = vmatpush.bf16.msra.mxu0 0
      %488 = vmatpush.bf16.msra.mxu0 0
      %489 = vmatpush.bf16.msra.mxu0 %v480
      %490 = vmatmul.bf16.gmra.mxu0 %v477
      %v491 = vpop.f32.mrf.mxu0
      %v492 = vadd.f32 0.0, %v491
      %v493 = vpop.f32.mrf.mxu0
      %494 = vdwg.mxu0
      %v495 = vld [vmem:[#allocation4] sm:$0xff]
      %497 = vset.pattern.permute.xlu0 0
      %498 = vperm.xlu0 %497, %v453
      %v499 = vpop.permute.xlu0 %498
      %v501 = vmul.f32 %v499, %v495
      %503 = vrot.lane.b32.xlu0 %v492, 8
      %v504 = vpop.permute.xlu0 %503
      %v506 = vadd.f32 %v501, %v504
      %vm507 = vcmask 130112
      %508 = vst.msk [vmem:[#allocation4] sm:$0xff] %vm507, %v506
      %509 = vst.msk [vmem:[%s445] sm:$0xff] %vm383, %v450
      %510 = vrot.lane.b32.xlu0 %v418, 112
      %v511 = vpop.permute.xlu0 %510
      %512 = vrot.lane.b32.xlu0 %v423, 112
      %v513 = vpop.permute.xlu0 %512
      %v515 = vsel %vm341, %v511, 0
      %v518 = vsel %vm341, %v513, 0
      %520 = vmatpush.bf16.xpose.msra.mxu0 0
      %521 = vmatpush.bf16.xpose.msra.mxu0 0
      %522 = vmatpush.bf16.xpose.msra.mxu0 0
      %523 = vmatpush.bf16.xpose.msra.mxu0 0
      %524 = vmatpush.bf16.xpose.msra.mxu0 0
      %525 = vmatpush.bf16.xpose.msra.mxu0 0
      %526 = vmatpush.bf16.xpose.msra.mxu0 0
      %527 = vmatpush.bf16.xpose.msra.mxu0 %v518
      %528 = vmatmul.bf16.gmra.mxu0 %v515
      %v529 = vpop.f32.mrf.mxu0
      %v530 = vadd.f32 %v339, %v529
      %v531 = vpop.f32.mrf.mxu0
      %532 = vdwg.mxu0
      %s533 = scalar_lea.vmem [#allocation2], 16
      %v534 = vld [vmem:[%s533] sm:$0xff]
      %v535 = vsel %vm341, %v530, -inf
      %536 = vmax.xlane.f32.xlu0 %v535
      %v537 = vpop.xlane.xlu0 %536
      %v538 = vmax.f32 %v534, %v537
      %v539 = vsub.f32 %v534, %v538
      %v540 = vmul.f32 %v539, 1.442695
      %v541 = vpow.pop %v540
      %543 = vset.pattern.permute.xlu0 0
      %544 = vperm.xlu0 %543, %v538
      %v545 = vpop.permute.xlu0 %544
      %v547 = vsub.f32 %v530, %v545
      %v548 = vmul.f32 %v547, 1.442695
      %v549 = vpow.pop %v548
      %s550 = scalar_lea.vmem [#allocation3], 16
      %v551 = vld [vmem:[%s550] sm:$0xff]
      %v552 = vmul.f32 %v541, %v551
      %v553 = vsel %vm341, %v549, 0.0
      %554 = vadd.xlane.f32.xlu0 %v553
      %v555 = vpop.xlane.xlu0 %554
      %v556 = vadd.f32 %v552, %v555
      %557 = vst.msk [vmem:[%s550] sm:$0xff] %vm383, %v556
      %v558 = vpack.c.bf16 %v549, %v549
      %559 = vrot.lane.b32.xlu0 %v473, 112
      %v560 = vpop.permute.xlu0 %559
      %v562 = vsel %vm341, %v558, 0
      %v565 = vsel %vm389, %v560, 0
      %567 = vmatpush.bf16.msra.mxu0 0
      %568 = vmatpush.bf16.msra.mxu0 0
      %569 = vmatpush.bf16.msra.mxu0 0
      %570 = vmatpush.bf16.msra.mxu0 0
      %571 = vmatpush.bf16.msra.mxu0 0
      %572 = vmatpush.bf16.msra.mxu0 0
      %573 = vmatpush.bf16.msra.mxu0 0
      %574 = vmatpush.bf16.msra.mxu0 %v565
      %575 = vmatmul.bf16.gmra.mxu0 %v562
      %v576 = vpop.f32.mrf.mxu0
      %v577 = vadd.f32 0.0, %v576
      %v578 = vpop.f32.mrf.mxu0
      %579 = vdwg.mxu0
      %v580 = vld [vmem:[#allocation4] sm:$0xff]
      %582 = vset.pattern.permute.xlu0 0
      %583 = vperm.xlu0 %582, %v541
      %v584 = vpop.permute.xlu0 %583
      %v586 = vmul.f32 %v584, %v580
      %588 = vrot.lane.b32.xlu0 %v577, 16
      %v589 = vpop.permute.xlu0 %588
      %v591 = vadd.f32 %v586, %v589
      %vm592 = vcmask 195712
      %593 = vst.msk [vmem:[#allocation4] sm:$0xff] %vm592, %v591
      %594 = vst.msk [vmem:[%s533] sm:$0xff] %vm383, %v538
      %595 = vrot.lane.b32.xlu0 %v418, 104
      %v596 = vpop.permute.xlu0 %595
      %597 = vrot.lane.b32.xlu0 %v423, 104
      %v598 = vpop.permute.xlu0 %597
      %v600 = vsel %vm341, %v596, 0
      %v603 = vsel %vm341, %v598, 0
      %605 = vmatpush.bf16.xpose.msra.mxu0 0
      %606 = vmatpush.bf16.xpose.msra.mxu0 0
      %607 = vmatpush.bf16.xpose.msra.mxu0 0
      %608 = vmatpush.bf16.xpose.msra.mxu0 0
      %609 = vmatpush.bf16.xpose.msra.mxu0 0
      %610 = vmatpush.bf16.xpose.msra.mxu0 0
      %611 = vmatpush.bf16.xpose.msra.mxu0 0
      %612 = vmatpush.bf16.xpose.msra.mxu0 %v603
      %613 = vmatmul.bf16.gmra.mxu0 %v600
      %v614 = vpop.f32.mrf.mxu0
      %v615 = vadd.f32 %v339, %v614
      %v616 = vpop.f32.mrf.mxu0
      %617 = vdwg.mxu0
      %s618 = scalar_lea.vmem [#allocation2], 24
      %v619 = vld [vmem:[%s618] sm:$0xff]
      %v620 = vsel %vm341, %v615, -inf
      %621 = vmax.xlane.f32.xlu0 %v620
      %v622 = vpop.xlane.xlu0 %621
      %v623 = vmax.f32 %v619, %v622
      %v624 = vsub.f32 %v619, %v623
      %v625 = vmul.f32 %v624, 1.442695
      %v626 = vpow.pop %v625
      %628 = vset.pattern.permute.xlu0 0
      %629 = vperm.xlu0 %628, %v623
      %v630 = vpop.permute.xlu0 %629
      %v632 = vsub.f32 %v615, %v630
      %v633 = vmul.f32 %v632, 1.442695
      %v634 = vpow.pop %v633
      %s635 = scalar_lea.vmem [#allocation3], 24
      %v636 = vld [vmem:[%s635] sm:$0xff]
      %v637 = vmul.f32 %v626, %v636
      %v638 = vsel %vm341, %v634, 0.0
      %639 = vadd.xlane.f32.xlu0 %v638
      %v640 = vpop.xlane.xlu0 %639
      %v641 = vadd.f32 %v637, %v640
      %642 = vst.msk [vmem:[%s635] sm:$0xff] %vm383, %v641
      %v643 = vpack.c.bf16 %v634, %v634
      %644 = vrot.lane.b32.xlu0 %v473, 104
      %v645 = vpop.permute.xlu0 %644
      %v647 = vsel %vm341, %v643, 0
      %v650 = vsel %vm389, %v645, 0
      %652 = vmatpush.bf16.msra.mxu0 0
      %653 = vmatpush.bf16.msra.mxu0 0
      %654 = vmatpush.bf16.msra.mxu0 0
      %655 = vmatpush.bf16.msra.mxu0 0
      %656 = vmatpush.bf16.msra.mxu0 0
      %657 = vmatpush.bf16.msra.mxu0 0
      %658 = vmatpush.bf16.msra.mxu0 0
      %659 = vmatpush.bf16.msra.mxu0 %v650
      %660 = vmatmul.bf16.gmra.mxu0 %v647
      %v661 = vpop.f32.mrf.mxu0
      %v662 = vadd.f32 0.0, %v661
      %v663 = vpop.f32.mrf.mxu0
      %664 = vdwg.mxu0
      %v665 = vld [vmem:[#allocation4] sm:$0xff]
      %667 = vset.pattern.permute.xlu0 0
      %668 = vperm.xlu0 %667, %v626
      %v669 = vpop.permute.xlu0 %668
      %v671 = vmul.f32 %v669, %v665
      %673 = vrot.lane.b32.xlu0 %v662, 24
      %v674 = vpop.permute.xlu0 %673
      %v676 = vadd.f32 %v671, %v674
      %vm677 = vcmask 261312
      %678 = vst.msk [vmem:[#allocation4] sm:$0xff] %vm677, %v676
      %679 = vst.msk [vmem:[%s618] sm:$0xff] %vm383, %v623
      // Predicated region
      $region41: #{transformer_forward.26} parent=35 // pred_check
        %p680 = pneg %p313
      $region42: #{transformer_forward.26} parent=35 // pred_check_branch
        %682 = sbr.rel (%p680) target = $region44
      $region43: #{transformer_forward.26} parent=35 // pred_region
        %v683 = vld [vmem:[#allocation3] sm:$0xff]
        %v684 = vrcp.pop %v683
        %686 = vset.pattern.permute.xlu0 0
        %687 = vperm.xlu0 %686, %v684
        %v688 = vpop.permute.xlu0 %687
        %v690 = vld [vmem:[%s462] sm:$0xff]
        %v691 = vrcp.pop %v690
        %693 = vset.pattern.permute.xlu0 0
        %694 = vperm.xlu0 %693, %v691
        %v695 = vpop.permute.xlu0 %694
        %v697 = vld [vmem:[%s550] sm:$0xff]
        %v698 = vrcp.pop %v697
        %700 = vset.pattern.permute.xlu0 0
        %701 = vperm.xlu0 %700, %v698
        %v702 = vpop.permute.xlu0 %701
        %v704 = vld [vmem:[%s635] sm:$0xff]
        %v705 = vrcp.pop %v704
        %707 = vset.pattern.permute.xlu0 0
        %708 = vperm.xlu0 %707, %v705
        %v709 = vpop.permute.xlu0 %708
        %v711 = vld [vmem:[#allocation4] sm:$0xff]
        %v712 = vsel %vm341, %v688, %v695
        %vm713 = vcmask 130048
        %v714 = vsel %vm713, %v712, %v702
        %vm715 = vcmask 195584
        %v716 = vsel %vm715, %v714, %v709
        %v717 = vmul.f32 %v711, %v716
        %vm718 = vcmask 261120
        %719 = vst.msk [vmem:[%s311] sm:$0xff] %vm718, %v717
      $region44: #{transformer_forward.26} parent=35 // pred_fallthru
        _
      %p720 = scmp.lt.s32.totalorder %s20, 1
      %s721 = scalar_select %p720, %s20, 1
      %p722 = scmp.lt.s32.totalorder %s21, 0
      %s723 = scalar_select %p722, %s21, 0
      %s724 = sadd.s32 %s723, %s721
      %s725 = smul.addr %s724, 8
      %s726 = scalar_lea.vmem %s4, %s725
      // Predicated region
      $region45: #{transformer_forward.26} parent=35 // pred_check
        %p727 = pneg %p166
      $region46: #{transformer_forward.26} parent=35 // pred_check_branch
        %729 = sbr.rel (%p727) target = $region48
      $region47: #{transformer_forward.26} parent=35 // pred_region
        _
      $region48: #{transformer_forward.26} parent=35 // pred_fallthru
        _
    $region36: #{transformer_forward.26} parent=5 // pred_fallthru
      _
    %p730 = scmp.le.s32.totalorder 2, %s10
    // Predicated region
    $region49: #{transformer_forward.26} parent=5 // pred_check
      %p731 = pneg %p730
    $region50: #{transformer_forward.26} parent=5 // pred_check_branch
      %733 = sbr.rel (%p731) target = $region52
    $region51: #{transformer_forward.26} parent=5 // pred_region
      %s734 = ssub.s32 %s10, 2
      // Predicated region
      $region53: #{transformer_forward.26} parent=51 // pred_check
        %p735 = pneg %p172
      $region54: #{transformer_forward.26} parent=51 // pred_check_branch
        %737 = sbr.rel (%p735) target = $region56
      $region55: #{transformer_forward.26} parent=51 // pred_region
        %p738 = scmp.lt.s32.totalorder %s23, 1
        %s739 = scalar_select %p738, %s23, 1
        %p740 = scmp.lt.s32.totalorder %s24, 0
        %s741 = scalar_select %p740, %s24, 0
        %s742 = sadd.s32 %s741, %s739
        %s743 = smul.addr %s742, 8
        %s744 = scalar_lea.vmem %s4, %s743
      $region56: #{transformer_forward.26} parent=51 // pred_fallthru
        _
    $region52: #{transformer_forward.26} parent=5 // pred_fallthru
      _
  $region6: #{transformer_forward.26} parent=0 // loop_footer
    %s14 = sadd.s32 1, %s10
  $region7: #{transformer_forward.26} parent=0 // loop_footer_branch
    %9 = sbr.rel target = $region3
  $region8: #{transformer_forward.26} parent=0 // loop_exit
    _

// kernel: transformer_forward.37
$region0: #{transformer_forward.37}
  #allocation0 [shape = 'u32[]', space=smem, size = 0x4, offset = 0x4, fixed_abs, tag = 'smem constant byte address 0x4 - core index']
  #allocation1 [shape = 'u32[72,128]{1,0:T(1,128)}', space=vmem, size = 0x9000, scoped, tag = 'internal scratch']
  #allocation2 [shape = 'f32[16,64]{1,0:T(8,128)}', space=vmem, size = 0x2000, scoped, tag = 'scratch operand']
  %s0 = inlined_call_operand.vmem [shape: f32[16,32], index: 0, kind: input, shape index: {}]
  %s1 = inlined_call_operand.vmem [shape: bf16[32,64], index: 1, kind: input, shape index: {}]
  %s2 = inlined_call_operand.vmem [shape: f32[1,64], index: 2, kind: input, shape index: {}]
  %s3 = inlined_call_operand.vmem [shape: f32[16,64], index: 3, kind: output, shape index: {}]
  %s4 = sld [smem:[#allocation0]]
  $region30: #{transformer_forward.37} parent=0
    _
  %s6 = ssub.s32 1, %s4
  %s7 = scalar_select 0, %s6, %s4
  // Predicated region
  $region2: #{transformer_forward.37} parent=0 // pred_check
    _
  $region3: #{transformer_forward.37} parent=0 // pred_check_branch
    %9 = sbr.rel (0) target = $region5
  $region4: #{transformer_forward.37} parent=0 // pred_region
    _
  $region5: #{transformer_forward.37} parent=0 // pred_fallthru
    _
  // Predicated region
  $region6: #{transformer_forward.37} parent=0 // pred_check
    _
  $region7: #{transformer_forward.37} parent=0 // pred_check_branch
    %11 = sbr.rel (0) target = $region9
  $region8: #{transformer_forward.37} parent=0 // pred_region
    _
  $region9: #{transformer_forward.37} parent=0 // pred_fallthru
    _
  // Predicated region
  $region10: #{transformer_forward.37} parent=0 // pred_check
    _
  $region11: #{transformer_forward.37} parent=0 // pred_check_branch
    %13 = sbr.rel (0) target = $region13
  $region12: #{transformer_forward.37} parent=0 // pred_region
    _
  $region13: #{transformer_forward.37} parent=0 // pred_fallthru
    _
  %p15 = scmp.eq.s32.totalorder 0, 0
  // Predicated region
  $region14: #{transformer_forward.37} parent=0 // pred_check
    %p16 = pneg %p15
  $region15: #{transformer_forward.37} parent=0 // pred_check_branch
    %18 = sbr.rel (%p16) target = $region17
  $region16: #{transformer_forward.37} parent=0 // pred_region
    %vm19 = vcmask 523264
    %20 = vst.msk [vmem:[#allocation2] sm:$0xff] %vm19, 0.0
    %21 = vst.msk [vmem:[#allocation2 + $0x8] sm:$0xff] %vm19, 0.0
  $region17: #{transformer_forward.37} parent=0 // pred_fallthru
    _
  %v22 = vld [vmem:[#allocation2] sm:$0xff]
  %v23 = vld [vmem:[#allocation2 + $0x8] sm:$0xff]
  %v24 = vld [vmem:[%s0] sm:$0xff]
  %v25 = vld [vmem:[%s0 + $0x8] sm:$0xff]
  %v26 = vpack.c.bf16 %v25, %v24
  %v27 = vld [vmem:[%s1] sm:$0xf]
  %v28 = vld [vmem:[%s1 + $0x4] sm:$0xf]
  %v29 = vld [vmem:[%s1 + $0x8] sm:$0xf]
  %v30 = vld [vmem:[%s1 + $0xc] sm:$0xf]
  %v35 = vunpack.c.l.b16 %v27
  %v36 = vunpack.c.l.b16 %v28
  %v37 = vunpack.c.l.b16 %v29
  %v38 = vunpack.c.l.b16 %v30
  %v39 = vpack.c.b16 %v36, %v35
  %v40 = vpack.c.b16 %v38, %v37
  %vm43 = vcmask 261120
  %v45 = vsel %vm43, %v26, 0
  %47 = vmatpush.bf16.msra.mxu0 0
  %48 = vmatpush.bf16.msra.mxu0 0
  %49 = vmatpush.bf16.msra.mxu0 0
  %50 = vmatpush.bf16.msra.mxu0 0
  %51 = vmatpush.bf16.msra.mxu0 0
  %52 = vmatpush.bf16.msra.mxu0 0
  %53 = vmatpush.bf16.msra.mxu0 %v40
  %54 = vmatpush.bf16.msra.mxu0 %v39
  %55 = vmatmul.bf16.gmra.mxu0 %v45
  %v56 = vpop.f32.mrf.mxu0
  %v57 = vadd.f32 0.0, %v56
  %v58 = vpop.f32.mrf.mxu0
  %v59 = vadd.f32 0.0, %v58
  %60 = vdwg.mxu0
  %v61 = vadd.f32 %v22, %v57
  %v62 = vadd.f32 %v23, %v59
  %vm63 = vcmask 523264
  %64 = vst.msk [vmem:[#allocation2] sm:$0xff] %vm63, %v61
  %65 = vst.msk [vmem:[#allocation2 + $0x8] sm:$0xff] %vm63, %v62
  // Predicated region
  $region18: #{transformer_forward.37} parent=0 // pred_check
    %p66 = pneg %p15
  $region19: #{transformer_forward.37} parent=0 // pred_check_branch
    %68 = sbr.rel (%p66) target = $region21
  $region20: #{transformer_forward.37} parent=0 // pred_region
    %v69 = vld [vmem:[#allocation2] sm:$0xff]
    %v70 = vld [vmem:[#allocation2 + $0x8] sm:$0xff]
    %v71 = vld [vmem:[%s2] sm:$0x1]
    %v73 = vperm.slane %v71, 0
    %v75 = vadd.f32 %v69, %v73
    %v76 = vadd.f32 %v70, %v73
    %77 = vst.msk [vmem:[%s3] sm:$0xff] %vm63, %v75
    %78 = vst.msk [vmem:[%s3 + $0x8] sm:$0xff] %vm63, %v76
  $region21: #{transformer_forward.37} parent=0 // pred_fallthru
    _
  // Predicated region
  $region22: #{transformer_forward.37} parent=0 // pred_check
    _
  $region23: #{transformer_forward.37} parent=0 // pred_check_branch
    %80 = sbr.rel (0) target = $region25
  $region24: #{transformer_forward.37} parent=0 // pred_region
    _
  $region25: #{transformer_forward.37} parent=0 // pred_fallthru
    _
  // Predicated region
  $region26: #{transformer_forward.37} parent=0 // pred_check
    _
  $region27: #{transformer_forward.37} parent=0 // pred_check_branch
    %82 = sbr.rel (0) target = $region29
  $region28: #{transformer_forward.37} parent=0 // pred_region
    _
  $region29: #{transformer_forward.37} parent=0 // pred_fallthru
    _

// kernel: transformer_forward.36
$region0: #{transformer_forward.36}
  #allocation0 [shape = 'u32[]', space=smem, size = 0x4, offset = 0x4, fixed_abs, tag = 'smem constant byte address 0x4 - core index']
  #allocation1 [shape = 'u32[72,128]{1,0:T(1,128)}', space=vmem, size = 0x9000, scoped, tag = 'internal scratch']
  #allocation2 [shape = 'f32[16,32]{1,0:T(8,128)}', space=vmem, size = 0x2000, scoped, tag = 'scratch operand']
  %s0 = inlined_call_operand.vmem [shape: f32[16,32], index: 0, kind: input, shape index: {}]
  %s1 = inlined_call_operand.vmem [shape: bf16[32,32], index: 1, kind: input, shape index: {}]
  %s2 = inlined_call_operand.vmem [shape: f32[1,32], index: 2, kind: input, shape index: {}]
  %s3 = inlined_call_operand.vmem [shape: f32[16,32], index: 3, kind: output, shape index: {}]
  %s4 = sld [smem:[#allocation0]]
  $region30: #{transformer_forward.36} parent=0
    _
  %s6 = ssub.s32 1, %s4
  %s7 = scalar_select 0, %s6, %s4
  // Predicated region
  $region2: #{transformer_forward.36} parent=0 // pred_check
    _
  $region3: #{transformer_forward.36} parent=0 // pred_check_branch
    %9 = sbr.rel (0) target = $region5
  $region4: #{transformer_forward.36} parent=0 // pred_region
    _
  $region5: #{transformer_forward.36} parent=0 // pred_fallthru
    _
  // Predicated region
  $region6: #{transformer_forward.36} parent=0 // pred_check
    _
  $region7: #{transformer_forward.36} parent=0 // pred_check_branch
    %11 = sbr.rel (0) target = $region9
  $region8: #{transformer_forward.36} parent=0 // pred_region
    _
  $region9: #{transformer_forward.36} parent=0 // pred_fallthru
    _
  // Predicated region
  $region10: #{transformer_forward.36} parent=0 // pred_check
    _
  $region11: #{transformer_forward.36} parent=0 // pred_check_branch
    %13 = sbr.rel (0) target = $region13
  $region12: #{transformer_forward.36} parent=0 // pred_region
    _
  $region13: #{transformer_forward.36} parent=0 // pred_fallthru
    _
  %p15 = scmp.eq.s32.totalorder 0, 0
  // Predicated region
  $region14: #{transformer_forward.36} parent=0 // pred_check
    %p16 = pneg %p15
  $region15: #{transformer_forward.36} parent=0 // pred_check_branch
    %18 = sbr.rel (%p16) target = $region17
  $region16: #{transformer_forward.36} parent=0 // pred_region
    %vm19 = vcmask 261120
    %20 = vst.msk [vmem:[#allocation2] sm:$0xff] %vm19, 0.0
    %21 = vst.msk [vmem:[#allocation2 + $0x8] sm:$0xff] %vm19, 0.0
  $region17: #{transformer_forward.36} parent=0 // pred_fallthru
    _
  %v22 = vld [vmem:[#allocation2] sm:$0xff]
  %v23 = vld [vmem:[#allocation2 + $0x8] sm:$0xff]
  %v24 = vld [vmem:[%s0] sm:$0xff]
  %v25 = vld [vmem:[%s0 + $0x8] sm:$0xff]
  %v26 = vpack.c.bf16 %v25, %v24
  %v27 = vld [vmem:[%s1] sm:$0xf]
  %v28 = vld [vmem:[%s1 + $0x4] sm:$0xf]
  %v29 = vld [vmem:[%s1 + $0x8] sm:$0xf]
  %v30 = vld [vmem:[%s1 + $0xc] sm:$0xf]
  %v35 = vunpack.c.l.b16 %v27
  %v36 = vunpack.c.l.b16 %v28
  %v37 = vunpack.c.l.b16 %v29
  %v38 = vunpack.c.l.b16 %v30
  %v39 = vpack.c.b16 %v36, %v35
  %v40 = vpack.c.b16 %v38, %v37
  %vm43 = vcmask 261120
  %v45 = vsel %vm43, %v26, 0
  %47 = vmatpush.bf16.msra.mxu0 0
  %48 = vmatpush.bf16.msra.mxu0 0
  %49 = vmatpush.bf16.msra.mxu0 0
  %50 = vmatpush.bf16.msra.mxu0 0
  %51 = vmatpush.bf16.msra.mxu0 0
  %52 = vmatpush.bf16.msra.mxu0 0
  %53 = vmatpush.bf16.msra.mxu0 %v40
  %54 = vmatpush.bf16.msra.mxu0 %v39
  %55 = vmatmul.bf16.gmra.mxu0 %v45
  %v56 = vpop.f32.mrf.mxu0
  %v57 = vadd.f32 0.0, %v56
  %v58 = vpop.f32.mrf.mxu0
  %v59 = vadd.f32 0.0, %v58
  %60 = vdwg.mxu0
  %v61 = vadd.f32 %v22, %v57
  %v62 = vadd.f32 %v23, %v59
  %63 = vst.msk [vmem:[#allocation2] sm:$0xff] %vm43, %v61
  %64 = vst.msk [vmem:[#allocation2 + $0x8] sm:$0xff] %vm43, %v62
  // Predicated region
  $region18: #{transformer_forward.36} parent=0 // pred_check
    %p65 = pneg %p15
  $region19: #{transformer_forward.36} parent=0 // pred_check_branch
    %67 = sbr.rel (%p65) target = $region21
  $region20: #{transformer_forward.36} parent=0 // pred_region
    %v68 = vld [vmem:[#allocation2] sm:$0xff]
    %v69 = vld [vmem:[#allocation2 + $0x8] sm:$0xff]
    %v70 = vld [vmem:[%s2] sm:$0x1]
    %v72 = vperm.slane %v70, 0
    %v74 = vadd.f32 %v68, %v72
    %v75 = vadd.f32 %v69, %v72
    %76 = vst.msk [vmem:[%s3] sm:$0xff] %vm43, %v74
    %77 = vst.msk [vmem:[%s3 + $0x8] sm:$0xff] %vm43, %v75
  $region21: #{transformer_forward.36} parent=0 // pred_fallthru
    _
  // Predicated region
  $region22: #{transformer_forward.36} parent=0 // pred_check
    _
  $region23: #{transformer_forward.36} parent=0 // pred_check_branch
    %79 = sbr.rel (0) target = $region25
  $region24: #{transformer_forward.36} parent=0 // pred_region
    _
  $region25: #{transformer_forward.36} parent=0 // pred_fallthru
    _
  // Predicated region
  $region26: #{transformer_forward.36} parent=0 // pred_check
    _
  $region27: #{transformer_forward.36} parent=0 // pred_check_branch
    %81 = sbr.rel (0) target = $region29
  $region28: #{transformer_forward.36} parent=0 // pred_region
    _
  $region29: #{transformer_forward.36} parent=0 // pred_fallthru
    _

// kernel: transformer_forward.49
$region0: #{transformer_forward.49}
  #allocation0 [shape = 'u32[]', space=smem, size = 0x4, offset = 0x4, fixed_abs, tag = 'smem constant byte address 0x4 - core index']
  #allocation1 [shape = 'u32[72,128]{1,0:T(1,128)}', space=vmem, size = 0x9000, scoped, tag = 'internal scratch']
  #allocation2 [shape = 'f32[16,50]{1,0:T(8,128)}', space=vmem, size = 0x2000, scoped, tag = 'scratch operand']
  %s0 = inlined_call_operand.vmem [shape: f32[16,32], index: 0, kind: input, shape index: {}]
  %s1 = inlined_call_operand.vmem [shape: bf16[32,50], index: 1, kind: input, shape index: {}]
  %s2 = inlined_call_operand.vmem [shape: f32[1,50], index: 2, kind: input, shape index: {}]
  %s3 = inlined_call_operand.hbm [shape: f32[16,50], index: 3, kind: output, shape index: {}]
  %s4 = sld [smem:[#allocation0]]
  $region30: #{transformer_forward.49} parent=0
    _
  %s6 = ssub.s32 1, %s4
  %s7 = scalar_select 0, %s6, %s4
  $region1: #{transformer_forward.49} parent=0
    #allocation3 [shape = 'u8[8192]{0}', space=vmem, size = 0x2000, scoped, tag = 'output window, operand 0, single buffered']
    #allocation4 [shape = 's32[1]{0}', space=sflag, size = 0x4, scoped, tag = 'scoped memory for transformer_forward.49']
    %8 = vsyncpa [#allocation4], 0
    // Predicated region
    $region2: #{transformer_forward.49} parent=1 // pred_check
      _
    $region3: #{transformer_forward.49} parent=1 // pred_check_branch
      %10 = sbr.rel (0) target = $region5
    $region4: #{transformer_forward.49} parent=1 // pred_region
      _
    $region5: #{transformer_forward.49} parent=1 // pred_fallthru
      _
    // Predicated region
    $region6: #{transformer_forward.49} parent=1 // pred_check
      _
    $region7: #{transformer_forward.49} parent=1 // pred_check_branch
      %12 = sbr.rel (0) target = $region9
    $region8: #{transformer_forward.49} parent=1 // pred_region
      _
    $region9: #{transformer_forward.49} parent=1 // pred_fallthru
      _
    // Predicated region
    $region10: #{transformer_forward.49} parent=1 // pred_check
      _
    $region11: #{transformer_forward.49} parent=1 // pred_check_branch
      %14 = sbr.rel (0) target = $region13
    $region12: #{transformer_forward.49} parent=1 // pred_region
      _
    $region13: #{transformer_forward.49} parent=1 // pred_fallthru
      _
    %p16 = scmp.eq.s32.totalorder 0, 0
    // Predicated region
    $region14: #{transformer_forward.49} parent=1 // pred_check
      %p17 = pneg %p16
    $region15: #{transformer_forward.49} parent=1 // pred_check_branch
      %19 = sbr.rel (%p17) target = $region17
    $region16: #{transformer_forward.49} parent=1 // pred_region
      %vm20 = vcmask 408576
      %21 = vst.msk [vmem:[#allocation2] sm:$0xff] %vm20, 0.0
      %22 = vst.msk [vmem:[#allocation2 + $0x8] sm:$0xff] %vm20, 0.0
    $region17: #{transformer_forward.49} parent=1 // pred_fallthru
      _
    %v23 = vld [vmem:[#allocation2] sm:$0xff]
    %v24 = vld [vmem:[#allocation2 + $0x8] sm:$0xff]
    %v25 = vld [vmem:[%s0] sm:$0xff]
    %v26 = vld [vmem:[%s0 + $0x8] sm:$0xff]
    %v27 = vpack.c.bf16 %v26, %v25
    %v28 = vld [vmem:[%s1] sm:$0xf]
    %v29 = vld [vmem:[%s1 + $0x4] sm:$0xf]
    %v30 = vld [vmem:[%s1 + $0x8] sm:$0xf]
    %v31 = vld [vmem:[%s1 + $0xc] sm:$0xf]
    %v36 = vunpack.c.l.b16 %v28
    %v37 = vunpack.c.l.b16 %v29
    %v38 = vunpack.c.l.b16 %v30
    %v39 = vunpack.c.l.b16 %v31
    %v40 = vpack.c.b16 %v37, %v36
    %v41 = vpack.c.b16 %v39, %v38
    %vm44 = vcmask 261120
    %v46 = vsel %vm44, %v27, 0
    %48 = vmatpush.bf16.msra.mxu0 0
    %49 = vmatpush.bf16.msra.mxu0 0
    %50 = vmatpush.bf16.msra.mxu0 0
    %51 = vmatpush.bf16.msra.mxu0 0
    %52 = vmatpush.bf16.msra.mxu0 0
    %53 = vmatpush.bf16.msra.mxu0 0
    %54 = vmatpush.bf16.msra.mxu0 %v41
    %55 = vmatpush.bf16.msra.mxu0 %v40
    %56 = vmatmul.bf16.gmra.mxu0 %v46
    %v57 = vpop.f32.mrf.mxu0
    %v58 = vadd.f32 0.0, %v57
    %v59 = vpop.f32.mrf.mxu0
    %v60 = vadd.f32 0.0, %v59
    %61 = vdwg.mxu0
    %v62 = vadd.f32 %v23, %v58
    %v63 = vadd.f32 %v24, %v60
    %vm64 = vcmask 408576
    %65 = vst.msk [vmem:[#allocation2] sm:$0xff] %vm64, %v62
    %66 = vst.msk [vmem:[#allocation2 + $0x8] sm:$0xff] %vm64, %v63
    // Predicated region
    $region18: #{transformer_forward.49} parent=1 // pred_check
      %p67 = pneg %p16
    $region19: #{transformer_forward.49} parent=1 // pred_check_branch
      %69 = sbr.rel (%p67) target = $region21
    $region20: #{transformer_forward.49} parent=1 // pred_region
      %v70 = vld [vmem:[#allocation2] sm:$0xff]
      %v71 = vld [vmem:[#allocation2 + $0x8] sm:$0xff]
      %v72 = vld [vmem:[%s2] sm:$0x1]
      %v74 = vperm.slane %v72, 0
      %v76 = vadd.f32 %v70, %v74
      %v77 = vadd.f32 %v71, %v74
      %78 = vst.msk [vmem:[#allocation3] sm:$0xff] %vm64, %v76
      %79 = vst.msk [vmem:[#allocation3 + $0x8] sm:$0xff] %vm64, %v77
    $region21: #{transformer_forward.49} parent=1 // pred_fallthru
      _
    // Predicated region
    $region22: #{transformer_forward.49} parent=1 // pred_check
      _
    $region23: #{transformer_forward.49} parent=1 // pred_check_branch
      %81 = sbr.rel (0) target = $region25
    $region24: #{transformer_forward.49} parent=1 // pred_region
      %83 = vsyncadd [#allocation4], 0
      %s84 = sshll.u32 [#allocation3], 4
      %s85 = int_to_ptr.vmem [resolvable:$true] %s84
      %s86 = sshll.u32 %s3, 4
      %s87 = int_to_ptr.hbm [resolvable:$true] %s86
      %92 = dma.vmem_to_hbm [thread:$0]  %s85, 256, %s87, [#allocation4], 128, 128, 8
    $region25: #{transformer_forward.49} parent=1 // pred_fallthru
      _
    // Predicated region
    $region26: #{transformer_forward.49} parent=1 // pred_check
      _
    $region27: #{transformer_forward.49} parent=1 // pred_check_branch
      %94 = sbr.rel (0) target = $region29
    $region28: #{transformer_forward.49} parent=1 // pred_region
      %96 = dma.done [#allocation4], 256
    $region29: #{transformer_forward.49} parent=1 // pred_fallthru
      _
    %97 = vsyncpa [#allocation4], 1

// kernel: transformer_forward.34
$region0: #{transformer_forward.34}
  #allocation0 [shape = 'u32[]', space=smem, size = 0x4, offset = 0x4, fixed_abs, tag = 'smem constant byte address 0x4 - core index']
  #allocation1 [shape = 'u32[72,128]{1,0:T(1,128)}', space=vmem, size = 0x9000, scoped, tag = 'internal scratch']
  #allocation2 [shape = 'f32[4,8,1]{2,1,0:T(8,128)}', space=vmem, size = 0x4000, scoped, tag = 'scratch operand']
  #allocation3 [shape = 'f32[4,8,1]{2,1,0:T(8,128)}', space=vmem, size = 0x4000, scoped, tag = 'scratch operand']
  #allocation4 [shape = 'f32[8,32]{1,0:T(8,128)}', space=vmem, size = 0x1000, scoped, tag = 'scratch operand']
  %s0 = inlined_call_operand.vmem [shape: f32[2,8,32], index: 0, kind: input, shape index: {}]
  %s1 = inlined_call_operand.vmem [shape: f32[2,8,32], index: 1, kind: input, shape index: {}]
  %s2 = inlined_call_operand.vmem [shape: f32[2,8,32], index: 2, kind: input, shape index: {}]
  %s3 = inlined_call_operand.vmem [shape: f32[1,8,8], index: 3, kind: input, shape index: {}]
  %s4 = inlined_call_operand.vmem [shape: f32[2,8,32], index: 4, kind: output, shape index: {}]
  %s5 = sld [smem:[#allocation0]]
  $region57: #{transformer_forward.34} parent=0
    _
  %s7 = ssub.s32 1, %s5
  %s8 = scalar_select 0, %s7, %s5
  loop: start=0, step=1, limit=4
  $region2: #{transformer_forward.34} parent=0 // loop_pre_header
    _
  $region3: #{transformer_forward.34} parent=0 // loop_header
    %s10 = sphi 0, %s14
    %p11 = scmp.ge.s32.totalorder %s10, 4
    %s17 = sphi 0, %s36
    %s18 = sphi 0, %s32
    %s19 = sphi 0, %s28
    %s20 = sphi 0, %s17
    %s21 = sphi 0, %s18
    %s22 = sphi 0, %s19
    %s23 = sphi 0, %s20
    %s24 = sphi 0, %s21
    %s25 = sphi 0, %s22
    %s41 = sphi 0, %s43
    %s44 = sphi 0, %s41
    %s45 = sphi 0, %s44
    %s61 = sphi 0, %s45
    %s69 = sphi 0, %s71
    %s72 = sphi 0, %s69
    %s73 = sphi 0, %s72
    %s89 = sphi 0, %s73
    %s97 = sphi 0, %s99
    %s100 = sphi 0, %s97
    %s101 = sphi 0, %s100
    %s117 = sphi 0, %s101
    %s125 = sphi 0, %s127
    %s128 = sphi 0, %s125
    %s129 = sphi 0, %s128
    %s145 = sphi 0, %s129
    %s153 = sphi 0, %s155
    %s156 = sphi 0, %s153
    %s157 = sphi 0, %s156
    %s173 = sphi 0, %s157
  $region4: #{transformer_forward.34} parent=0 // loop_header_branch
    %13 = sbr.rel (%p11) target = $region8
  $region5: #{transformer_forward.34} parent=0 // loop_body
    %s15 = ssub.s32 %s10, 1
    %s16 = ssub.s32 %s10, 2
    %s26 = sadd.s32 1, %s19
    %p27 = scmp.ge.s32.totalorder %s26, 1
    %s28 = scalar_select %p27, 0, %s26
    %s29 = sadd.s32 1, %s18
    %s30 = scalar_select %p27, %s29, %s18
    %p31 = scmp.ge.s32.totalorder %s30, 1
    %s32 = scalar_select %p31, 0, %s30
    %s33 = sadd.s32 1, %s17
    %s34 = scalar_select %p31, %s33, %s17
    %p35 = scmp.ge.s32.totalorder %s34, 2
    %s36 = scalar_select %p35, 0, %s34
    %s37 = ssub.s32 %s17, %s36
    %s38 = ssub.s32 %s18, %s32
    %s39 = sor.u32 %s37, %s38
    %p40 = scmp.eq.s32.totalorder %s39, 0
    %s42 = sadd.s32 %s41, 1
    %s43 = scalar_select %p40, %s41, %s42
    %p46 = pneg %p40
    %p47 = scmp.eq.s32.totalorder %s10, 1
    %p48 = por %p46, %p47
    %p49 = scmp.ne.s32.totalorder %s41, %s44
    %p50 = scmp.eq.s32.totalorder %s10, 0
    %p51 = por %p49, %p50
    %p52 = scmp.ne.s32.totalorder %s41, %s44
    %p53 = scmp.eq.s32.totalorder %s15, 1
    %p54 = por %p52, %p53
    %p55 = scmp.ne.s32.totalorder %s44, %s45
    %p56 = scmp.eq.s32.totalorder %s15, 0
    %p57 = por %p55, %p56
    %p58 = scmp.ne.s32.totalorder %s44, %s45
    %p59 = scmp.eq.s32.totalorder %s16, 1
    %p60 = por %p58, %p59
    %p62 = scmp.ne.s32.totalorder %s45, %s61
    %p63 = scmp.eq.s32.totalorder %s16, 0
    %p64 = por %p62, %p63
    %s65 = ssub.s32 %s17, %s36
    %s66 = ssub.s32 %s19, %s28
    %s67 = sor.u32 %s65, %s66
    %p68 = scmp.eq.s32.totalorder %s67, 0
    %s70 = sadd.s32 %s69, 1
    %s71 = scalar_select %p68, %s69, %s70
    %p74 = pneg %p68
    %p75 = scmp.eq.s32.totalorder %s10, 1
    %p76 = por %p74, %p75
    %p77 = scmp.ne.s32.totalorder %s69, %s72
    %p78 = scmp.eq.s32.totalorder %s10, 0
    %p79 = por %p77, %p78
    %p80 = scmp.ne.s32.totalorder %s69, %s72
    %p81 = scmp.eq.s32.totalorder %s15, 1
    %p82 = por %p80, %p81
    %p83 = scmp.ne.s32.totalorder %s72, %s73
    %p84 = scmp.eq.s32.totalorder %s15, 0
    %p85 = por %p83, %p84
    %p86 = scmp.ne.s32.totalorder %s72, %s73
    %p87 = scmp.eq.s32.totalorder %s16, 1
    %p88 = por %p86, %p87
    %p90 = scmp.ne.s32.totalorder %s73, %s89
    %p91 = scmp.eq.s32.totalorder %s16, 0
    %p92 = por %p90, %p91
    %s93 = ssub.s32 %s17, %s36
    %s94 = ssub.s32 %s19, %s28
    %s95 = sor.u32 %s93, %s94
    %p96 = scmp.eq.s32.totalorder %s95, 0
    %s98 = sadd.s32 %s97, 1
    %s99 = scalar_select %p96, %s97, %s98
    %p102 = pneg %p96
    %p103 = scmp.eq.s32.totalorder %s10, 1
    %p104 = por %p102, %p103
    %p105 = scmp.ne.s32.totalorder %s97, %s100
    %p106 = scmp.eq.s32.totalorder %s10, 0
    %p107 = por %p105, %p106
    %p108 = scmp.ne.s32.totalorder %s97, %s100
    %p109 = scmp.eq.s32.totalorder %s15, 1
    %p110 = por %p108, %p109
    %p111 = scmp.ne.s32.totalorder %s100, %s101
    %p112 = scmp.eq.s32.totalorder %s15, 0
    %p113 = por %p111, %p112
    %p114 = scmp.ne.s32.totalorder %s100, %s101
    %p115 = scmp.eq.s32.totalorder %s16, 1
    %p116 = por %p114, %p115
    %p118 = scmp.ne.s32.totalorder %s101, %s117
    %p119 = scmp.eq.s32.totalorder %s16, 0
    %p120 = por %p118, %p119
    %s121 = ssub.s32 %s18, %s32
    %s122 = ssub.s32 %s19, %s28
    %s123 = sor.u32 %s121, %s122
    %p124 = scmp.eq.s32.totalorder %s123, 0
    %s126 = sadd.s32 %s125, 1
    %s127 = scalar_select %p124, %s125, %s126
    %p130 = pneg %p124
    %p131 = scmp.eq.s32.totalorder %s10, 1
    %p132 = por %p130, %p131
    %p133 = scmp.ne.s32.totalorder %s125, %s128
    %p134 = scmp.eq.s32.totalorder %s10, 0
    %p135 = por %p133, %p134
    %p136 = scmp.ne.s32.totalorder %s125, %s128
    %p137 = scmp.eq.s32.totalorder %s15, 1
    %p138 = por %p136, %p137
    %p139 = scmp.ne.s32.totalorder %s128, %s129
    %p140 = scmp.eq.s32.totalorder %s15, 0
    %p141 = por %p139, %p140
    %p142 = scmp.ne.s32.totalorder %s128, %s129
    %p143 = scmp.eq.s32.totalorder %s16, 1
    %p144 = por %p142, %p143
    %p146 = scmp.ne.s32.totalorder %s129, %s145
    %p147 = scmp.eq.s32.totalorder %s16, 0
    %p148 = por %p146, %p147
    %s149 = ssub.s32 %s17, %s36
    %s150 = ssub.s32 %s18, %s32
    %s151 = sor.u32 %s149, %s150
    %p152 = scmp.eq.s32.totalorder %s151, 0
    %s154 = sadd.s32 %s153, 1
    %s155 = scalar_select %p152, %s153, %s154
    %p158 = pneg %p152
    %p159 = scmp.eq.s32.totalorder %s10, 1
    %p160 = por %p158, %p159
    %p161 = scmp.ne.s32.totalorder %s153, %s156
    %p162 = scmp.eq.s32.totalorder %s10, 0
    %p163 = por %p161, %p162
    %p164 = scmp.ne.s32.totalorder %s153, %s156
    %p165 = scmp.eq.s32.totalorder %s15, 1
    %p166 = por %p164, %p165
    %p167 = scmp.ne.s32.totalorder %s156, %s157
    %p168 = scmp.eq.s32.totalorder %s15, 0
    %p169 = por %p167, %p168
    %p170 = scmp.ne.s32.totalorder %s156, %s157
    %p171 = scmp.eq.s32.totalorder %s16, 1
    %p172 = por %p170, %p171
    %p174 = scmp.ne.s32.totalorder %s157, %s173
    %p175 = scmp.eq.s32.totalorder %s16, 0
    %p176 = por %p174, %p175
    %p177 = scmp.le.s32.totalorder 1, %s10
    %p178 = scmp.lt.s32.totalorder %s10, 3
    %p179 = pnand %p177, %p178
    %p180 = pneg %p179
    // Predicated region
    $region9: #{transformer_forward.34} parent=5 // pred_check
      _
    $region10: #{transformer_forward.34} parent=5 // pred_check_branch
      %182 = sbr.rel (%p179) target = $region12
    $region11: #{transformer_forward.34} parent=5 // pred_region
      %s183 = ssub.s32 %s10, 1
      // Predicated region
      $region13: #{transformer_forward.34} parent=11 // pred_check
        %p184 = pneg %p141
      $region14: #{transformer_forward.34} parent=11 // pred_check_branch
        %186 = sbr.rel (%p184) target = $region16
      $region15: #{transformer_forward.34} parent=11 // pred_region
        %p187 = scmp.lt.s32.totalorder %s21, 0
        %s188 = scalar_select %p187, %s21, 0
        %p189 = scmp.lt.s32.totalorder %s22, 0
        %s190 = scalar_select %p189, %s22, 0
        %s191 = sadd.s32 %s190, %s188
        %s192 = smul.addr %s191, 8
        %s193 = scalar_lea.vmem %s3, %s192
      $region16: #{transformer_forward.34} parent=11 // pred_fallthru
        _
    $region12: #{transformer_forward.34} parent=5 // pred_fallthru
      _
    %p194 = scmp.lt.s32.totalorder %s10, 2
    // Predicated region
    $region17: #{transformer_forward.34} parent=5 // pred_check
      %p195 = pneg %p194
    $region18: #{transformer_forward.34} parent=5 // pred_check_branch
      %197 = sbr.rel (%p195) target = $region20
    $region19: #{transformer_forward.34} parent=5 // pred_region
      // Predicated region
      $region21: #{transformer_forward.34} parent=19 // pred_check
        %p198 = pneg %p51
      $region22: #{transformer_forward.34} parent=19 // pred_check_branch
        %200 = sbr.rel (%p198) target = $region24
      $region23: #{transformer_forward.34} parent=19 // pred_region
        %p201 = scmp.lt.s32.totalorder %s17, 1
        %s202 = scalar_select %p201, %s17, 1
        %p203 = scmp.lt.s32.totalorder %s18, 0
        %s204 = scalar_select %p203, %s18, 0
        %s205 = sadd.s32 %s204, %s202
        %s206 = smul.addr %s205, 8
        %s207 = scalar_lea.vmem %s0, %s206
      $region24: #{transformer_forward.34} parent=19 // pred_fallthru
        _
      // Predicated region
      $region25: #{transformer_forward.34} parent=19 // pred_check
        %p208 = pneg %p79
      $region26: #{transformer_forward.34} parent=19 // pred_check_branch
        %210 = sbr.rel (%p208) target = $region28
      $region27: #{transformer_forward.34} parent=19 // pred_region
        %p211 = scmp.lt.s32.totalorder %s17, 1
        %s212 = scalar_select %p211, %s17, 1
        %p213 = scmp.lt.s32.totalorder %s19, 0
        %s214 = scalar_select %p213, %s19, 0
        %s215 = sadd.s32 %s214, %s212
        %s216 = smul.addr %s215, 8
        %s217 = scalar_lea.vmem %s1, %s216
      $region28: #{transformer_forward.34} parent=19 // pred_fallthru
        _
      // Predicated region
      $region29: #{transformer_forward.34} parent=19 // pred_check
        %p218 = pneg %p107
      $region30: #{transformer_forward.34} parent=19 // pred_check_branch
        %220 = sbr.rel (%p218) target = $region32
      $region31: #{transformer_forward.34} parent=19 // pred_region
        %p221 = scmp.lt.s32.totalorder %s17, 1
        %s222 = scalar_select %p221, %s17, 1
        %p223 = scmp.lt.s32.totalorder %s19, 0
        %s224 = scalar_select %p223, %s19, 0
        %s225 = sadd.s32 %s224, %s222
        %s226 = smul.addr %s225, 8
        %s227 = scalar_lea.vmem %s2, %s226
      $region32: #{transformer_forward.34} parent=19 // pred_fallthru
        _
    $region20: #{transformer_forward.34} parent=5 // pred_fallthru
      _
    %p228 = scmp.le.s32.totalorder 1, %s10
    %p229 = scmp.lt.s32.totalorder %s10, 3
    %p230 = pnand %p228, %p229
    %p231 = pneg %p230
    // Predicated region
    $region33: #{transformer_forward.34} parent=5 // pred_check
      _
    $region34: #{transformer_forward.34} parent=5 // pred_check_branch
      %233 = sbr.rel (%p230) target = $region36
    $region35: #{transformer_forward.34} parent=5 // pred_region
      %s234 = ssub.s32 %s10, 1
      %p235 = scmp.lt.s32.totalorder %s20, 1
      %s236 = scalar_select %p235, %s20, 1
      %p237 = scmp.lt.s32.totalorder %s21, 0
      %s238 = scalar_select %p237, %s21, 0
      %s239 = sadd.s32 %s238, %s236
      %s240 = smul.addr %s239, 8
      %s241 = scalar_lea.vmem %s0, %s240
      %p242 = pneg %p57
      %p243 = pneg %p54
      %p244 = scmp.lt.s32.totalorder %s20, 1
      %s245 = scalar_select %p244, %s20, 1
      %p246 = scmp.lt.s32.totalorder %s22, 0
      %s247 = scalar_select %p246, %s22, 0
      %s248 = sadd.s32 %s247, %s245
      %s249 = smul.addr %s248, 8
      %s250 = scalar_lea.vmem %s1, %s249
      %p251 = pneg %p85
      %p252 = pneg %p82
      %p253 = scmp.lt.s32.totalorder %s20, 1
      %s254 = scalar_select %p253, %s20, 1
      %p255 = scmp.lt.s32.totalorder %s22, 0
      %s256 = scalar_select %p255, %s22, 0
      %s257 = sadd.s32 %s256, %s254
      %s258 = smul.addr %s257, 8
      %s259 = scalar_lea.vmem %s2, %s258
      %p260 = pneg %p113
      %p261 = pneg %p110
      %p262 = scmp.lt.s32.totalorder %s21, 0
      %s263 = scalar_select %p262, %s21, 0
      %p264 = scmp.lt.s32.totalorder %s22, 0
      %s265 = scalar_select %p264, %s22, 0
      %s266 = sadd.s32 %s265, %s263
      %s267 = smul.addr %s266, 8
      %s268 = scalar_lea.vmem %s3, %s267
      %p269 = pneg %p141
      %p270 = pneg %p138
      %p271 = pneg %p169
      %p272 = pneg %p166
      %p273 = scmp.lt.s32.totalorder %s20, 1
      %s274 = scalar_select %p273, %s20, 1
      %p275 = scmp.lt.s32.totalorder %s21, 0
      %s276 = scalar_select %p275, %s21, 0
      %s277 = sadd.s32 %s276, %s274
      %s278 = smul.addr %s277, 8
      %s279 = scalar_lea.vmem %s4, %s278
      %p280 = scmp.lt.s32.totalorder %s20, 1
      %s281 = scalar_select %p280, %s20, 1
      %p282 = scmp.lt.s32.totalorder %s21, 0
      %s283 = scalar_select %p282, %s21, 0
      %s284 = sadd.s32 %s283, %s281
      %s285 = smul.addr %s284, 8
      %s286 = scalar_lea.vmem %s0, %s285
      %p287 = scmp.lt.s32.totalorder %s20, 1
      %s288 = scalar_select %p287, %s20, 1
      %p289 = scmp.lt.s32.totalorder %s22, 0
      %s290 = scalar_select %p289, %s22, 0
      %s291 = sadd.s32 %s290, %s288
      %s292 = smul.addr %s291, 8
      %s293 = scalar_lea.vmem %s1, %s292
      %p294 = scmp.lt.s32.totalorder %s20, 1
      %s295 = scalar_select %p294, %s20, 1
      %p296 = scmp.lt.s32.totalorder %s22, 0
      %s297 = scalar_select %p296, %s22, 0
      %s298 = sadd.s32 %s297, %s295
      %s299 = smul.addr %s298, 8
      %s300 = scalar_lea.vmem %s2, %s299
      %p301 = scmp.lt.s32.totalorder %s21, 0
      %s302 = scalar_select %p301, %s21, 0
      %p303 = scmp.lt.s32.totalorder %s22, 0
      %s304 = scalar_select %p303, %s22, 0
      %s305 = sadd.s32 %s304, %s302
      %s306 = smul.addr %s305, 8
      %s307 = scalar_lea.vmem %s3, %s306
      %p308 = scmp.lt.s32.totalorder %s20, 1
      %s309 = scalar_select %p308, %s20, 1
      %p310 = scmp.lt.s32.totalorder %s21, 0
      %s311 = scalar_select %p310, %s21, 0
      %s312 = sadd.s32 %s311, %s309
      %s313 = smul.addr %s312, 8
      %s314 = scalar_lea.vmem %s4, %s313
      %p316 = scmp.eq.s32.totalorder %s22, 0
      // Predicated region
      $region37: #{transformer_forward.34} parent=35 // pred_check
        %p317 = pneg %p316
      $region38: #{transformer_forward.34} parent=35 // pred_check_branch
        %319 = sbr.rel (%p317) target = $region40
      $region39: #{transformer_forward.34} parent=35 // pred_region
        %vm320 = vcmask 7168
        %321 = vst.msk [vmem:[#allocation2] sm:$0xff] %vm320, -inf
        %322 = vst.msk [vmem:[#allocation2 + $0x8] sm:$0xff] %vm320, -inf
        %323 = vst.msk [vmem:[#allocation2 + $0x10] sm:$0xff] %vm320, -inf
        %324 = vst.msk [vmem:[#allocation2 + $0x18] sm:$0xff] %vm320, -inf
        %325 = vst.msk [vmem:[#allocation3] sm:$0xff] %vm320, 0.0
        %326 = vst.msk [vmem:[#allocation3 + $0x8] sm:$0xff] %vm320, 0.0
        %327 = vst.msk [vmem:[#allocation3 + $0x10] sm:$0xff] %vm320, 0.0
        %328 = vst.msk [vmem:[#allocation3 + $0x18] sm:$0xff] %vm320, 0.0
        %vm329 = vcmask 261120
        %330 = vst.msk [vmem:[#allocation4] sm:$0xff] %vm329, 0.0
      $region40: #{transformer_forward.34} parent=35 // pred_fallthru
        _
      %v331 = vld [vmem:[%s286] sm:$0xff]
      %v332 = vld [vmem:[%s293] sm:$0xff]
      %v333 = vld [vmem:[%s300] sm:$0xff]
      %v334 = vld [vmem:[%s307] sm:$0xff]
      %vm335 = vcmp.eq.f32.partialorder %v334, 0.0
      %v336 = vsel %vm335, -1e+09, 0.0
      %v337 = vmul.f32 %v331, 0.35355338
      %v338 = vpack.c.bf16 %v337, %v337
      %v339 = vpack.c.bf16 %v332, %v332
      %v340 = vpack.c.bf16 %v333, %v333
      %vm341 = vcmask 64512
      %v343 = vsel %vm341, %v338, 0
      %v346 = vsel %vm341, %v339, 0
      %348 = vmatpush.bf16.xpose.msra.mxu0 0
      %349 = vmatpush.bf16.xpose.msra.mxu0 0
      %350 = vmatpush.bf16.xpose.msra.mxu0 0
      %351 = vmatpush.bf16.xpose.msra.mxu0 0
      %352 = vmatpush.bf16.xpose.msra.mxu0 0
      %353 = vmatpush.bf16.xpose.msra.mxu0 0
      %354 = vmatpush.bf16.xpose.msra.mxu0 0
      %355 = vmatpush.bf16.xpose.msra.mxu0 %v346
      %356 = vmatmul.bf16.gmra.mxu0 %v343
      %v357 = vpop.f32.mrf.mxu0
      %v358 = vadd.f32 %v336, %v357
      %v359 = vpop.f32.mrf.mxu0
      %360 = vdwg.mxu0
      %v361 = vld [vmem:[#allocation2] sm:$0xff]
      %v362 = vsel %vm341, %v358, -inf
      %363 = vmax.xlane.f32.xlu0 %v362
      %v364 = vpop.xlane.xlu0 %363
      %v365 = vmax.f32 %v361, %v364
      %v366 = vsub.f32 %v361, %v365
      %v367 = vmul.f32 %v366, 1.442695
      %v368 = vpow.pop %v367
      %370 = vset.pattern.permute.xlu0 0
      %371 = vperm.xlu0 %370, %v365
      %v372 = vpop.permute.xlu0 %371
      %v374 = vsub.f32 %v358, %v372
      %v375 = vmul.f32 %v374, 1.442695
      %v376 = vpow.pop %v375
      %v377 = vld [vmem:[#allocation3] sm:$0xff]
      %v378 = vmul.f32 %v368, %v377
      %v379 = vsel %vm341, %v376, 0.0
      %380 = vadd.xlane.f32.xlu0 %v379
      %v381 = vpop.xlane.xlu0 %380
      %v382 = vadd.f32 %v378, %v381
      %vm383 = vcmask 7168
      %384 = vst.msk [vmem:[#allocation3] sm:$0xff] %vm383, %v382
      %v385 = vpack.c.bf16 %v376, %v376
      %v387 = vsel %vm341, %v385, 0
      %vm389 = vcmask 1043456
      %v391 = vsel %vm389, %v340, 0
      %393 = vmatpush.bf16.msra.mxu0 0
      %394 = vmatpush.bf16.msra.mxu0 0
      %395 = vmatpush.bf16.msra.mxu0 0
      %396 = vmatpush.bf16.msra.mxu0 0
      %397 = vmatpush.bf16.msra.mxu0 0
      %398 = vmatpush.bf16.msra.mxu0 0
      %399 = vmatpush.bf16.msra.mxu0 0
      %400 = vmatpush.bf16.msra.mxu0 %v391
      %401 = vmatmul.bf16.gmra.mxu0 %v387
      %v402 = vpop.f32.mrf.mxu0
      %v403 = vadd.f32 0.0, %v402
      %v404 = vpop.f32.mrf.mxu0
      %405 = vdwg.mxu0
      %v406 = vld [vmem:[#allocation4] sm:$0xff]
      %408 = vset.pattern.permute.xlu0 0
      %409 = vperm.xlu0 %408, %v368
      %v410 = vpop.permute.xlu0 %409
      %v412 = vmul.f32 %v410, %v406
      %v413 = vadd.f32 %v412, %v403
      %414 = vst.msk [vmem:[#allocation4] sm:$0xff] %vm341, %v413
      %415 = vst.msk [vmem:[#allocation2] sm:$0xff] %vm383, %v365
      %v417 = vunpack.c.l.b16 %v338
      %v418 = vpack.c.b16 %v417, %v417
      %419 = vrot.lane.b32.xlu0 %v418, 120
      %v420 = vpop.permute.xlu0 %419
      %v422 = vunpack.c.l.b16 %v339
      %v423 = vpack.c.b16 %v422, %v422
      %424 = vrot.lane.b32.xlu0 %v423, 120
      %v425 = vpop.permute.xlu0 %424
      %v427 = vsel %vm341, %v420, 0
      %v430 = vsel %vm341, %v425, 0
      %432 = vmatpush.bf16.xpose.msra.mxu0 0
      %433 = vmatpush.bf16.xpose.msra.mxu0 0
      %434 = vmatpush.bf16.xpose.msra.mxu0 0
      %435 = vmatpush.bf16.xpose.msra.mxu0 0
      %436 = vmatpush.bf16.xpose.msra.mxu0 0
      %437 = vmatpush.bf16.xpose.msra.mxu0 0
      %438 = vmatpush.bf16.xpose.msra.mxu0 0
      %439 = vmatpush.bf16.xpose.msra.mxu0 %v430
      %440 = vmatmul.bf16.gmra.mxu0 %v427
      %v441 = vpop.f32.mrf.mxu0
      %v442 = vadd.f32 %v336, %v441
      %v443 = vpop.f32.mrf.mxu0
      %444 = vdwg.mxu0
      %s445 = scalar_lea.vmem [#allocation2], 8
      %v446 = vld [vmem:[%s445] sm:$0xff]
      %v447 = vsel %vm341, %v442, -inf
      %448 = vmax.xlane.f32.xlu0 %v447
      %v449 = vpop.xlane.xlu0 %448
      %v450 = vmax.f32 %v446, %v449
      %v451 = vsub.f32 %v446, %v450
      %v452 = vmul.f32 %v451, 1.442695
      %v453 = vpow.pop %v452
      %455 = vset.pattern.permute.xlu0 0
      %456 = vperm.xlu0 %455, %v450
      %v457 = vpop.permute.xlu0 %456
      %v459 = vsub.f32 %v442, %v457
      %v460 = vmul.f32 %v459, 1.442695
      %v461 = vpow.pop %v460
      %s462 = scalar_lea.vmem [#allocation3], 8
      %v463 = vld [vmem:[%s462] sm:$0xff]
      %v464 = vmul.f32 %v453, %v463
      %v465 = vsel %vm341, %v461, 0.0
      %466 = vadd.xlane.f32.xlu0 %v465
      %v467 = vpop.xlane.xlu0 %466
      %v468 = vadd.f32 %v464, %v467
      %469 = vst.msk [vmem:[%s462] sm:$0xff] %vm383, %v468
      %v470 = vpack.c.bf16 %v461, %v461
      %v472 = vunpack.c.l.b16 %v340
      %v473 = vpack.c.b16 %v472, %v472
      %474 = vrot.lane.b32.xlu0 %v473, 120
      %v475 = vpop.permute.xlu0 %474
      %v477 = vsel %vm341, %v470, 0
      %v480 = vsel %vm389, %v475, 0
      %482 = vmatpush.bf16.msra.mxu0 0
      %483 = vmatpush.bf16.msra.mxu0 0
      %484 = vmatpush.bf16.msra.mxu0 0
      %485 = vmatpush.bf16.msra.mxu0 0
      %486 = vmatpush.bf16.msra.mxu0 0
      %487 = vmatpush.bf16.msra.mxu0 0
      %488 = vmatpush.bf16.msra.mxu0 0
      %489 = vmatpush.bf16.msra.mxu0 %v480
      %490 = vmatmul.bf16.gmra.mxu0 %v477
      %v491 = vpop.f32.mrf.mxu0
      %v492 = vadd.f32 0.0, %v491
      %v493 = vpop.f32.mrf.mxu0
      %494 = vdwg.mxu0
      %v495 = vld [vmem:[#allocation4] sm:$0xff]
      %497 = vset.pattern.permute.xlu0 0
      %498 = vperm.xlu0 %497, %v453
      %v499 = vpop.permute.xlu0 %498
      %v501 = vmul.f32 %v499, %v495
      %503 = vrot.lane.b32.xlu0 %v492, 8
      %v504 = vpop.permute.xlu0 %503
      %v506 = vadd.f32 %v501, %v504
      %vm507 = vcmask 130112
      %508 = vst.msk [vmem:[#allocation4] sm:$0xff] %vm507, %v506
      %509 = vst.msk [vmem:[%s445] sm:$0xff] %vm383, %v450
      %510 = vrot.lane.b32.xlu0 %v418, 112
      %v511 = vpop.permute.xlu0 %510
      %512 = vrot.lane.b32.xlu0 %v423, 112
      %v513 = vpop.permute.xlu0 %512
      %v515 = vsel %vm341, %v511, 0
      %v518 = vsel %vm341, %v513, 0
      %520 = vmatpush.bf16.xpose.msra.mxu0 0
      %521 = vmatpush.bf16.xpose.msra.mxu0 0
      %522 = vmatpush.bf16.xpose.msra.mxu0 0
      %523 = vmatpush.bf16.xpose.msra.mxu0 0
      %524 = vmatpush.bf16.xpose.msra.mxu0 0
      %525 = vmatpush.bf16.xpose.msra.mxu0 0
      %526 = vmatpush.bf16.xpose.msra.mxu0 0
      %527 = vmatpush.bf16.xpose.msra.mxu0 %v518
      %528 = vmatmul.bf16.gmra.mxu0 %v515
      %v529 = vpop.f32.mrf.mxu0
      %v530 = vadd.f32 %v336, %v529
      %v531 = vpop.f32.mrf.mxu0
      %532 = vdwg.mxu0
      %s533 = scalar_lea.vmem [#allocation2], 16
      %v534 = vld [vmem:[%s533] sm:$0xff]
      %v535 = vsel %vm341, %v530, -inf
      %536 = vmax.xlane.f32.xlu0 %v535
      %v537 = vpop.xlane.xlu0 %536
      %v538 = vmax.f32 %v534, %v537
      %v539 = vsub.f32 %v534, %v538
      %v540 = vmul.f32 %v539, 1.442695
      %v541 = vpow.pop %v540
      %543 = vset.pattern.permute.xlu0 0
      %544 = vperm.xlu0 %543, %v538
      %v545 = vpop.permute.xlu0 %544
      %v547 = vsub.f32 %v530, %v545
      %v548 = vmul.f32 %v547, 1.442695
      %v549 = vpow.pop %v548
      %s550 = scalar_lea.vmem [#allocation3], 16
      %v551 = vld [vmem:[%s550] sm:$0xff]
      %v552 = vmul.f32 %v541, %v551
      %v553 = vsel %vm341, %v549, 0.0
      %554 = vadd.xlane.f32.xlu0 %v553
      %v555 = vpop.xlane.xlu0 %554
      %v556 = vadd.f32 %v552, %v555
      %557 = vst.msk [vmem:[%s550] sm:$0xff] %vm383, %v556
      %v558 = vpack.c.bf16 %v549, %v549
      %559 = vrot.lane.b32.xlu0 %v473, 112
      %v560 = vpop.permute.xlu0 %559
      %v562 = vsel %vm341, %v558, 0
      %v565 = vsel %vm389, %v560, 0
      %567 = vmatpush.bf16.msra.mxu0 0
      %568 = vmatpush.bf16.msra.mxu0 0
      %569 = vmatpush.bf16.msra.mxu0 0
      %570 = vmatpush.bf16.msra.mxu0 0
      %571 = vmatpush.bf16.msra.mxu0 0
      %572 = vmatpush.bf16.msra.mxu0 0
      %573 = vmatpush.bf16.msra.mxu0 0
      %574 = vmatpush.bf16.msra.mxu0 %v565
      %575 = vmatmul.bf16.gmra.mxu0 %v562
      %v576 = vpop.f32.mrf.mxu0
      %v577 = vadd.f32 0.0, %v576
      %v578 = vpop.f32.mrf.mxu0
      %579 = vdwg.mxu0
      %v580 = vld [vmem:[#allocation4] sm:$0xff]
      %582 = vset.pattern.permute.xlu0 0
      %583 = vperm.xlu0 %582, %v541
      %v584 = vpop.permute.xlu0 %583
      %v586 = vmul.f32 %v584, %v580
      %588 = vrot.lane.b32.xlu0 %v577, 16
      %v589 = vpop.permute.xlu0 %588
      %v591 = vadd.f32 %v586, %v589
      %vm592 = vcmask 195712
      %593 = vst.msk [vmem:[#allocation4] sm:$0xff] %vm592, %v591
      %594 = vst.msk [vmem:[%s533] sm:$0xff] %vm383, %v538
      %595 = vrot.lane.b32.xlu0 %v418, 104
      %v596 = vpop.permute.xlu0 %595
      %597 = vrot.lane.b32.xlu0 %v423, 104
      %v598 = vpop.permute.xlu0 %597
      %v600 = vsel %vm341, %v596, 0
      %v603 = vsel %vm341, %v598, 0
      %605 = vmatpush.bf16.xpose.msra.mxu0 0
      %606 = vmatpush.bf16.xpose.msra.mxu0 0
      %607 = vmatpush.bf16.xpose.msra.mxu0 0
      %608 = vmatpush.bf16.xpose.msra.mxu0 0
      %609 = vmatpush.bf16.xpose.msra.mxu0 0
      %610 = vmatpush.bf16.xpose.msra.mxu0 0
      %611 = vmatpush.bf16.xpose.msra.mxu0 0
      %612 = vmatpush.bf16.xpose.msra.mxu0 %v603
      %613 = vmatmul.bf16.gmra.mxu0 %v600
      %v614 = vpop.f32.mrf.mxu0
      %v615 = vadd.f32 %v336, %v614
      %v616 = vpop.f32.mrf.mxu0
      %617 = vdwg.mxu0
      %s618 = scalar_lea.vmem [#allocation2], 24
      %v619 = vld [vmem:[%s618] sm:$0xff]
      %v620 = vsel %vm341, %v615, -inf
      %621 = vmax.xlane.f32.xlu0 %v620
      %v622 = vpop.xlane.xlu0 %621
      %v623 = vmax.f32 %v619, %v622
      %v624 = vsub.f32 %v619, %v623
      %v625 = vmul.f32 %v624, 1.442695
      %v626 = vpow.pop %v625
      %628 = vset.pattern.permute.xlu0 0
      %629 = vperm.xlu0 %628, %v623
      %v630 = vpop.permute.xlu0 %629
      %v632 = vsub.f32 %v615, %v630
      %v633 = vmul.f32 %v632, 1.442695
      %v634 = vpow.pop %v633
      %s635 = scalar_lea.vmem [#allocation3], 24
      %v636 = vld [vmem:[%s635] sm:$0xff]
      %v637 = vmul.f32 %v626, %v636
      %v638 = vsel %vm341, %v634, 0.0
      %639 = vadd.xlane.f32.xlu0 %v638
      %v640 = vpop.xlane.xlu0 %639
      %v641 = vadd.f32 %v637, %v640
      %642 = vst.msk [vmem:[%s635] sm:$0xff] %vm383, %v641
      %v643 = vpack.c.bf16 %v634, %v634
      %644 = vrot.lane.b32.xlu0 %v473, 104
      %v645 = vpop.permute.xlu0 %644
      %v647 = vsel %vm341, %v643, 0
      %v650 = vsel %vm389, %v645, 0
      %652 = vmatpush.bf16.msra.mxu0 0
      %653 = vmatpush.bf16.msra.mxu0 0
      %654 = vmatpush.bf16.msra.mxu0 0
      %655 = vmatpush.bf16.msra.mxu0 0
      %656 = vmatpush.bf16.msra.mxu0 0
      %657 = vmatpush.bf16.msra.mxu0 0
      %658 = vmatpush.bf16.msra.mxu0 0
      %659 = vmatpush.bf16.msra.mxu0 %v650
      %660 = vmatmul.bf16.gmra.mxu0 %v647
      %v661 = vpop.f32.mrf.mxu0
      %v662 = vadd.f32 0.0, %v661
      %v663 = vpop.f32.mrf.mxu0
      %664 = vdwg.mxu0
      %v665 = vld [vmem:[#allocation4] sm:$0xff]
      %667 = vset.pattern.permute.xlu0 0
      %668 = vperm.xlu0 %667, %v626
      %v669 = vpop.permute.xlu0 %668
      %v671 = vmul.f32 %v669, %v665
      %673 = vrot.lane.b32.xlu0 %v662, 24
      %v674 = vpop.permute.xlu0 %673
      %v676 = vadd.f32 %v671, %v674
      %vm677 = vcmask 261312
      %678 = vst.msk [vmem:[#allocation4] sm:$0xff] %vm677, %v676
      %679 = vst.msk [vmem:[%s618] sm:$0xff] %vm383, %v623
      // Predicated region
      $region41: #{transformer_forward.34} parent=35 // pred_check
        %p680 = pneg %p316
      $region42: #{transformer_forward.34} parent=35 // pred_check_branch
        %682 = sbr.rel (%p680) target = $region44
      $region43: #{transformer_forward.34} parent=35 // pred_region
        %v683 = vld [vmem:[#allocation3] sm:$0xff]
        %v684 = vrcp.pop %v683
        %686 = vset.pattern.permute.xlu0 0
        %687 = vperm.xlu0 %686, %v684
        %v688 = vpop.permute.xlu0 %687
        %v690 = vld [vmem:[%s462] sm:$0xff]
        %v691 = vrcp.pop %v690
        %693 = vset.pattern.permute.xlu0 0
        %694 = vperm.xlu0 %693, %v691
        %v695 = vpop.permute.xlu0 %694
        %v697 = vld [vmem:[%s550] sm:$0xff]
        %v698 = vrcp.pop %v697
        %700 = vset.pattern.permute.xlu0 0
        %701 = vperm.xlu0 %700, %v698
        %v702 = vpop.permute.xlu0 %701
        %v704 = vld [vmem:[%s635] sm:$0xff]
        %v705 = vrcp.pop %v704
        %707 = vset.pattern.permute.xlu0 0
        %708 = vperm.xlu0 %707, %v705
        %v709 = vpop.permute.xlu0 %708
        %v711 = vld [vmem:[#allocation4] sm:$0xff]
        %v712 = vsel %vm341, %v688, %v695
        %vm713 = vcmask 130048
        %v714 = vsel %vm713, %v712, %v702
        %vm715 = vcmask 195584
        %v716 = vsel %vm715, %v714, %v709
        %v717 = vmul.f32 %v711, %v716
        %vm718 = vcmask 261120
        %719 = vst.msk [vmem:[%s314] sm:$0xff] %vm718, %v717
      $region44: #{transformer_forward.34} parent=35 // pred_fallthru
        _
      %p720 = scmp.lt.s32.totalorder %s20, 1
      %s721 = scalar_select %p720, %s20, 1
      %p722 = scmp.lt.s32.totalorder %s21, 0
      %s723 = scalar_select %p722, %s21, 0
      %s724 = sadd.s32 %s723, %s721
      %s725 = smul.addr %s724, 8
      %s726 = scalar_lea.vmem %s4, %s725
      // Predicated region
      $region45: #{transformer_forward.34} parent=35 // pred_check
        %p727 = pneg %p166
      $region46: #{transformer_forward.34} parent=35 // pred_check_branch
        %729 = sbr.rel (%p727) target = $region48
      $region47: #{transformer_forward.34} parent=35 // pred_region
        _
      $region48: #{transformer_forward.34} parent=35 // pred_fallthru
        _
    $region36: #{transformer_forward.34} parent=5 // pred_fallthru
      _
    %p730 = scmp.le.s32.totalorder 2, %s10
    // Predicated region
    $region49: #{transformer_forward.34} parent=5 // pred_check
      %p731 = pneg %p730
    $region50: #{transformer_forward.34} parent=5 // pred_check_branch
      %733 = sbr.rel (%p731) target = $region52
    $region51: #{transformer_forward.34} parent=5 // pred_region
      %s734 = ssub.s32 %s10, 2
      // Predicated region
      $region53: #{transformer_forward.34} parent=51 // pred_check
        %p735 = pneg %p172
      $region54: #{transformer_forward.34} parent=51 // pred_check_branch
        %737 = sbr.rel (%p735) target = $region56
      $region55: #{transformer_forward.34} parent=51 // pred_region
        %p738 = scmp.lt.s32.totalorder %s23, 1
        %s739 = scalar_select %p738, %s23, 1
        %p740 = scmp.lt.s32.totalorder %s24, 0
        %s741 = scalar_select %p740, %s24, 0
        %s742 = sadd.s32 %s741, %s739
        %s743 = smul.addr %s742, 8
        %s744 = scalar_lea.vmem %s4, %s743
      $region56: #{transformer_forward.34} parent=51 // pred_fallthru
        _
    $region52: #{transformer_forward.34} parent=5 // pred_fallthru
      _
  $region6: #{transformer_forward.34} parent=0 // loop_footer
    %s14 = sadd.s32 1, %s10
  $region7: #{transformer_forward.34} parent=0 // loop_footer_branch
    %9 = sbr.rel target = $region3
  $region8: #{transformer_forward.34} parent=0 // loop_exit
    _

</llo_original>
